<compile_context>
chip_gen: v7x
topology: tpu7x:2x2x1
jax: 0.10.0
libtpu: 0.0.40
codegen_flags: <defaults>
</compile_context>

<pallas_src>
import functools

import jax
import jax.numpy as jnp
import numpy as np
from jax.experimental import pallas as pl
from jax.experimental.pallas import tpu as pltpu


_NEG_FILL = -1e30  # acts like -inf for lane padding without generating NaNs


def _round_up(x: int, m: int) -> int:
    return ((x + m - 1) // m) * m


def sparsemax_kernel(x_ref, o_ref, *, row_block: int):
    """Sparsemax over the last (lane) dim of a (row_tile, D) VMEM tile.

    The DMA tile is row_tile rows; the O(D^2) pairwise work runs on
    row_block-row sub-blocks so live intermediates stay small regardless of
    how big the DMA tile is.
    """
    n_blocks = x_ref.shape[0] // row_block

    @pl.loop(0, n_blocks)
    def _(rb):
        r0 = pl.multiple_of(rb * row_block, row_block)
        z = x_ref[pl.ds(r0, row_block), :].astype(jnp.float32)      # (RB, D)
        # Shift by the row max (numerical hygiene; sparsemax is shift-invariant
        # and the sorted reference shifts too).
        z = z - jnp.max(z, axis=-1, keepdims=True)

        # Sort-free support test, fused:  acc_j = sum_i min(z_j - z_i, 0).
        # i lives on the sublane axis (axis=1) -> the reduction is VALU adds
        # and acc comes out with j on lanes, matching z's layout.
        pair = jnp.minimum(z[:, None, :] - z[:, :, None], 0.0)      # (RB, Di, Dj)
        acc = jnp.sum(pair, axis=1)                                  # (RB, D)
        support = acc > -1.0                                         # 1 + acc > 0

        k = jnp.sum(support.astype(jnp.float32), axis=-1, keepdims=True)  # >= 1
        s = jnp.sum(jnp.where(support, z, 0.0), axis=-1, keepdims=True)
        # Per-row scalar divide; full-precision reciprocal keeps us bit-close
        # to the sorted reference while still going through the EUP path.
        tau = (s - 1.0) * pl.reciprocal(k, approx=False)

        o_ref[pl.ds(r0, row_block), :] = jnp.maximum(z - tau, 0.0).astype(o_ref.dtype)


@functools.partial(jax.jit, static_argnames=("dim", "row_tile", "row_block"))
def sparsemax(x, dim: int = -1, row_tile: int = 256, row_block: int = 32):
    """Sparsemax along `dim` (default last), Pallas-TPU hot path."""
    x_moved = jnp.moveaxis(x, dim, -1)
    orig_shape = x_moved.shape
    D = orig_shape[-1]
    z = x_moved.reshape(-1, D)
    R = z.shape[0]

    # Lane padding: keep the feature dim a multiple of 128 so loads/stores are
    # lane-dense (no masked vst). Padded lanes get a huge negative value: they
    # contribute 0 to acc and never enter the support, so real lanes are exact.
    Dp = _round_up(max(D, 1), 128)
    if Dp != D:
        z = jnp.pad(z, ((0, 0), (0, Dp - D)), constant_values=_NEG_FILL)

    # Row tiling: row_block (inner O(D^2) sub-block) is a multiple of 8/16/32
    # so it respects native sublane packing for f32/bf16/int8; row_tile (the
    # DMA tile) is large to amortize per-step overhead, clamped for tiny inputs.
    row_block = max(8, _round_up(row_block, 8))
    rt = max(row_block, min(row_tile, _round_up(R, row_block)))
    rt = _round_up(rt, row_block)
    assert rt % row_block == 0

    pad_r = (-R) % rt
    if pad_r:
        z = jnp.pad(z, ((0, pad_r), (0, 0)))   # zero rows -> benign 1/Dp rows, dropped
    Rp = z.shape[0]

    out = pl.pallas_call(
        functools.partial(sparsemax_kernel, row_block=row_block),
        out_shape=jax.ShapeDtypeStruct((Rp, Dp), x.dtype),
        grid_spec=pltpu.PrefetchScalarGridSpec(
            num_scalar_prefetch=0,
            grid=(Rp // rt,),
            in_specs=[pl.BlockSpec((rt, Dp), lambda i: (i, 0))],
            out_specs=pl.BlockSpec((rt, Dp), lambda i: (i, 0)),
        ),
        compiler_params=pltpu.CompilerParams(
            # "parallel" row axis shards across both TensorCores on v7x.
            dimension_semantics=("parallel",),
            # Kernel intermediates are ~6-8 MiB; 32 MiB is safe on all
            # generations (v5e default scoped is 16 MiB, v7x physical is 64).
            vmem_limit_bytes=32 * 1024 * 1024,
        ),
    )(z)

    out = out[:R, :D].reshape(orig_shape)
    return jnp.moveaxis(out, -1, dim)


def sparsemax_reference(x, dim: int = -1):
    """Pure-JAX reference (sort-based, standard algorithm)."""
    xm = jnp.moveaxis(x, dim, -1)
    shp = xm.shape
    z = xm.reshape(-1, shp[-1]).astype(jnp.float32)
    z = z - jnp.max(z, axis=-1, keepdims=True)
    zs = -jnp.sort(-z, axis=-1)
    D = z.shape[-1]
    ar = jnp.arange(1, D + 1, dtype=jnp.float32)
    cumsum = jnp.cumsum(zs, axis=-1)
    cond = 1.0 + ar * zs > cumsum
    k = jnp.sum(cond, axis=-1, keepdims=True)
    s = jnp.sum(jnp.where(cond, zs, 0.0), axis=-1, keepdims=True)
    tau = (s - 1.0) / k
    out = jnp.maximum(z - tau, 0.0).astype(x.dtype)
    return jnp.moveaxis(out.reshape(shp), -1, dim)


if __name__ == "__main__":
    # Sparsemax has no parameters, so nothing to initialize.
    key = jax.random.PRNGKey(0)
    k1, k2 = jax.random.split(key)

    # [B, C, S, D] = [2, 4, 8, 128]; sparsemax over the last (hidden) dim.
    x = jax.random.normal(k1, (2, 4, 8, 128), dtype=jnp.float32) * 3.0
    y = jax.block_until_ready(sparsemax(x, dim=-1))

    y_ref = sparsemax_reference(x, dim=-1)
    np.testing.assert_allclose(np.asarray(y), np.asarray(y_ref), rtol=1e-5, atol=1e-5)
    # Rows must sum to 1 and contain exact zeros (sparsity).
    row_sums = np.asarray(jnp.sum(y, axis=-1))
    np.testing.assert_allclose(row_sums, np.ones_like(row_sums), rtol=1e-5, atol=1e-5)
    assert np.mean(np.asarray(y) == 0.0) > 0.0

    # Ragged shape exercising the D- and row-padding paths (D=32 -> padded to 128).
    x2 = jax.random.normal(k2, (2, 3, 5, 32), dtype=jnp.float32) * 3.0
    y2 = jax.block_until_ready(sparsemax(x2, dim=-1))
    y2_ref = sparsemax_reference(x2, dim=-1)
    np.testing.assert_allclose(np.asarray(y2), np.asarray(y2_ref), rtol=1e-5, atol=1e-5)

    print("KERNEL_OK")
</pallas_src>

<mosaic_0001>
module attributes {stable_mosaic.version = 11 : i64} {
  func.func @sparsemax_kernel(%arg0: i32, %arg1: memref<64x128xf32, #tpu.memory_space<vmem>>, %arg2: memref<64x128xf32, #tpu.memory_space<vmem>>) attributes {dimension_semantics = [#tpu.dimension_semantics<parallel>], iteration_bounds = array<i64: 1>, scalar_prefetch = 0 : i64, scratch_operands = 0 : i64, tpu.core_type = #tpu.core_type<tc>, window_params = [{transform_indices = @transform_0, window_bounds = array<i64: 64, 128>}, {transform_indices = @transform_1, window_bounds = array<i64: 64, 128>}]} {
    %c0_i32 = arith.constant 0 : i32
    %c2_i32 = arith.constant 2 : i32
    %0 = arith.addi %c0_i32, %c2_i32 : i32
    %c1_i32 = arith.constant 1 : i32
    scf.for %arg3 = %c0_i32 to %0 step %c1_i32  : i32 {
      %c1_i32_1 = arith.constant 1 : i32
      %1 = arith.muli %arg3, %c1_i32_1 : i32
      %c0_i32_2 = arith.constant 0 : i32
      %2 = arith.addi %c0_i32_2, %1 : i32
      %c32_i32 = arith.constant 32 : i32
      %3 = arith.muli %2, %c32_i32 : i32
      %4 = tpu.assume_multiple %3, 32 : i32
      %5 = arith.index_cast %4 : i32 to index
      %c0 = arith.constant 0 : index
      %6 = vector.load %arg1[%5, %c0] : memref<64x128xf32, #tpu.memory_space<vmem>>, vector<32x128xf32>
      %cst = arith.constant dense<0xFF800000> : vector<32xf32>
      %7 = vector.multi_reduction <maximumf>, %6, %cst [1] : vector<32x128xf32> to vector<32xf32>
      %8 = vector.shape_cast %7 : vector<32xf32> to vector<32x1xf32>
      %9 = vector.broadcast %8 : vector<32x1xf32> to vector<32x128xf32>
      %10 = arith.subf %6, %9 : vector<32x128xf32>
      %11 = vector.shape_cast %10 : vector<32x128xf32> to vector<32x1x128xf32>
      %12 = vector.shape_cast %10 : vector<32x128xf32> to vector<32x128x1xf32>
      %13 = vector.broadcast %11 : vector<32x1x128xf32> to vector<32x128x128xf32>
      %14 = vector.broadcast %12 : vector<32x128x1xf32> to vector<32x128x128xf32>
      %15 = arith.subf %13, %14 : vector<32x128x128xf32>
      %cst_3 = arith.constant 0.000000e+00 : f32
      %16 = vector.broadcast %cst_3 : f32 to vector<32x128x128xf32>
      %17 = arith.minimumf %15, %16 : vector<32x128x128xf32>
      %cst_4 = arith.constant dense<0.000000e+00> : vector<32x128xf32>
      %18 = vector.multi_reduction <add>, %17, %cst_4 [1] : vector<32x128x128xf32> to vector<32x128xf32>
      %cst_5 = arith.constant -1.000000e+00 : f32
      %19 = vector.broadcast %cst_5 : f32 to vector<32x128xf32>
      %20 = arith.cmpf ogt, %18, %19 : vector<32x128xf32>
      %21 = arith.extui %20 : vector<32x128xi1> to vector<32x128xi32>
      %22 = arith.sitofp %21 : vector<32x128xi32> to vector<32x128xf32>
      %cst_6 = arith.constant dense<0.000000e+00> : vector<32xf32>
      %23 = vector.multi_reduction <add>, %22, %cst_6 [1] : vector<32x128xf32> to vector<32xf32>
      %24 = vector.shape_cast %23 : vector<32xf32> to vector<32x1xf32>
      %cst_7 = arith.constant 0.000000e+00 : f32
      %25 = vector.broadcast %cst_7 : f32 to vector<32x128xf32>
      %26 = arith.select %20, %10, %25 : vector<32x128xi1>, vector<32x128xf32>
      %cst_8 = arith.constant dense<0.000000e+00> : vector<32xf32>
      %27 = vector.multi_reduction <add>, %26, %cst_8 [1] : vector<32x128xf32> to vector<32xf32>
      %28 = vector.shape_cast %27 : vector<32xf32> to vector<32x1xf32>
      %cst_9 = arith.constant 1.000000e+00 : f32
      %29 = vector.broadcast %cst_9 : f32 to vector<32x1xf32>
      %30 = arith.subf %28, %29 : vector<32x1xf32>
      %31 = tpu.reciprocal %24 : vector<32x1xf32> -> vector<32x1xf32>
      %32 = arith.mulf %30, %31 : vector<32x1xf32>
      %33 = vector.broadcast %32 : vector<32x1xf32> to vector<32x128xf32>
      %34 = arith.subf %10, %33 : vector<32x128xf32>
      %cst_10 = arith.constant 0.000000e+00 : f32
      %35 = vector.broadcast %cst_10 : f32 to vector<32x128xf32>
      %36 = arith.maximumf %34, %35 : vector<32x128xf32>
      %37 = arith.index_cast %4 : i32 to index
      %c0_11 = arith.constant 0 : index
      %38 = vector.load %arg2[%37, %c0_11] : memref<64x128xf32, #tpu.memory_space<vmem>>, vector<32x128xf32>
      tpu.vector_store %arg2[%37, %c0_11], %36 {strides = array<i32>} : memref<64x128xf32, #tpu.memory_space<vmem>>, vector<32x128xf32>,
    }
    %c2_i32_0 = arith.constant 2 : i32
    return
  }
  func.func @transform_0(%arg0: i32) -> (i32, i32) {
    %c0_i32 = arith.constant 0 : i32
    %c0_i32_0 = arith.constant 0 : i32
    return %arg0, %c0_i32 : i32, i32
  }
  func.func @transform_1(%arg0: i32) -> (i32, i32) {
    %c0_i32 = arith.constant 0 : i32
    %c0_i32_0 = arith.constant 0 : i32
    return %arg0, %c0_i32 : i32, i32
  }
}

</mosaic_0001>

<llo_original>
// kernel: sparsemax.1
$region0: #{sparsemax.1}
  #allocation0 [shape = 'u32[]', space=smem, size = 0x4, offset = 0x4, fixed_abs, tag = 'smem constant byte address 0x4 - core index']
  #allocation1 [shape = 'u32[144,128]{1,0:T(1,128)}', space=vmem, size = 0x12000, scoped, tag = 'internal scratch']
  %s0 = inlined_call_operand.hbm [shape: f32[64,128], index: 0, kind: input, shape index: {}]
  %s1 = inlined_call_operand.hbm [shape: f32[64,128], index: 1, kind: output, shape index: {}]
  %s2 = sld [smem:[#allocation0]]
  $region25: #{sparsemax.1} parent=0
    _
  %s4 = ssub.s32 1, %s2
  %s5 = scalar_select 0, %s4, %s2
  $region1: #{sparsemax.1} parent=0
    #allocation2 [shape = 'u8[32768]{0}', space=vmem, size = 0x8000, scoped, tag = 'input window, operand 0, single buffered']
    #allocation3 [shape = 's32[1]{0}', space=sflag, size = 0x4, scoped, tag = 'scoped memory for sparsemax.1']
    #allocation4 [shape = 's32[1]{0}', space=sflag, size = 0x4, scoped, tag = 'scoped memory for sparsemax.1']
    #allocation5 [shape = 'u8[32768]{0}', space=vmem, size = 0x8000, scoped, tag = 'output window, operand 0, single buffered']
    %6 = vsyncpa [#allocation3], 0
    %7 = vsyncpa [#allocation4], 0
    // Predicated region
    $region2: #{sparsemax.1} parent=1 // pred_check
      _
    $region3: #{sparsemax.1} parent=1 // pred_check_branch
      %9 = sbr.rel (0) target = $region5
    $region4: #{sparsemax.1} parent=1 // pred_region
      %s11 = ssub.s32 1024, 1024
      %12 = vsyncadd [#allocation3], %s11
      %s13 = sshll.u32 [#allocation2], 4
      %s14 = int_to_ptr.vmem [resolvable:$true] %s13
      %19 = dma.hbm_to_vmem [thread:$0]  %s0, 1024, %s14, [#allocation3], 128, 128, 8
    $region5: #{sparsemax.1} parent=1 // pred_fallthru
      _
    // Predicated region
    $region6: #{sparsemax.1} parent=1 // pred_check
      _
    $region7: #{sparsemax.1} parent=1 // pred_check_branch
      %21 = sbr.rel (0) target = $region9
    $region8: #{sparsemax.1} parent=1 // pred_region
      %22 = dma.done [#allocation3], 1024
    $region9: #{sparsemax.1} parent=1 // pred_fallthru
      _
    loop: start=0, step=1, limit=2
    $region10: #{sparsemax.1} parent=1 // loop_pre_header
      _
    $region11: #{sparsemax.1} parent=1 // loop_header
      %s24 = sphi 0, %s28
      %p25 = scmp.ge.s32.totalorder %s24, 2
    $region12: #{sparsemax.1} parent=1 // loop_header_branch
      %27 = sbr.rel (%p25) target = $region16
    $region13: #{sparsemax.1} parent=1 // loop_body
      %s29 = smul.u32 %s24, 32
      %s30 = scalar_lea.vmem [#allocation2], %s29
      %v31 = vld [vmem:[%s30] sm:$0xff]
      %v32 = vld [vmem:[%s30 + $0x8] sm:$0xff]
      %v33 = vld [vmem:[%s30 + $0x10] sm:$0xff]
      %v34 = vld [vmem:[%s30 + $0x18] sm:$0xff]
      %35 = vmax.xlane.f32.xlu0 %v31
      %v36 = vpop.xlane.xlu0 %35
      %37 = vmax.xlane.f32.xlu0 %v32
      %v38 = vpop.xlane.xlu0 %37
      %39 = vmax.xlane.f32.xlu0 %v33
      %v40 = vpop.xlane.xlu0 %39
      %41 = vmax.xlane.f32.xlu0 %v34
      %v42 = vpop.xlane.xlu0 %41
      %v43 = vsub.f32 %v31, %v36
      %v44 = vsub.f32 %v32, %v38
      %v45 = vsub.f32 %v33, %v40
      %v46 = vsub.f32 %v34, %v42
      %v51 = vcombine.high %v43, %v43
      %v53 = vunpack.c.l.s4 1966171168
      %v54 = vunpack.c.0.s8 %v53
      %v55 = vlaneseq
      %v56 = vshrl.u32 %v55, 7
      %v57 = vsub.s32 %v54, %v56
      %v58 = vrot.slane %v43, %v57
      %v60 = vunpack.c.l.s4 1966171168
      %v61 = vunpack.c.0.s8 %v60
      %v62 = vlaneseq
      %v63 = vshrl.u32 %v62, 7
      %v64 = vsub.s32 %v61, %v63
      %v65 = vrot.slane %v51, %v64
      %v66 = vcombine.high %v58, %v58
      %v67 = vcombine.high %v65, %v65
      %v69 = vunpack.c.l.s4 1966171168
      %v70 = vunpack.c.0.s8 %v69
      %v71 = vlaneseq
      %v72 = vshrl.u32 %v71, 7
      %v73 = vsub.s32 %v70, %v72
      %v74 = vrot.slane %v58, %v73
      %v76 = vunpack.c.l.s4 1966171168
      %v77 = vunpack.c.0.s8 %v76
      %v78 = vlaneseq
      %v79 = vshrl.u32 %v78, 7
      %v80 = vsub.s32 %v77, %v79
      %v81 = vrot.slane %v65, %v80
      %v83 = vunpack.c.l.s4 1966171168
      %v84 = vunpack.c.0.s8 %v83
      %v85 = vlaneseq
      %v86 = vshrl.u32 %v85, 7
      %v87 = vsub.s32 %v84, %v86
      %v88 = vrot.slane %v66, %v87
      %v90 = vunpack.c.l.s4 1966171168
      %v91 = vunpack.c.0.s8 %v90
      %v92 = vlaneseq
      %v93 = vshrl.u32 %v92, 7
      %v94 = vsub.s32 %v91, %v93
      %v95 = vrot.slane %v67, %v94
      %v96 = vcombine.high %v74, %v74
      %v97 = vcombine.high %v81, %v81
      %v98 = vcombine.high %v88, %v88
      %v99 = vcombine.high %v95, %v95
      %v100 = vcombine.high %v44, %v44
      %v102 = vunpack.c.l.s4 1966171168
      %v103 = vunpack.c.0.s8 %v102
      %v104 = vlaneseq
      %v105 = vshrl.u32 %v104, 7
      %v106 = vsub.s32 %v103, %v105
      %v107 = vrot.slane %v44, %v106
      %v109 = vunpack.c.l.s4 1966171168
      %v110 = vunpack.c.0.s8 %v109
      %v111 = vlaneseq
      %v112 = vshrl.u32 %v111, 7
      %v113 = vsub.s32 %v110, %v112
      %v114 = vrot.slane %v100, %v113
      %v115 = vcombine.high %v107, %v107
      %v116 = vcombine.high %v114, %v114
      %v118 = vunpack.c.l.s4 1966171168
      %v119 = vunpack.c.0.s8 %v118
      %v120 = vlaneseq
      %v121 = vshrl.u32 %v120, 7
      %v122 = vsub.s32 %v119, %v121
      %v123 = vrot.slane %v107, %v122
      %v125 = vunpack.c.l.s4 1966171168
      %v126 = vunpack.c.0.s8 %v125
      %v127 = vlaneseq
      %v128 = vshrl.u32 %v127, 7
      %v129 = vsub.s32 %v126, %v128
      %v130 = vrot.slane %v114, %v129
      %v132 = vunpack.c.l.s4 1966171168
      %v133 = vunpack.c.0.s8 %v132
      %v134 = vlaneseq
      %v135 = vshrl.u32 %v134, 7
      %v136 = vsub.s32 %v133, %v135
      %v137 = vrot.slane %v115, %v136
      %v139 = vunpack.c.l.s4 1966171168
      %v140 = vunpack.c.0.s8 %v139
      %v141 = vlaneseq
      %v142 = vshrl.u32 %v141, 7
      %v143 = vsub.s32 %v140, %v142
      %v144 = vrot.slane %v116, %v143
      %v145 = vcombine.high %v123, %v123
      %v146 = vcombine.high %v130, %v130
      %v147 = vcombine.high %v137, %v137
      %v148 = vcombine.high %v144, %v144
      %v149 = vcombine.high %v45, %v45
      %v151 = vunpack.c.l.s4 1966171168
      %v152 = vunpack.c.0.s8 %v151
      %v153 = vlaneseq
      %v154 = vshrl.u32 %v153, 7
      %v155 = vsub.s32 %v152, %v154
      %v156 = vrot.slane %v45, %v155
      %v158 = vunpack.c.l.s4 1966171168
      %v159 = vunpack.c.0.s8 %v158
      %v160 = vlaneseq
      %v161 = vshrl.u32 %v160, 7
      %v162 = vsub.s32 %v159, %v161
      %v163 = vrot.slane %v149, %v162
      %v164 = vcombine.high %v156, %v156
      %v165 = vcombine.high %v163, %v163
      %v167 = vunpack.c.l.s4 1966171168
      %v168 = vunpack.c.0.s8 %v167
      %v169 = vlaneseq
      %v170 = vshrl.u32 %v169, 7
      %v171 = vsub.s32 %v168, %v170
      %v172 = vrot.slane %v156, %v171
      %v174 = vunpack.c.l.s4 1966171168
      %v175 = vunpack.c.0.s8 %v174
      %v176 = vlaneseq
      %v177 = vshrl.u32 %v176, 7
      %v178 = vsub.s32 %v175, %v177
      %v179 = vrot.slane %v163, %v178
      %v181 = vunpack.c.l.s4 1966171168
      %v182 = vunpack.c.0.s8 %v181
      %v183 = vlaneseq
      %v184 = vshrl.u32 %v183, 7
      %v185 = vsub.s32 %v182, %v184
      %v186 = vrot.slane %v164, %v185
      %v188 = vunpack.c.l.s4 1966171168
      %v189 = vunpack.c.0.s8 %v188
      %v190 = vlaneseq
      %v191 = vshrl.u32 %v190, 7
      %v192 = vsub.s32 %v189, %v191
      %v193 = vrot.slane %v165, %v192
      %v194 = vcombine.high %v172, %v172
      %v195 = vcombine.high %v179, %v179
      %v196 = vcombine.high %v186, %v186
      %v197 = vcombine.high %v193, %v193
      %v198 = vcombine.high %v46, %v46
      %v200 = vunpack.c.l.s4 1966171168
      %v201 = vunpack.c.0.s8 %v200
      %v202 = vlaneseq
      %v203 = vshrl.u32 %v202, 7
      %v204 = vsub.s32 %v201, %v203
      %v205 = vrot.slane %v46, %v204
      %v207 = vunpack.c.l.s4 1966171168
      %v208 = vunpack.c.0.s8 %v207
      %v209 = vlaneseq
      %v210 = vshrl.u32 %v209, 7
      %v211 = vsub.s32 %v208, %v210
      %v212 = vrot.slane %v198, %v211
      %v213 = vcombine.high %v205, %v205
      %v214 = vcombine.high %v212, %v212
      %v216 = vunpack.c.l.s4 1966171168
      %v217 = vunpack.c.0.s8 %v216
      %v218 = vlaneseq
      %v219 = vshrl.u32 %v218, 7
      %v220 = vsub.s32 %v217, %v219
      %v221 = vrot.slane %v205, %v220
      %v223 = vunpack.c.l.s4 1966171168
      %v224 = vunpack.c.0.s8 %v223
      %v225 = vlaneseq
      %v226 = vshrl.u32 %v225, 7
      %v227 = vsub.s32 %v224, %v226
      %v228 = vrot.slane %v212, %v227
      %v230 = vunpack.c.l.s4 1966171168
      %v231 = vunpack.c.0.s8 %v230
      %v232 = vlaneseq
      %v233 = vshrl.u32 %v232, 7
      %v234 = vsub.s32 %v231, %v233
      %v235 = vrot.slane %v213, %v234
      %v237 = vunpack.c.l.s4 1966171168
      %v238 = vunpack.c.0.s8 %v237
      %v239 = vlaneseq
      %v240 = vshrl.u32 %v239, 7
      %v241 = vsub.s32 %v238, %v240
      %v242 = vrot.slane %v214, %v241
      %v243 = vcombine.high %v221, %v221
      %v244 = vcombine.high %v228, %v228
      %v245 = vcombine.high %v235, %v235
      %v246 = vcombine.high %v242, %v242
      %v247 = vlaneseq
      %v248 = vshrl.u32 %v247, 7
      %v249 = vsub.s32 0, %v248
      %v250 = vrot.slane %v43, %v249
      %252 = vbcast.lane.b32.xlu0 %v250, 256
      %v253 = vpop.permute.xlu0 %252
      %s255 = sor.u32 256, 8
      %256 = vbcast.lane.b32.xlu0 %v250, %s255
      %v257 = vpop.permute.xlu0 %256
      %s259 = sor.u32 256, 16
      %260 = vbcast.lane.b32.xlu0 %v250, %s259
      %v261 = vpop.permute.xlu0 %260
      %s263 = sor.u32 256, 24
      %264 = vbcast.lane.b32.xlu0 %v250, %s263
      %v265 = vpop.permute.xlu0 %264
      %s267 = sor.u32 256, 32
      %268 = vbcast.lane.b32.xlu0 %v250, %s267
      %v269 = vpop.permute.xlu0 %268
      %s271 = sor.u32 256, 40
      %272 = vbcast.lane.b32.xlu0 %v250, %s271
      %v273 = vpop.permute.xlu0 %272
      %s275 = sor.u32 256, 48
      %276 = vbcast.lane.b32.xlu0 %v250, %s275
      %v277 = vpop.permute.xlu0 %276
      %s279 = sor.u32 256, 56
      %280 = vbcast.lane.b32.xlu0 %v250, %s279
      %v281 = vpop.permute.xlu0 %280
      %s283 = sor.u32 256, 64
      %284 = vbcast.lane.b32.xlu0 %v250, %s283
      %v285 = vpop.permute.xlu0 %284
      %s287 = sor.u32 256, 72
      %288 = vbcast.lane.b32.xlu0 %v250, %s287
      %v289 = vpop.permute.xlu0 %288
      %s291 = sor.u32 256, 80
      %292 = vbcast.lane.b32.xlu0 %v250, %s291
      %v293 = vpop.permute.xlu0 %292
      %s295 = sor.u32 256, 88
      %296 = vbcast.lane.b32.xlu0 %v250, %s295
      %v297 = vpop.permute.xlu0 %296
      %s299 = sor.u32 256, 96
      %300 = vbcast.lane.b32.xlu0 %v250, %s299
      %v301 = vpop.permute.xlu0 %300
      %s303 = sor.u32 256, 104
      %304 = vbcast.lane.b32.xlu0 %v250, %s303
      %v305 = vpop.permute.xlu0 %304
      %s307 = sor.u32 256, 112
      %308 = vbcast.lane.b32.xlu0 %v250, %s307
      %v309 = vpop.permute.xlu0 %308
      %s311 = sor.u32 256, 120
      %312 = vbcast.lane.b32.xlu0 %v250, %s311
      %v313 = vpop.permute.xlu0 %312
      %v314 = vlaneseq
      %v315 = vshrl.u32 %v314, 7
      %v316 = vsub.s32 1, %v315
      %v317 = vrot.slane %v43, %v316
      %319 = vbcast.lane.b32.xlu0 %v317, 256
      %v320 = vpop.permute.xlu0 %319
      %s322 = sor.u32 256, 8
      %323 = vbcast.lane.b32.xlu0 %v317, %s322
      %v324 = vpop.permute.xlu0 %323
      %s326 = sor.u32 256, 16
      %327 = vbcast.lane.b32.xlu0 %v317, %s326
      %v328 = vpop.permute.xlu0 %327
      %s330 = sor.u32 256, 24
      %331 = vbcast.lane.b32.xlu0 %v317, %s330
      %v332 = vpop.permute.xlu0 %331
      %s334 = sor.u32 256, 32
      %335 = vbcast.lane.b32.xlu0 %v317, %s334
      %v336 = vpop.permute.xlu0 %335
      %s338 = sor.u32 256, 40
      %339 = vbcast.lane.b32.xlu0 %v317, %s338
      %v340 = vpop.permute.xlu0 %339
      %s342 = sor.u32 256, 48
      %343 = vbcast.lane.b32.xlu0 %v317, %s342
      %v344 = vpop.permute.xlu0 %343
      %s346 = sor.u32 256, 56
      %347 = vbcast.lane.b32.xlu0 %v317, %s346
      %v348 = vpop.permute.xlu0 %347
      %s350 = sor.u32 256, 64
      %351 = vbcast.lane.b32.xlu0 %v317, %s350
      %v352 = vpop.permute.xlu0 %351
      %s354 = sor.u32 256, 72
      %355 = vbcast.lane.b32.xlu0 %v317, %s354
      %v356 = vpop.permute.xlu0 %355
      %s358 = sor.u32 256, 80
      %359 = vbcast.lane.b32.xlu0 %v317, %s358
      %v360 = vpop.permute.xlu0 %359
      %s362 = sor.u32 256, 88
      %363 = vbcast.lane.b32.xlu0 %v317, %s362
      %v364 = vpop.permute.xlu0 %363
      %s366 = sor.u32 256, 96
      %367 = vbcast.lane.b32.xlu0 %v317, %s366
      %v368 = vpop.permute.xlu0 %367
      %s370 = sor.u32 256, 104
      %371 = vbcast.lane.b32.xlu0 %v317, %s370
      %v372 = vpop.permute.xlu0 %371
      %s374 = sor.u32 256, 112
      %375 = vbcast.lane.b32.xlu0 %v317, %s374
      %v376 = vpop.permute.xlu0 %375
      %s378 = sor.u32 256, 120
      %379 = vbcast.lane.b32.xlu0 %v317, %s378
      %v380 = vpop.permute.xlu0 %379
      %v381 = vlaneseq
      %v382 = vshrl.u32 %v381, 7
      %v383 = vsub.s32 2, %v382
      %v384 = vrot.slane %v43, %v383
      %386 = vbcast.lane.b32.xlu0 %v384, 256
      %v387 = vpop.permute.xlu0 %386
      %s389 = sor.u32 256, 8
      %390 = vbcast.lane.b32.xlu0 %v384, %s389
      %v391 = vpop.permute.xlu0 %390
      %s393 = sor.u32 256, 16
      %394 = vbcast.lane.b32.xlu0 %v384, %s393
      %v395 = vpop.permute.xlu0 %394
      %s397 = sor.u32 256, 24
      %398 = vbcast.lane.b32.xlu0 %v384, %s397
      %v399 = vpop.permute.xlu0 %398
      %s401 = sor.u32 256, 32
      %402 = vbcast.lane.b32.xlu0 %v384, %s401
      %v403 = vpop.permute.xlu0 %402
      %s405 = sor.u32 256, 40
      %406 = vbcast.lane.b32.xlu0 %v384, %s405
      %v407 = vpop.permute.xlu0 %406
      %s409 = sor.u32 256, 48
      %410 = vbcast.lane.b32.xlu0 %v384, %s409
      %v411 = vpop.permute.xlu0 %410
      %s413 = sor.u32 256, 56
      %414 = vbcast.lane.b32.xlu0 %v384, %s413
      %v415 = vpop.permute.xlu0 %414
      %s417 = sor.u32 256, 64
      %418 = vbcast.lane.b32.xlu0 %v384, %s417
      %v419 = vpop.permute.xlu0 %418
      %s421 = sor.u32 256, 72
      %422 = vbcast.lane.b32.xlu0 %v384, %s421
      %v423 = vpop.permute.xlu0 %422
      %s425 = sor.u32 256, 80
      %426 = vbcast.lane.b32.xlu0 %v384, %s425
      %v427 = vpop.permute.xlu0 %426
      %s429 = sor.u32 256, 88
      %430 = vbcast.lane.b32.xlu0 %v384, %s429
      %v431 = vpop.permute.xlu0 %430
      %s433 = sor.u32 256, 96
      %434 = vbcast.lane.b32.xlu0 %v384, %s433
      %v435 = vpop.permute.xlu0 %434
      %s437 = sor.u32 256, 104
      %438 = vbcast.lane.b32.xlu0 %v384, %s437
      %v439 = vpop.permute.xlu0 %438
      %s441 = sor.u32 256, 112
      %442 = vbcast.lane.b32.xlu0 %v384, %s441
      %v443 = vpop.permute.xlu0 %442
      %s445 = sor.u32 256, 120
      %446 = vbcast.lane.b32.xlu0 %v384, %s445
      %v447 = vpop.permute.xlu0 %446
      %v448 = vlaneseq
      %v449 = vshrl.u32 %v448, 7
      %v450 = vsub.s32 3, %v449
      %v451 = vrot.slane %v43, %v450
      %453 = vbcast.lane.b32.xlu0 %v451, 256
      %v454 = vpop.permute.xlu0 %453
      %s456 = sor.u32 256, 8
      %457 = vbcast.lane.b32.xlu0 %v451, %s456
      %v458 = vpop.permute.xlu0 %457
      %s460 = sor.u32 256, 16
      %461 = vbcast.lane.b32.xlu0 %v451, %s460
      %v462 = vpop.permute.xlu0 %461
      %s464 = sor.u32 256, 24
      %465 = vbcast.lane.b32.xlu0 %v451, %s464
      %v466 = vpop.permute.xlu0 %465
      %s468 = sor.u32 256, 32
      %469 = vbcast.lane.b32.xlu0 %v451, %s468
      %v470 = vpop.permute.xlu0 %469
      %s472 = sor.u32 256, 40
      %473 = vbcast.lane.b32.xlu0 %v451, %s472
      %v474 = vpop.permute.xlu0 %473
      %s476 = sor.u32 256, 48
      %477 = vbcast.lane.b32.xlu0 %v451, %s476
      %v478 = vpop.permute.xlu0 %477
      %s480 = sor.u32 256, 56
      %481 = vbcast.lane.b32.xlu0 %v451, %s480
      %v482 = vpop.permute.xlu0 %481
      %s484 = sor.u32 256, 64
      %485 = vbcast.lane.b32.xlu0 %v451, %s484
      %v486 = vpop.permute.xlu0 %485
      %s488 = sor.u32 256, 72
      %489 = vbcast.lane.b32.xlu0 %v451, %s488
      %v490 = vpop.permute.xlu0 %489
      %s492 = sor.u32 256, 80
      %493 = vbcast.lane.b32.xlu0 %v451, %s492
      %v494 = vpop.permute.xlu0 %493
      %s496 = sor.u32 256, 88
      %497 = vbcast.lane.b32.xlu0 %v451, %s496
      %v498 = vpop.permute.xlu0 %497
      %s500 = sor.u32 256, 96
      %501 = vbcast.lane.b32.xlu0 %v451, %s500
      %v502 = vpop.permute.xlu0 %501
      %s504 = sor.u32 256, 104
      %505 = vbcast.lane.b32.xlu0 %v451, %s504
      %v506 = vpop.permute.xlu0 %505
      %s508 = sor.u32 256, 112
      %509 = vbcast.lane.b32.xlu0 %v451, %s508
      %v510 = vpop.permute.xlu0 %509
      %s512 = sor.u32 256, 120
      %513 = vbcast.lane.b32.xlu0 %v451, %s512
      %v514 = vpop.permute.xlu0 %513
      %v515 = vlaneseq
      %v516 = vshrl.u32 %v515, 7
      %v517 = vsub.s32 4, %v516
      %v518 = vrot.slane %v43, %v517
      %520 = vbcast.lane.b32.xlu0 %v518, 256
      %v521 = vpop.permute.xlu0 %520
      %s523 = sor.u32 256, 8
      %524 = vbcast.lane.b32.xlu0 %v518, %s523
      %v525 = vpop.permute.xlu0 %524
      %s527 = sor.u32 256, 16
      %528 = vbcast.lane.b32.xlu0 %v518, %s527
      %v529 = vpop.permute.xlu0 %528
      %s531 = sor.u32 256, 24
      %532 = vbcast.lane.b32.xlu0 %v518, %s531
      %v533 = vpop.permute.xlu0 %532
      %s535 = sor.u32 256, 32
      %536 = vbcast.lane.b32.xlu0 %v518, %s535
      %v537 = vpop.permute.xlu0 %536
      %s539 = sor.u32 256, 40
      %540 = vbcast.lane.b32.xlu0 %v518, %s539
      %v541 = vpop.permute.xlu0 %540
      %s543 = sor.u32 256, 48
      %544 = vbcast.lane.b32.xlu0 %v518, %s543
      %v545 = vpop.permute.xlu0 %544
      %s547 = sor.u32 256, 56
      %548 = vbcast.lane.b32.xlu0 %v518, %s547
      %v549 = vpop.permute.xlu0 %548
      %s551 = sor.u32 256, 64
      %552 = vbcast.lane.b32.xlu0 %v518, %s551
      %v553 = vpop.permute.xlu0 %552
      %s555 = sor.u32 256, 72
      %556 = vbcast.lane.b32.xlu0 %v518, %s555
      %v557 = vpop.permute.xlu0 %556
      %s559 = sor.u32 256, 80
      %560 = vbcast.lane.b32.xlu0 %v518, %s559
      %v561 = vpop.permute.xlu0 %560
      %s563 = sor.u32 256, 88
      %564 = vbcast.lane.b32.xlu0 %v518, %s563
      %v565 = vpop.permute.xlu0 %564
      %s567 = sor.u32 256, 96
      %568 = vbcast.lane.b32.xlu0 %v518, %s567
      %v569 = vpop.permute.xlu0 %568
      %s571 = sor.u32 256, 104
      %572 = vbcast.lane.b32.xlu0 %v518, %s571
      %v573 = vpop.permute.xlu0 %572
      %s575 = sor.u32 256, 112
      %576 = vbcast.lane.b32.xlu0 %v518, %s575
      %v577 = vpop.permute.xlu0 %576
      %s579 = sor.u32 256, 120
      %580 = vbcast.lane.b32.xlu0 %v518, %s579
      %v581 = vpop.permute.xlu0 %580
      %v582 = vlaneseq
      %v583 = vshrl.u32 %v582, 7
      %v584 = vsub.s32 5, %v583
      %v585 = vrot.slane %v43, %v584
      %587 = vbcast.lane.b32.xlu0 %v585, 256
      %v588 = vpop.permute.xlu0 %587
      %s590 = sor.u32 256, 8
      %591 = vbcast.lane.b32.xlu0 %v585, %s590
      %v592 = vpop.permute.xlu0 %591
      %s594 = sor.u32 256, 16
      %595 = vbcast.lane.b32.xlu0 %v585, %s594
      %v596 = vpop.permute.xlu0 %595
      %s598 = sor.u32 256, 24
      %599 = vbcast.lane.b32.xlu0 %v585, %s598
      %v600 = vpop.permute.xlu0 %599
      %s602 = sor.u32 256, 32
      %603 = vbcast.lane.b32.xlu0 %v585, %s602
      %v604 = vpop.permute.xlu0 %603
      %s606 = sor.u32 256, 40
      %607 = vbcast.lane.b32.xlu0 %v585, %s606
      %v608 = vpop.permute.xlu0 %607
      %s610 = sor.u32 256, 48
      %611 = vbcast.lane.b32.xlu0 %v585, %s610
      %v612 = vpop.permute.xlu0 %611
      %s614 = sor.u32 256, 56
      %615 = vbcast.lane.b32.xlu0 %v585, %s614
      %v616 = vpop.permute.xlu0 %615
      %s618 = sor.u32 256, 64
      %619 = vbcast.lane.b32.xlu0 %v585, %s618
      %v620 = vpop.permute.xlu0 %619
      %s622 = sor.u32 256, 72
      %623 = vbcast.lane.b32.xlu0 %v585, %s622
      %v624 = vpop.permute.xlu0 %623
      %s626 = sor.u32 256, 80
      %627 = vbcast.lane.b32.xlu0 %v585, %s626
      %v628 = vpop.permute.xlu0 %627
      %s630 = sor.u32 256, 88
      %631 = vbcast.lane.b32.xlu0 %v585, %s630
      %v632 = vpop.permute.xlu0 %631
      %s634 = sor.u32 256, 96
      %635 = vbcast.lane.b32.xlu0 %v585, %s634
      %v636 = vpop.permute.xlu0 %635
      %s638 = sor.u32 256, 104
      %639 = vbcast.lane.b32.xlu0 %v585, %s638
      %v640 = vpop.permute.xlu0 %639
      %s642 = sor.u32 256, 112
      %643 = vbcast.lane.b32.xlu0 %v585, %s642
      %v644 = vpop.permute.xlu0 %643
      %s646 = sor.u32 256, 120
      %647 = vbcast.lane.b32.xlu0 %v585, %s646
      %v648 = vpop.permute.xlu0 %647
      %v649 = vlaneseq
      %v650 = vshrl.u32 %v649, 7
      %v651 = vsub.s32 6, %v650
      %v652 = vrot.slane %v43, %v651
      %654 = vbcast.lane.b32.xlu0 %v652, 256
      %v655 = vpop.permute.xlu0 %654
      %s657 = sor.u32 256, 8
      %658 = vbcast.lane.b32.xlu0 %v652, %s657
      %v659 = vpop.permute.xlu0 %658
      %s661 = sor.u32 256, 16
      %662 = vbcast.lane.b32.xlu0 %v652, %s661
      %v663 = vpop.permute.xlu0 %662
      %s665 = sor.u32 256, 24
      %666 = vbcast.lane.b32.xlu0 %v652, %s665
      %v667 = vpop.permute.xlu0 %666
      %s669 = sor.u32 256, 32
      %670 = vbcast.lane.b32.xlu0 %v652, %s669
      %v671 = vpop.permute.xlu0 %670
      %s673 = sor.u32 256, 40
      %674 = vbcast.lane.b32.xlu0 %v652, %s673
      %v675 = vpop.permute.xlu0 %674
      %s677 = sor.u32 256, 48
      %678 = vbcast.lane.b32.xlu0 %v652, %s677
      %v679 = vpop.permute.xlu0 %678
      %s681 = sor.u32 256, 56
      %682 = vbcast.lane.b32.xlu0 %v652, %s681
      %v683 = vpop.permute.xlu0 %682
      %s685 = sor.u32 256, 64
      %686 = vbcast.lane.b32.xlu0 %v652, %s685
      %v687 = vpop.permute.xlu0 %686
      %s689 = sor.u32 256, 72
      %690 = vbcast.lane.b32.xlu0 %v652, %s689
      %v691 = vpop.permute.xlu0 %690
      %s693 = sor.u32 256, 80
      %694 = vbcast.lane.b32.xlu0 %v652, %s693
      %v695 = vpop.permute.xlu0 %694
      %s697 = sor.u32 256, 88
      %698 = vbcast.lane.b32.xlu0 %v652, %s697
      %v699 = vpop.permute.xlu0 %698
      %s701 = sor.u32 256, 96
      %702 = vbcast.lane.b32.xlu0 %v652, %s701
      %v703 = vpop.permute.xlu0 %702
      %s705 = sor.u32 256, 104
      %706 = vbcast.lane.b32.xlu0 %v652, %s705
      %v707 = vpop.permute.xlu0 %706
      %s709 = sor.u32 256, 112
      %710 = vbcast.lane.b32.xlu0 %v652, %s709
      %v711 = vpop.permute.xlu0 %710
      %s713 = sor.u32 256, 120
      %714 = vbcast.lane.b32.xlu0 %v652, %s713
      %v715 = vpop.permute.xlu0 %714
      %v716 = vlaneseq
      %v717 = vshrl.u32 %v716, 7
      %v718 = vsub.s32 7, %v717
      %v719 = vrot.slane %v43, %v718
      %721 = vbcast.lane.b32.xlu0 %v719, 256
      %v722 = vpop.permute.xlu0 %721
      %s724 = sor.u32 256, 8
      %725 = vbcast.lane.b32.xlu0 %v719, %s724
      %v726 = vpop.permute.xlu0 %725
      %s728 = sor.u32 256, 16
      %729 = vbcast.lane.b32.xlu0 %v719, %s728
      %v730 = vpop.permute.xlu0 %729
      %s732 = sor.u32 256, 24
      %733 = vbcast.lane.b32.xlu0 %v719, %s732
      %v734 = vpop.permute.xlu0 %733
      %s736 = sor.u32 256, 32
      %737 = vbcast.lane.b32.xlu0 %v719, %s736
      %v738 = vpop.permute.xlu0 %737
      %s740 = sor.u32 256, 40
      %741 = vbcast.lane.b32.xlu0 %v719, %s740
      %v742 = vpop.permute.xlu0 %741
      %s744 = sor.u32 256, 48
      %745 = vbcast.lane.b32.xlu0 %v719, %s744
      %v746 = vpop.permute.xlu0 %745
      %s748 = sor.u32 256, 56
      %749 = vbcast.lane.b32.xlu0 %v719, %s748
      %v750 = vpop.permute.xlu0 %749
      %s752 = sor.u32 256, 64
      %753 = vbcast.lane.b32.xlu0 %v719, %s752
      %v754 = vpop.permute.xlu0 %753
      %s756 = sor.u32 256, 72
      %757 = vbcast.lane.b32.xlu0 %v719, %s756
      %v758 = vpop.permute.xlu0 %757
      %s760 = sor.u32 256, 80
      %761 = vbcast.lane.b32.xlu0 %v719, %s760
      %v762 = vpop.permute.xlu0 %761
      %s764 = sor.u32 256, 88
      %765 = vbcast.lane.b32.xlu0 %v719, %s764
      %v766 = vpop.permute.xlu0 %765
      %s768 = sor.u32 256, 96
      %769 = vbcast.lane.b32.xlu0 %v719, %s768
      %v770 = vpop.permute.xlu0 %769
      %s772 = sor.u32 256, 104
      %773 = vbcast.lane.b32.xlu0 %v719, %s772
      %v774 = vpop.permute.xlu0 %773
      %s776 = sor.u32 256, 112
      %777 = vbcast.lane.b32.xlu0 %v719, %s776
      %v778 = vpop.permute.xlu0 %777
      %s780 = sor.u32 256, 120
      %781 = vbcast.lane.b32.xlu0 %v719, %s780
      %v782 = vpop.permute.xlu0 %781
      %v783 = vlaneseq
      %v784 = vshrl.u32 %v783, 7
      %v785 = vsub.s32 0, %v784
      %v786 = vrot.slane %v44, %v785
      %788 = vbcast.lane.b32.xlu0 %v786, 256
      %v789 = vpop.permute.xlu0 %788
      %s791 = sor.u32 256, 8
      %792 = vbcast.lane.b32.xlu0 %v786, %s791
      %v793 = vpop.permute.xlu0 %792
      %s795 = sor.u32 256, 16
      %796 = vbcast.lane.b32.xlu0 %v786, %s795
      %v797 = vpop.permute.xlu0 %796
      %s799 = sor.u32 256, 24
      %800 = vbcast.lane.b32.xlu0 %v786, %s799
      %v801 = vpop.permute.xlu0 %800
      %s803 = sor.u32 256, 32
      %804 = vbcast.lane.b32.xlu0 %v786, %s803
      %v805 = vpop.permute.xlu0 %804
      %s807 = sor.u32 256, 40
      %808 = vbcast.lane.b32.xlu0 %v786, %s807
      %v809 = vpop.permute.xlu0 %808
      %s811 = sor.u32 256, 48
      %812 = vbcast.lane.b32.xlu0 %v786, %s811
      %v813 = vpop.permute.xlu0 %812
      %s815 = sor.u32 256, 56
      %816 = vbcast.lane.b32.xlu0 %v786, %s815
      %v817 = vpop.permute.xlu0 %816
      %s819 = sor.u32 256, 64
      %820 = vbcast.lane.b32.xlu0 %v786, %s819
      %v821 = vpop.permute.xlu0 %820
      %s823 = sor.u32 256, 72
      %824 = vbcast.lane.b32.xlu0 %v786, %s823
      %v825 = vpop.permute.xlu0 %824
      %s827 = sor.u32 256, 80
      %828 = vbcast.lane.b32.xlu0 %v786, %s827
      %v829 = vpop.permute.xlu0 %828
      %s831 = sor.u32 256, 88
      %832 = vbcast.lane.b32.xlu0 %v786, %s831
      %v833 = vpop.permute.xlu0 %832
      %s835 = sor.u32 256, 96
      %836 = vbcast.lane.b32.xlu0 %v786, %s835
      %v837 = vpop.permute.xlu0 %836
      %s839 = sor.u32 256, 104
      %840 = vbcast.lane.b32.xlu0 %v786, %s839
      %v841 = vpop.permute.xlu0 %840
      %s843 = sor.u32 256, 112
      %844 = vbcast.lane.b32.xlu0 %v786, %s843
      %v845 = vpop.permute.xlu0 %844
      %s847 = sor.u32 256, 120
      %848 = vbcast.lane.b32.xlu0 %v786, %s847
      %v849 = vpop.permute.xlu0 %848
      %v850 = vlaneseq
      %v851 = vshrl.u32 %v850, 7
      %v852 = vsub.s32 1, %v851
      %v853 = vrot.slane %v44, %v852
      %855 = vbcast.lane.b32.xlu0 %v853, 256
      %v856 = vpop.permute.xlu0 %855
      %s858 = sor.u32 256, 8
      %859 = vbcast.lane.b32.xlu0 %v853, %s858
      %v860 = vpop.permute.xlu0 %859
      %s862 = sor.u32 256, 16
      %863 = vbcast.lane.b32.xlu0 %v853, %s862
      %v864 = vpop.permute.xlu0 %863
      %s866 = sor.u32 256, 24
      %867 = vbcast.lane.b32.xlu0 %v853, %s866
      %v868 = vpop.permute.xlu0 %867
      %s870 = sor.u32 256, 32
      %871 = vbcast.lane.b32.xlu0 %v853, %s870
      %v872 = vpop.permute.xlu0 %871
      %s874 = sor.u32 256, 40
      %875 = vbcast.lane.b32.xlu0 %v853, %s874
      %v876 = vpop.permute.xlu0 %875
      %s878 = sor.u32 256, 48
      %879 = vbcast.lane.b32.xlu0 %v853, %s878
      %v880 = vpop.permute.xlu0 %879
      %s882 = sor.u32 256, 56
      %883 = vbcast.lane.b32.xlu0 %v853, %s882
      %v884 = vpop.permute.xlu0 %883
      %s886 = sor.u32 256, 64
      %887 = vbcast.lane.b32.xlu0 %v853, %s886
      %v888 = vpop.permute.xlu0 %887
      %s890 = sor.u32 256, 72
      %891 = vbcast.lane.b32.xlu0 %v853, %s890
      %v892 = vpop.permute.xlu0 %891
      %s894 = sor.u32 256, 80
      %895 = vbcast.lane.b32.xlu0 %v853, %s894
      %v896 = vpop.permute.xlu0 %895
      %s898 = sor.u32 256, 88
      %899 = vbcast.lane.b32.xlu0 %v853, %s898
      %v900 = vpop.permute.xlu0 %899
      %s902 = sor.u32 256, 96
      %903 = vbcast.lane.b32.xlu0 %v853, %s902
      %v904 = vpop.permute.xlu0 %903
      %s906 = sor.u32 256, 104
      %907 = vbcast.lane.b32.xlu0 %v853, %s906
      %v908 = vpop.permute.xlu0 %907
      %s910 = sor.u32 256, 112
      %911 = vbcast.lane.b32.xlu0 %v853, %s910
      %v912 = vpop.permute.xlu0 %911
      %s914 = sor.u32 256, 120
      %915 = vbcast.lane.b32.xlu0 %v853, %s914
      %v916 = vpop.permute.xlu0 %915
      %v917 = vlaneseq
      %v918 = vshrl.u32 %v917, 7
      %v919 = vsub.s32 2, %v918
      %v920 = vrot.slane %v44, %v919
      %922 = vbcast.lane.b32.xlu0 %v920, 256
      %v923 = vpop.permute.xlu0 %922
      %s925 = sor.u32 256, 8
      %926 = vbcast.lane.b32.xlu0 %v920, %s925
      %v927 = vpop.permute.xlu0 %926
      %s929 = sor.u32 256, 16
      %930 = vbcast.lane.b32.xlu0 %v920, %s929
      %v931 = vpop.permute.xlu0 %930
      %s933 = sor.u32 256, 24
      %934 = vbcast.lane.b32.xlu0 %v920, %s933
      %v935 = vpop.permute.xlu0 %934
      %s937 = sor.u32 256, 32
      %938 = vbcast.lane.b32.xlu0 %v920, %s937
      %v939 = vpop.permute.xlu0 %938
      %s941 = sor.u32 256, 40
      %942 = vbcast.lane.b32.xlu0 %v920, %s941
      %v943 = vpop.permute.xlu0 %942
      %s945 = sor.u32 256, 48
      %946 = vbcast.lane.b32.xlu0 %v920, %s945
      %v947 = vpop.permute.xlu0 %946
      %s949 = sor.u32 256, 56
      %950 = vbcast.lane.b32.xlu0 %v920, %s949
      %v951 = vpop.permute.xlu0 %950
      %s953 = sor.u32 256, 64
      %954 = vbcast.lane.b32.xlu0 %v920, %s953
      %v955 = vpop.permute.xlu0 %954
      %s957 = sor.u32 256, 72
      %958 = vbcast.lane.b32.xlu0 %v920, %s957
      %v959 = vpop.permute.xlu0 %958
      %s961 = sor.u32 256, 80
      %962 = vbcast.lane.b32.xlu0 %v920, %s961
      %v963 = vpop.permute.xlu0 %962
      %s965 = sor.u32 256, 88
      %966 = vbcast.lane.b32.xlu0 %v920, %s965
      %v967 = vpop.permute.xlu0 %966
      %s969 = sor.u32 256, 96
      %970 = vbcast.lane.b32.xlu0 %v920, %s969
      %v971 = vpop.permute.xlu0 %970
      %s973 = sor.u32 256, 104
      %974 = vbcast.lane.b32.xlu0 %v920, %s973
      %v975 = vpop.permute.xlu0 %974
      %s977 = sor.u32 256, 112
      %978 = vbcast.lane.b32.xlu0 %v920, %s977
      %v979 = vpop.permute.xlu0 %978
      %s981 = sor.u32 256, 120
      %982 = vbcast.lane.b32.xlu0 %v920, %s981
      %v983 = vpop.permute.xlu0 %982
      %v984 = vlaneseq
      %v985 = vshrl.u32 %v984, 7
      %v986 = vsub.s32 3, %v985
      %v987 = vrot.slane %v44, %v986
      %989 = vbcast.lane.b32.xlu0 %v987, 256
      %v990 = vpop.permute.xlu0 %989
      %s992 = sor.u32 256, 8
      %993 = vbcast.lane.b32.xlu0 %v987, %s992
      %v994 = vpop.permute.xlu0 %993
      %s996 = sor.u32 256, 16
      %997 = vbcast.lane.b32.xlu0 %v987, %s996
      %v998 = vpop.permute.xlu0 %997
      %s1000 = sor.u32 256, 24
      %1001 = vbcast.lane.b32.xlu0 %v987, %s1000
      %v1002 = vpop.permute.xlu0 %1001
      %s1004 = sor.u32 256, 32
      %1005 = vbcast.lane.b32.xlu0 %v987, %s1004
      %v1006 = vpop.permute.xlu0 %1005
      %s1008 = sor.u32 256, 40
      %1009 = vbcast.lane.b32.xlu0 %v987, %s1008
      %v1010 = vpop.permute.xlu0 %1009
      %s1012 = sor.u32 256, 48
      %1013 = vbcast.lane.b32.xlu0 %v987, %s1012
      %v1014 = vpop.permute.xlu0 %1013
      %s1016 = sor.u32 256, 56
      %1017 = vbcast.lane.b32.xlu0 %v987, %s1016
      %v1018 = vpop.permute.xlu0 %1017
      %s1020 = sor.u32 256, 64
      %1021 = vbcast.lane.b32.xlu0 %v987, %s1020
      %v1022 = vpop.permute.xlu0 %1021
      %s1024 = sor.u32 256, 72
      %1025 = vbcast.lane.b32.xlu0 %v987, %s1024
      %v1026 = vpop.permute.xlu0 %1025
      %s1028 = sor.u32 256, 80
      %1029 = vbcast.lane.b32.xlu0 %v987, %s1028
      %v1030 = vpop.permute.xlu0 %1029
      %s1032 = sor.u32 256, 88
      %1033 = vbcast.lane.b32.xlu0 %v987, %s1032
      %v1034 = vpop.permute.xlu0 %1033
      %s1036 = sor.u32 256, 96
      %1037 = vbcast.lane.b32.xlu0 %v987, %s1036
      %v1038 = vpop.permute.xlu0 %1037
      %s1040 = sor.u32 256, 104
      %1041 = vbcast.lane.b32.xlu0 %v987, %s1040
      %v1042 = vpop.permute.xlu0 %1041
      %s1044 = sor.u32 256, 112
      %1045 = vbcast.lane.b32.xlu0 %v987, %s1044
      %v1046 = vpop.permute.xlu0 %1045
      %s1048 = sor.u32 256, 120
      %1049 = vbcast.lane.b32.xlu0 %v987, %s1048
      %v1050 = vpop.permute.xlu0 %1049
      %v1051 = vlaneseq
      %v1052 = vshrl.u32 %v1051, 7
      %v1053 = vsub.s32 4, %v1052
      %v1054 = vrot.slane %v44, %v1053
      %1056 = vbcast.lane.b32.xlu0 %v1054, 256
      %v1057 = vpop.permute.xlu0 %1056
      %s1059 = sor.u32 256, 8
      %1060 = vbcast.lane.b32.xlu0 %v1054, %s1059
      %v1061 = vpop.permute.xlu0 %1060
      %s1063 = sor.u32 256, 16
      %1064 = vbcast.lane.b32.xlu0 %v1054, %s1063
      %v1065 = vpop.permute.xlu0 %1064
      %s1067 = sor.u32 256, 24
      %1068 = vbcast.lane.b32.xlu0 %v1054, %s1067
      %v1069 = vpop.permute.xlu0 %1068
      %s1071 = sor.u32 256, 32
      %1072 = vbcast.lane.b32.xlu0 %v1054, %s1071
      %v1073 = vpop.permute.xlu0 %1072
      %s1075 = sor.u32 256, 40
      %1076 = vbcast.lane.b32.xlu0 %v1054, %s1075
      %v1077 = vpop.permute.xlu0 %1076
      %s1079 = sor.u32 256, 48
      %1080 = vbcast.lane.b32.xlu0 %v1054, %s1079
      %v1081 = vpop.permute.xlu0 %1080
      %s1083 = sor.u32 256, 56
      %1084 = vbcast.lane.b32.xlu0 %v1054, %s1083
      %v1085 = vpop.permute.xlu0 %1084
      %s1087 = sor.u32 256, 64
      %1088 = vbcast.lane.b32.xlu0 %v1054, %s1087
      %v1089 = vpop.permute.xlu0 %1088
      %s1091 = sor.u32 256, 72
      %1092 = vbcast.lane.b32.xlu0 %v1054, %s1091
      %v1093 = vpop.permute.xlu0 %1092
      %s1095 = sor.u32 256, 80
      %1096 = vbcast.lane.b32.xlu0 %v1054, %s1095
      %v1097 = vpop.permute.xlu0 %1096
      %s1099 = sor.u32 256, 88
      %1100 = vbcast.lane.b32.xlu0 %v1054, %s1099
      %v1101 = vpop.permute.xlu0 %1100
      %s1103 = sor.u32 256, 96
      %1104 = vbcast.lane.b32.xlu0 %v1054, %s1103
      %v1105 = vpop.permute.xlu0 %1104
      %s1107 = sor.u32 256, 104
      %1108 = vbcast.lane.b32.xlu0 %v1054, %s1107
      %v1109 = vpop.permute.xlu0 %1108
      %s1111 = sor.u32 256, 112
      %1112 = vbcast.lane.b32.xlu0 %v1054, %s1111
      %v1113 = vpop.permute.xlu0 %1112
      %s1115 = sor.u32 256, 120
      %1116 = vbcast.lane.b32.xlu0 %v1054, %s1115
      %v1117 = vpop.permute.xlu0 %1116
      %v1118 = vlaneseq
      %v1119 = vshrl.u32 %v1118, 7
      %v1120 = vsub.s32 5, %v1119
      %v1121 = vrot.slane %v44, %v1120
      %1123 = vbcast.lane.b32.xlu0 %v1121, 256
      %v1124 = vpop.permute.xlu0 %1123
      %s1126 = sor.u32 256, 8
      %1127 = vbcast.lane.b32.xlu0 %v1121, %s1126
      %v1128 = vpop.permute.xlu0 %1127
      %s1130 = sor.u32 256, 16
      %1131 = vbcast.lane.b32.xlu0 %v1121, %s1130
      %v1132 = vpop.permute.xlu0 %1131
      %s1134 = sor.u32 256, 24
      %1135 = vbcast.lane.b32.xlu0 %v1121, %s1134
      %v1136 = vpop.permute.xlu0 %1135
      %s1138 = sor.u32 256, 32
      %1139 = vbcast.lane.b32.xlu0 %v1121, %s1138
      %v1140 = vpop.permute.xlu0 %1139
      %s1142 = sor.u32 256, 40
      %1143 = vbcast.lane.b32.xlu0 %v1121, %s1142
      %v1144 = vpop.permute.xlu0 %1143
      %s1146 = sor.u32 256, 48
      %1147 = vbcast.lane.b32.xlu0 %v1121, %s1146
      %v1148 = vpop.permute.xlu0 %1147
      %s1150 = sor.u32 256, 56
      %1151 = vbcast.lane.b32.xlu0 %v1121, %s1150
      %v1152 = vpop.permute.xlu0 %1151
      %s1154 = sor.u32 256, 64
      %1155 = vbcast.lane.b32.xlu0 %v1121, %s1154
      %v1156 = vpop.permute.xlu0 %1155
      %s1158 = sor.u32 256, 72
      %1159 = vbcast.lane.b32.xlu0 %v1121, %s1158
      %v1160 = vpop.permute.xlu0 %1159
      %s1162 = sor.u32 256, 80
      %1163 = vbcast.lane.b32.xlu0 %v1121, %s1162
      %v1164 = vpop.permute.xlu0 %1163
      %s1166 = sor.u32 256, 88
      %1167 = vbcast.lane.b32.xlu0 %v1121, %s1166
      %v1168 = vpop.permute.xlu0 %1167
      %s1170 = sor.u32 256, 96
      %1171 = vbcast.lane.b32.xlu0 %v1121, %s1170
      %v1172 = vpop.permute.xlu0 %1171
      %s1174 = sor.u32 256, 104
      %1175 = vbcast.lane.b32.xlu0 %v1121, %s1174
      %v1176 = vpop.permute.xlu0 %1175
      %s1178 = sor.u32 256, 112
      %1179 = vbcast.lane.b32.xlu0 %v1121, %s1178
      %v1180 = vpop.permute.xlu0 %1179
      %s1182 = sor.u32 256, 120
      %1183 = vbcast.lane.b32.xlu0 %v1121, %s1182
      %v1184 = vpop.permute.xlu0 %1183
      %v1185 = vlaneseq
      %v1186 = vshrl.u32 %v1185, 7
      %v1187 = vsub.s32 6, %v1186
      %v1188 = vrot.slane %v44, %v1187
      %1190 = vbcast.lane.b32.xlu0 %v1188, 256
      %v1191 = vpop.permute.xlu0 %1190
      %s1193 = sor.u32 256, 8
      %1194 = vbcast.lane.b32.xlu0 %v1188, %s1193
      %v1195 = vpop.permute.xlu0 %1194
      %s1197 = sor.u32 256, 16
      %1198 = vbcast.lane.b32.xlu0 %v1188, %s1197
      %v1199 = vpop.permute.xlu0 %1198
      %s1201 = sor.u32 256, 24
      %1202 = vbcast.lane.b32.xlu0 %v1188, %s1201
      %v1203 = vpop.permute.xlu0 %1202
      %s1205 = sor.u32 256, 32
      %1206 = vbcast.lane.b32.xlu0 %v1188, %s1205
      %v1207 = vpop.permute.xlu0 %1206
      %s1209 = sor.u32 256, 40
      %1210 = vbcast.lane.b32.xlu0 %v1188, %s1209
      %v1211 = vpop.permute.xlu0 %1210
      %s1213 = sor.u32 256, 48
      %1214 = vbcast.lane.b32.xlu0 %v1188, %s1213
      %v1215 = vpop.permute.xlu0 %1214
      %s1217 = sor.u32 256, 56
      %1218 = vbcast.lane.b32.xlu0 %v1188, %s1217
      %v1219 = vpop.permute.xlu0 %1218
      %s1221 = sor.u32 256, 64
      %1222 = vbcast.lane.b32.xlu0 %v1188, %s1221
      %v1223 = vpop.permute.xlu0 %1222
      %s1225 = sor.u32 256, 72
      %1226 = vbcast.lane.b32.xlu0 %v1188, %s1225
      %v1227 = vpop.permute.xlu0 %1226
      %s1229 = sor.u32 256, 80
      %1230 = vbcast.lane.b32.xlu0 %v1188, %s1229
      %v1231 = vpop.permute.xlu0 %1230
      %s1233 = sor.u32 256, 88
      %1234 = vbcast.lane.b32.xlu0 %v1188, %s1233
      %v1235 = vpop.permute.xlu0 %1234
      %s1237 = sor.u32 256, 96
      %1238 = vbcast.lane.b32.xlu0 %v1188, %s1237
      %v1239 = vpop.permute.xlu0 %1238
      %s1241 = sor.u32 256, 104
      %1242 = vbcast.lane.b32.xlu0 %v1188, %s1241
      %v1243 = vpop.permute.xlu0 %1242
      %s1245 = sor.u32 256, 112
      %1246 = vbcast.lane.b32.xlu0 %v1188, %s1245
      %v1247 = vpop.permute.xlu0 %1246
      %s1249 = sor.u32 256, 120
      %1250 = vbcast.lane.b32.xlu0 %v1188, %s1249
      %v1251 = vpop.permute.xlu0 %1250
      %v1252 = vlaneseq
      %v1253 = vshrl.u32 %v1252, 7
      %v1254 = vsub.s32 7, %v1253
      %v1255 = vrot.slane %v44, %v1254
      %1257 = vbcast.lane.b32.xlu0 %v1255, 256
      %v1258 = vpop.permute.xlu0 %1257
      %s1260 = sor.u32 256, 8
      %1261 = vbcast.lane.b32.xlu0 %v1255, %s1260
      %v1262 = vpop.permute.xlu0 %1261
      %s1264 = sor.u32 256, 16
      %1265 = vbcast.lane.b32.xlu0 %v1255, %s1264
      %v1266 = vpop.permute.xlu0 %1265
      %s1268 = sor.u32 256, 24
      %1269 = vbcast.lane.b32.xlu0 %v1255, %s1268
      %v1270 = vpop.permute.xlu0 %1269
      %s1272 = sor.u32 256, 32
      %1273 = vbcast.lane.b32.xlu0 %v1255, %s1272
      %v1274 = vpop.permute.xlu0 %1273
      %s1276 = sor.u32 256, 40
      %1277 = vbcast.lane.b32.xlu0 %v1255, %s1276
      %v1278 = vpop.permute.xlu0 %1277
      %s1280 = sor.u32 256, 48
      %1281 = vbcast.lane.b32.xlu0 %v1255, %s1280
      %v1282 = vpop.permute.xlu0 %1281
      %s1284 = sor.u32 256, 56
      %1285 = vbcast.lane.b32.xlu0 %v1255, %s1284
      %v1286 = vpop.permute.xlu0 %1285
      %s1288 = sor.u32 256, 64
      %1289 = vbcast.lane.b32.xlu0 %v1255, %s1288
      %v1290 = vpop.permute.xlu0 %1289
      %s1292 = sor.u32 256, 72
      %1293 = vbcast.lane.b32.xlu0 %v1255, %s1292
      %v1294 = vpop.permute.xlu0 %1293
      %s1296 = sor.u32 256, 80
      %1297 = vbcast.lane.b32.xlu0 %v1255, %s1296
      %v1298 = vpop.permute.xlu0 %1297
      %s1300 = sor.u32 256, 88
      %1301 = vbcast.lane.b32.xlu0 %v1255, %s1300
      %v1302 = vpop.permute.xlu0 %1301
      %s1304 = sor.u32 256, 96
      %1305 = vbcast.lane.b32.xlu0 %v1255, %s1304
      %v1306 = vpop.permute.xlu0 %1305
      %s1308 = sor.u32 256, 104
      %1309 = vbcast.lane.b32.xlu0 %v1255, %s1308
      %v1310 = vpop.permute.xlu0 %1309
      %s1312 = sor.u32 256, 112
      %1313 = vbcast.lane.b32.xlu0 %v1255, %s1312
      %v1314 = vpop.permute.xlu0 %1313
      %s1316 = sor.u32 256, 120
      %1317 = vbcast.lane.b32.xlu0 %v1255, %s1316
      %v1318 = vpop.permute.xlu0 %1317
      %v1319 = vlaneseq
      %v1320 = vshrl.u32 %v1319, 7
      %v1321 = vsub.s32 0, %v1320
      %v1322 = vrot.slane %v45, %v1321
      %1324 = vbcast.lane.b32.xlu0 %v1322, 256
      %v1325 = vpop.permute.xlu0 %1324
      %s1327 = sor.u32 256, 8
      %1328 = vbcast.lane.b32.xlu0 %v1322, %s1327
      %v1329 = vpop.permute.xlu0 %1328
      %s1331 = sor.u32 256, 16
      %1332 = vbcast.lane.b32.xlu0 %v1322, %s1331
      %v1333 = vpop.permute.xlu0 %1332
      %s1335 = sor.u32 256, 24
      %1336 = vbcast.lane.b32.xlu0 %v1322, %s1335
      %v1337 = vpop.permute.xlu0 %1336
      %s1339 = sor.u32 256, 32
      %1340 = vbcast.lane.b32.xlu0 %v1322, %s1339
      %v1341 = vpop.permute.xlu0 %1340
      %s1343 = sor.u32 256, 40
      %1344 = vbcast.lane.b32.xlu0 %v1322, %s1343
      %v1345 = vpop.permute.xlu0 %1344
      %s1347 = sor.u32 256, 48
      %1348 = vbcast.lane.b32.xlu0 %v1322, %s1347
      %v1349 = vpop.permute.xlu0 %1348
      %s1351 = sor.u32 256, 56
      %1352 = vbcast.lane.b32.xlu0 %v1322, %s1351
      %v1353 = vpop.permute.xlu0 %1352
      %s1355 = sor.u32 256, 64
      %1356 = vbcast.lane.b32.xlu0 %v1322, %s1355
      %v1357 = vpop.permute.xlu0 %1356
      %s1359 = sor.u32 256, 72
      %1360 = vbcast.lane.b32.xlu0 %v1322, %s1359
      %v1361 = vpop.permute.xlu0 %1360
      %s1363 = sor.u32 256, 80
      %1364 = vbcast.lane.b32.xlu0 %v1322, %s1363
      %v1365 = vpop.permute.xlu0 %1364
      %s1367 = sor.u32 256, 88
      %1368 = vbcast.lane.b32.xlu0 %v1322, %s1367
      %v1369 = vpop.permute.xlu0 %1368
      %s1371 = sor.u32 256, 96
      %1372 = vbcast.lane.b32.xlu0 %v1322, %s1371
      %v1373 = vpop.permute.xlu0 %1372
      %s1375 = sor.u32 256, 104
      %1376 = vbcast.lane.b32.xlu0 %v1322, %s1375
      %v1377 = vpop.permute.xlu0 %1376
      %s1379 = sor.u32 256, 112
      %1380 = vbcast.lane.b32.xlu0 %v1322, %s1379
      %v1381 = vpop.permute.xlu0 %1380
      %s1383 = sor.u32 256, 120
      %1384 = vbcast.lane.b32.xlu0 %v1322, %s1383
      %v1385 = vpop.permute.xlu0 %1384
      %v1386 = vlaneseq
      %v1387 = vshrl.u32 %v1386, 7
      %v1388 = vsub.s32 1, %v1387
      %v1389 = vrot.slane %v45, %v1388
      %1391 = vbcast.lane.b32.xlu0 %v1389, 256
      %v1392 = vpop.permute.xlu0 %1391
      %s1394 = sor.u32 256, 8
      %1395 = vbcast.lane.b32.xlu0 %v1389, %s1394
      %v1396 = vpop.permute.xlu0 %1395
      %s1398 = sor.u32 256, 16
      %1399 = vbcast.lane.b32.xlu0 %v1389, %s1398
      %v1400 = vpop.permute.xlu0 %1399
      %s1402 = sor.u32 256, 24
      %1403 = vbcast.lane.b32.xlu0 %v1389, %s1402
      %v1404 = vpop.permute.xlu0 %1403
      %s1406 = sor.u32 256, 32
      %1407 = vbcast.lane.b32.xlu0 %v1389, %s1406
      %v1408 = vpop.permute.xlu0 %1407
      %s1410 = sor.u32 256, 40
      %1411 = vbcast.lane.b32.xlu0 %v1389, %s1410
      %v1412 = vpop.permute.xlu0 %1411
      %s1414 = sor.u32 256, 48
      %1415 = vbcast.lane.b32.xlu0 %v1389, %s1414
      %v1416 = vpop.permute.xlu0 %1415
      %s1418 = sor.u32 256, 56
      %1419 = vbcast.lane.b32.xlu0 %v1389, %s1418
      %v1420 = vpop.permute.xlu0 %1419
      %s1422 = sor.u32 256, 64
      %1423 = vbcast.lane.b32.xlu0 %v1389, %s1422
      %v1424 = vpop.permute.xlu0 %1423
      %s1426 = sor.u32 256, 72
      %1427 = vbcast.lane.b32.xlu0 %v1389, %s1426
      %v1428 = vpop.permute.xlu0 %1427
      %s1430 = sor.u32 256, 80
      %1431 = vbcast.lane.b32.xlu0 %v1389, %s1430
      %v1432 = vpop.permute.xlu0 %1431
      %s1434 = sor.u32 256, 88
      %1435 = vbcast.lane.b32.xlu0 %v1389, %s1434
      %v1436 = vpop.permute.xlu0 %1435
      %s1438 = sor.u32 256, 96
      %1439 = vbcast.lane.b32.xlu0 %v1389, %s1438
      %v1440 = vpop.permute.xlu0 %1439
      %s1442 = sor.u32 256, 104
      %1443 = vbcast.lane.b32.xlu0 %v1389, %s1442
      %v1444 = vpop.permute.xlu0 %1443
      %s1446 = sor.u32 256, 112
      %1447 = vbcast.lane.b32.xlu0 %v1389, %s1446
      %v1448 = vpop.permute.xlu0 %1447
      %s1450 = sor.u32 256, 120
      %1451 = vbcast.lane.b32.xlu0 %v1389, %s1450
      %v1452 = vpop.permute.xlu0 %1451
      %v1453 = vlaneseq
      %v1454 = vshrl.u32 %v1453, 7
      %v1455 = vsub.s32 2, %v1454
      %v1456 = vrot.slane %v45, %v1455
      %1458 = vbcast.lane.b32.xlu0 %v1456, 256
      %v1459 = vpop.permute.xlu0 %1458
      %s1461 = sor.u32 256, 8
      %1462 = vbcast.lane.b32.xlu0 %v1456, %s1461
      %v1463 = vpop.permute.xlu0 %1462
      %s1465 = sor.u32 256, 16
      %1466 = vbcast.lane.b32.xlu0 %v1456, %s1465
      %v1467 = vpop.permute.xlu0 %1466
      %s1469 = sor.u32 256, 24
      %1470 = vbcast.lane.b32.xlu0 %v1456, %s1469
      %v1471 = vpop.permute.xlu0 %1470
      %s1473 = sor.u32 256, 32
      %1474 = vbcast.lane.b32.xlu0 %v1456, %s1473
      %v1475 = vpop.permute.xlu0 %1474
      %s1477 = sor.u32 256, 40
      %1478 = vbcast.lane.b32.xlu0 %v1456, %s1477
      %v1479 = vpop.permute.xlu0 %1478
      %s1481 = sor.u32 256, 48
      %1482 = vbcast.lane.b32.xlu0 %v1456, %s1481
      %v1483 = vpop.permute.xlu0 %1482
      %s1485 = sor.u32 256, 56
      %1486 = vbcast.lane.b32.xlu0 %v1456, %s1485
      %v1487 = vpop.permute.xlu0 %1486
      %s1489 = sor.u32 256, 64
      %1490 = vbcast.lane.b32.xlu0 %v1456, %s1489
      %v1491 = vpop.permute.xlu0 %1490
      %s1493 = sor.u32 256, 72
      %1494 = vbcast.lane.b32.xlu0 %v1456, %s1493
      %v1495 = vpop.permute.xlu0 %1494
      %s1497 = sor.u32 256, 80
      %1498 = vbcast.lane.b32.xlu0 %v1456, %s1497
      %v1499 = vpop.permute.xlu0 %1498
      %s1501 = sor.u32 256, 88
      %1502 = vbcast.lane.b32.xlu0 %v1456, %s1501
      %v1503 = vpop.permute.xlu0 %1502
      %s1505 = sor.u32 256, 96
      %1506 = vbcast.lane.b32.xlu0 %v1456, %s1505
      %v1507 = vpop.permute.xlu0 %1506
      %s1509 = sor.u32 256, 104
      %1510 = vbcast.lane.b32.xlu0 %v1456, %s1509
      %v1511 = vpop.permute.xlu0 %1510
      %s1513 = sor.u32 256, 112
      %1514 = vbcast.lane.b32.xlu0 %v1456, %s1513
      %v1515 = vpop.permute.xlu0 %1514
      %s1517 = sor.u32 256, 120
      %1518 = vbcast.lane.b32.xlu0 %v1456, %s1517
      %v1519 = vpop.permute.xlu0 %1518
      %v1520 = vlaneseq
      %v1521 = vshrl.u32 %v1520, 7
      %v1522 = vsub.s32 3, %v1521
      %v1523 = vrot.slane %v45, %v1522
      %1525 = vbcast.lane.b32.xlu0 %v1523, 256
      %v1526 = vpop.permute.xlu0 %1525
      %s1528 = sor.u32 256, 8
      %1529 = vbcast.lane.b32.xlu0 %v1523, %s1528
      %v1530 = vpop.permute.xlu0 %1529
      %s1532 = sor.u32 256, 16
      %1533 = vbcast.lane.b32.xlu0 %v1523, %s1532
      %v1534 = vpop.permute.xlu0 %1533
      %s1536 = sor.u32 256, 24
      %1537 = vbcast.lane.b32.xlu0 %v1523, %s1536
      %v1538 = vpop.permute.xlu0 %1537
      %s1540 = sor.u32 256, 32
      %1541 = vbcast.lane.b32.xlu0 %v1523, %s1540
      %v1542 = vpop.permute.xlu0 %1541
      %s1544 = sor.u32 256, 40
      %1545 = vbcast.lane.b32.xlu0 %v1523, %s1544
      %v1546 = vpop.permute.xlu0 %1545
      %s1548 = sor.u32 256, 48
      %1549 = vbcast.lane.b32.xlu0 %v1523, %s1548
      %v1550 = vpop.permute.xlu0 %1549
      %s1552 = sor.u32 256, 56
      %1553 = vbcast.lane.b32.xlu0 %v1523, %s1552
      %v1554 = vpop.permute.xlu0 %1553
      %s1556 = sor.u32 256, 64
      %1557 = vbcast.lane.b32.xlu0 %v1523, %s1556
      %v1558 = vpop.permute.xlu0 %1557
      %s1560 = sor.u32 256, 72
      %1561 = vbcast.lane.b32.xlu0 %v1523, %s1560
      %v1562 = vpop.permute.xlu0 %1561
      %s1564 = sor.u32 256, 80
      %1565 = vbcast.lane.b32.xlu0 %v1523, %s1564
      %v1566 = vpop.permute.xlu0 %1565
      %s1568 = sor.u32 256, 88
      %1569 = vbcast.lane.b32.xlu0 %v1523, %s1568
      %v1570 = vpop.permute.xlu0 %1569
      %s1572 = sor.u32 256, 96
      %1573 = vbcast.lane.b32.xlu0 %v1523, %s1572
      %v1574 = vpop.permute.xlu0 %1573
      %s1576 = sor.u32 256, 104
      %1577 = vbcast.lane.b32.xlu0 %v1523, %s1576
      %v1578 = vpop.permute.xlu0 %1577
      %s1580 = sor.u32 256, 112
      %1581 = vbcast.lane.b32.xlu0 %v1523, %s1580
      %v1582 = vpop.permute.xlu0 %1581
      %s1584 = sor.u32 256, 120
      %1585 = vbcast.lane.b32.xlu0 %v1523, %s1584
      %v1586 = vpop.permute.xlu0 %1585
      %v1587 = vlaneseq
      %v1588 = vshrl.u32 %v1587, 7
      %v1589 = vsub.s32 4, %v1588
      %v1590 = vrot.slane %v45, %v1589
      %1592 = vbcast.lane.b32.xlu0 %v1590, 256
      %v1593 = vpop.permute.xlu0 %1592
      %s1595 = sor.u32 256, 8
      %1596 = vbcast.lane.b32.xlu0 %v1590, %s1595
      %v1597 = vpop.permute.xlu0 %1596
      %s1599 = sor.u32 256, 16
      %1600 = vbcast.lane.b32.xlu0 %v1590, %s1599
      %v1601 = vpop.permute.xlu0 %1600
      %s1603 = sor.u32 256, 24
      %1604 = vbcast.lane.b32.xlu0 %v1590, %s1603
      %v1605 = vpop.permute.xlu0 %1604
      %s1607 = sor.u32 256, 32
      %1608 = vbcast.lane.b32.xlu0 %v1590, %s1607
      %v1609 = vpop.permute.xlu0 %1608
      %s1611 = sor.u32 256, 40
      %1612 = vbcast.lane.b32.xlu0 %v1590, %s1611
      %v1613 = vpop.permute.xlu0 %1612
      %s1615 = sor.u32 256, 48
      %1616 = vbcast.lane.b32.xlu0 %v1590, %s1615
      %v1617 = vpop.permute.xlu0 %1616
      %s1619 = sor.u32 256, 56
      %1620 = vbcast.lane.b32.xlu0 %v1590, %s1619
      %v1621 = vpop.permute.xlu0 %1620
      %s1623 = sor.u32 256, 64
      %1624 = vbcast.lane.b32.xlu0 %v1590, %s1623
      %v1625 = vpop.permute.xlu0 %1624
      %s1627 = sor.u32 256, 72
      %1628 = vbcast.lane.b32.xlu0 %v1590, %s1627
      %v1629 = vpop.permute.xlu0 %1628
      %s1631 = sor.u32 256, 80
      %1632 = vbcast.lane.b32.xlu0 %v1590, %s1631
      %v1633 = vpop.permute.xlu0 %1632
      %s1635 = sor.u32 256, 88
      %1636 = vbcast.lane.b32.xlu0 %v1590, %s1635
      %v1637 = vpop.permute.xlu0 %1636
      %s1639 = sor.u32 256, 96
      %1640 = vbcast.lane.b32.xlu0 %v1590, %s1639
      %v1641 = vpop.permute.xlu0 %1640
      %s1643 = sor.u32 256, 104
      %1644 = vbcast.lane.b32.xlu0 %v1590, %s1643
      %v1645 = vpop.permute.xlu0 %1644
      %s1647 = sor.u32 256, 112
      %1648 = vbcast.lane.b32.xlu0 %v1590, %s1647
      %v1649 = vpop.permute.xlu0 %1648
      %s1651 = sor.u32 256, 120
      %1652 = vbcast.lane.b32.xlu0 %v1590, %s1651
      %v1653 = vpop.permute.xlu0 %1652
      %v1654 = vlaneseq
      %v1655 = vshrl.u32 %v1654, 7
      %v1656 = vsub.s32 5, %v1655
      %v1657 = vrot.slane %v45, %v1656
      %1659 = vbcast.lane.b32.xlu0 %v1657, 256
      %v1660 = vpop.permute.xlu0 %1659
      %s1662 = sor.u32 256, 8
      %1663 = vbcast.lane.b32.xlu0 %v1657, %s1662
      %v1664 = vpop.permute.xlu0 %1663
      %s1666 = sor.u32 256, 16
      %1667 = vbcast.lane.b32.xlu0 %v1657, %s1666
      %v1668 = vpop.permute.xlu0 %1667
      %s1670 = sor.u32 256, 24
      %1671 = vbcast.lane.b32.xlu0 %v1657, %s1670
      %v1672 = vpop.permute.xlu0 %1671
      %s1674 = sor.u32 256, 32
      %1675 = vbcast.lane.b32.xlu0 %v1657, %s1674
      %v1676 = vpop.permute.xlu0 %1675
      %s1678 = sor.u32 256, 40
      %1679 = vbcast.lane.b32.xlu0 %v1657, %s1678
      %v1680 = vpop.permute.xlu0 %1679
      %s1682 = sor.u32 256, 48
      %1683 = vbcast.lane.b32.xlu0 %v1657, %s1682
      %v1684 = vpop.permute.xlu0 %1683
      %s1686 = sor.u32 256, 56
      %1687 = vbcast.lane.b32.xlu0 %v1657, %s1686
      %v1688 = vpop.permute.xlu0 %1687
      %s1690 = sor.u32 256, 64
      %1691 = vbcast.lane.b32.xlu0 %v1657, %s1690
      %v1692 = vpop.permute.xlu0 %1691
      %s1694 = sor.u32 256, 72
      %1695 = vbcast.lane.b32.xlu0 %v1657, %s1694
      %v1696 = vpop.permute.xlu0 %1695
      %s1698 = sor.u32 256, 80
      %1699 = vbcast.lane.b32.xlu0 %v1657, %s1698
      %v1700 = vpop.permute.xlu0 %1699
      %s1702 = sor.u32 256, 88
      %1703 = vbcast.lane.b32.xlu0 %v1657, %s1702
      %v1704 = vpop.permute.xlu0 %1703
      %s1706 = sor.u32 256, 96
      %1707 = vbcast.lane.b32.xlu0 %v1657, %s1706
      %v1708 = vpop.permute.xlu0 %1707
      %s1710 = sor.u32 256, 104
      %1711 = vbcast.lane.b32.xlu0 %v1657, %s1710
      %v1712 = vpop.permute.xlu0 %1711
      %s1714 = sor.u32 256, 112
      %1715 = vbcast.lane.b32.xlu0 %v1657, %s1714
      %v1716 = vpop.permute.xlu0 %1715
      %s1718 = sor.u32 256, 120
      %1719 = vbcast.lane.b32.xlu0 %v1657, %s1718
      %v1720 = vpop.permute.xlu0 %1719
      %v1721 = vlaneseq
      %v1722 = vshrl.u32 %v1721, 7
      %v1723 = vsub.s32 6, %v1722
      %v1724 = vrot.slane %v45, %v1723
      %1726 = vbcast.lane.b32.xlu0 %v1724, 256
      %v1727 = vpop.permute.xlu0 %1726
      %s1729 = sor.u32 256, 8
      %1730 = vbcast.lane.b32.xlu0 %v1724, %s1729
      %v1731 = vpop.permute.xlu0 %1730
      %s1733 = sor.u32 256, 16
      %1734 = vbcast.lane.b32.xlu0 %v1724, %s1733
      %v1735 = vpop.permute.xlu0 %1734
      %s1737 = sor.u32 256, 24
      %1738 = vbcast.lane.b32.xlu0 %v1724, %s1737
      %v1739 = vpop.permute.xlu0 %1738
      %s1741 = sor.u32 256, 32
      %1742 = vbcast.lane.b32.xlu0 %v1724, %s1741
      %v1743 = vpop.permute.xlu0 %1742
      %s1745 = sor.u32 256, 40
      %1746 = vbcast.lane.b32.xlu0 %v1724, %s1745
      %v1747 = vpop.permute.xlu0 %1746
      %s1749 = sor.u32 256, 48
      %1750 = vbcast.lane.b32.xlu0 %v1724, %s1749
      %v1751 = vpop.permute.xlu0 %1750
      %s1753 = sor.u32 256, 56
      %1754 = vbcast.lane.b32.xlu0 %v1724, %s1753
      %v1755 = vpop.permute.xlu0 %1754
      %s1757 = sor.u32 256, 64
      %1758 = vbcast.lane.b32.xlu0 %v1724, %s1757
      %v1759 = vpop.permute.xlu0 %1758
      %s1761 = sor.u32 256, 72
      %1762 = vbcast.lane.b32.xlu0 %v1724, %s1761
      %v1763 = vpop.permute.xlu0 %1762
      %s1765 = sor.u32 256, 80
      %1766 = vbcast.lane.b32.xlu0 %v1724, %s1765
      %v1767 = vpop.permute.xlu0 %1766
      %s1769 = sor.u32 256, 88
      %1770 = vbcast.lane.b32.xlu0 %v1724, %s1769
      %v1771 = vpop.permute.xlu0 %1770
      %s1773 = sor.u32 256, 96
      %1774 = vbcast.lane.b32.xlu0 %v1724, %s1773
      %v1775 = vpop.permute.xlu0 %1774
      %s1777 = sor.u32 256, 104
      %1778 = vbcast.lane.b32.xlu0 %v1724, %s1777
      %v1779 = vpop.permute.xlu0 %1778
      %s1781 = sor.u32 256, 112
      %1782 = vbcast.lane.b32.xlu0 %v1724, %s1781
      %v1783 = vpop.permute.xlu0 %1782
      %s1785 = sor.u32 256, 120
      %1786 = vbcast.lane.b32.xlu0 %v1724, %s1785
      %v1787 = vpop.permute.xlu0 %1786
      %v1788 = vlaneseq
      %v1789 = vshrl.u32 %v1788, 7
      %v1790 = vsub.s32 7, %v1789
      %v1791 = vrot.slane %v45, %v1790
      %1793 = vbcast.lane.b32.xlu0 %v1791, 256
      %v1794 = vpop.permute.xlu0 %1793
      %s1796 = sor.u32 256, 8
      %1797 = vbcast.lane.b32.xlu0 %v1791, %s1796
      %v1798 = vpop.permute.xlu0 %1797
      %s1800 = sor.u32 256, 16
      %1801 = vbcast.lane.b32.xlu0 %v1791, %s1800
      %v1802 = vpop.permute.xlu0 %1801
      %s1804 = sor.u32 256, 24
      %1805 = vbcast.lane.b32.xlu0 %v1791, %s1804
      %v1806 = vpop.permute.xlu0 %1805
      %s1808 = sor.u32 256, 32
      %1809 = vbcast.lane.b32.xlu0 %v1791, %s1808
      %v1810 = vpop.permute.xlu0 %1809
      %s1812 = sor.u32 256, 40
      %1813 = vbcast.lane.b32.xlu0 %v1791, %s1812
      %v1814 = vpop.permute.xlu0 %1813
      %s1816 = sor.u32 256, 48
      %1817 = vbcast.lane.b32.xlu0 %v1791, %s1816
      %v1818 = vpop.permute.xlu0 %1817
      %s1820 = sor.u32 256, 56
      %1821 = vbcast.lane.b32.xlu0 %v1791, %s1820
      %v1822 = vpop.permute.xlu0 %1821
      %s1824 = sor.u32 256, 64
      %1825 = vbcast.lane.b32.xlu0 %v1791, %s1824
      %v1826 = vpop.permute.xlu0 %1825
      %s1828 = sor.u32 256, 72
      %1829 = vbcast.lane.b32.xlu0 %v1791, %s1828
      %v1830 = vpop.permute.xlu0 %1829
      %s1832 = sor.u32 256, 80
      %1833 = vbcast.lane.b32.xlu0 %v1791, %s1832
      %v1834 = vpop.permute.xlu0 %1833
      %s1836 = sor.u32 256, 88
      %1837 = vbcast.lane.b32.xlu0 %v1791, %s1836
      %v1838 = vpop.permute.xlu0 %1837
      %s1840 = sor.u32 256, 96
      %1841 = vbcast.lane.b32.xlu0 %v1791, %s1840
      %v1842 = vpop.permute.xlu0 %1841
      %s1844 = sor.u32 256, 104
      %1845 = vbcast.lane.b32.xlu0 %v1791, %s1844
      %v1846 = vpop.permute.xlu0 %1845
      %s1848 = sor.u32 256, 112
      %1849 = vbcast.lane.b32.xlu0 %v1791, %s1848
      %v1850 = vpop.permute.xlu0 %1849
      %s1852 = sor.u32 256, 120
      %1853 = vbcast.lane.b32.xlu0 %v1791, %s1852
      %v1854 = vpop.permute.xlu0 %1853
      %v1855 = vlaneseq
      %v1856 = vshrl.u32 %v1855, 7
      %v1857 = vsub.s32 0, %v1856
      %v1858 = vrot.slane %v46, %v1857
      %1860 = vbcast.lane.b32.xlu0 %v1858, 256
      %v1861 = vpop.permute.xlu0 %1860
      %s1863 = sor.u32 256, 8
      %1864 = vbcast.lane.b32.xlu0 %v1858, %s1863
      %v1865 = vpop.permute.xlu0 %1864
      %s1867 = sor.u32 256, 16
      %1868 = vbcast.lane.b32.xlu0 %v1858, %s1867
      %v1869 = vpop.permute.xlu0 %1868
      %s1871 = sor.u32 256, 24
      %1872 = vbcast.lane.b32.xlu0 %v1858, %s1871
      %v1873 = vpop.permute.xlu0 %1872
      %s1875 = sor.u32 256, 32
      %1876 = vbcast.lane.b32.xlu0 %v1858, %s1875
      %v1877 = vpop.permute.xlu0 %1876
      %s1879 = sor.u32 256, 40
      %1880 = vbcast.lane.b32.xlu0 %v1858, %s1879
      %v1881 = vpop.permute.xlu0 %1880
      %s1883 = sor.u32 256, 48
      %1884 = vbcast.lane.b32.xlu0 %v1858, %s1883
      %v1885 = vpop.permute.xlu0 %1884
      %s1887 = sor.u32 256, 56
      %1888 = vbcast.lane.b32.xlu0 %v1858, %s1887
      %v1889 = vpop.permute.xlu0 %1888
      %s1891 = sor.u32 256, 64
      %1892 = vbcast.lane.b32.xlu0 %v1858, %s1891
      %v1893 = vpop.permute.xlu0 %1892
      %s1895 = sor.u32 256, 72
      %1896 = vbcast.lane.b32.xlu0 %v1858, %s1895
      %v1897 = vpop.permute.xlu0 %1896
      %s1899 = sor.u32 256, 80
      %1900 = vbcast.lane.b32.xlu0 %v1858, %s1899
      %v1901 = vpop.permute.xlu0 %1900
      %s1903 = sor.u32 256, 88
      %1904 = vbcast.lane.b32.xlu0 %v1858, %s1903
      %v1905 = vpop.permute.xlu0 %1904
      %s1907 = sor.u32 256, 96
      %1908 = vbcast.lane.b32.xlu0 %v1858, %s1907
      %v1909 = vpop.permute.xlu0 %1908
      %s1911 = sor.u32 256, 104
      %1912 = vbcast.lane.b32.xlu0 %v1858, %s1911
      %v1913 = vpop.permute.xlu0 %1912
      %s1915 = sor.u32 256, 112
      %1916 = vbcast.lane.b32.xlu0 %v1858, %s1915
      %v1917 = vpop.permute.xlu0 %1916
      %s1919 = sor.u32 256, 120
      %1920 = vbcast.lane.b32.xlu0 %v1858, %s1919
      %v1921 = vpop.permute.xlu0 %1920
      %v1922 = vlaneseq
      %v1923 = vshrl.u32 %v1922, 7
      %v1924 = vsub.s32 1, %v1923
      %v1925 = vrot.slane %v46, %v1924
      %1927 = vbcast.lane.b32.xlu0 %v1925, 256
      %v1928 = vpop.permute.xlu0 %1927
      %s1930 = sor.u32 256, 8
      %1931 = vbcast.lane.b32.xlu0 %v1925, %s1930
      %v1932 = vpop.permute.xlu0 %1931
      %s1934 = sor.u32 256, 16
      %1935 = vbcast.lane.b32.xlu0 %v1925, %s1934
      %v1936 = vpop.permute.xlu0 %1935
      %s1938 = sor.u32 256, 24
      %1939 = vbcast.lane.b32.xlu0 %v1925, %s1938
      %v1940 = vpop.permute.xlu0 %1939
      %s1942 = sor.u32 256, 32
      %1943 = vbcast.lane.b32.xlu0 %v1925, %s1942
      %v1944 = vpop.permute.xlu0 %1943
      %s1946 = sor.u32 256, 40
      %1947 = vbcast.lane.b32.xlu0 %v1925, %s1946
      %v1948 = vpop.permute.xlu0 %1947
      %s1950 = sor.u32 256, 48
      %1951 = vbcast.lane.b32.xlu0 %v1925, %s1950
      %v1952 = vpop.permute.xlu0 %1951
      %s1954 = sor.u32 256, 56
      %1955 = vbcast.lane.b32.xlu0 %v1925, %s1954
      %v1956 = vpop.permute.xlu0 %1955
      %s1958 = sor.u32 256, 64
      %1959 = vbcast.lane.b32.xlu0 %v1925, %s1958
      %v1960 = vpop.permute.xlu0 %1959
      %s1962 = sor.u32 256, 72
      %1963 = vbcast.lane.b32.xlu0 %v1925, %s1962
      %v1964 = vpop.permute.xlu0 %1963
      %s1966 = sor.u32 256, 80
      %1967 = vbcast.lane.b32.xlu0 %v1925, %s1966
      %v1968 = vpop.permute.xlu0 %1967
      %s1970 = sor.u32 256, 88
      %1971 = vbcast.lane.b32.xlu0 %v1925, %s1970
      %v1972 = vpop.permute.xlu0 %1971
      %s1974 = sor.u32 256, 96
      %1975 = vbcast.lane.b32.xlu0 %v1925, %s1974
      %v1976 = vpop.permute.xlu0 %1975
      %s1978 = sor.u32 256, 104
      %1979 = vbcast.lane.b32.xlu0 %v1925, %s1978
      %v1980 = vpop.permute.xlu0 %1979
      %s1982 = sor.u32 256, 112
      %1983 = vbcast.lane.b32.xlu0 %v1925, %s1982
      %v1984 = vpop.permute.xlu0 %1983
      %s1986 = sor.u32 256, 120
      %1987 = vbcast.lane.b32.xlu0 %v1925, %s1986
      %v1988 = vpop.permute.xlu0 %1987
      %v1989 = vlaneseq
      %v1990 = vshrl.u32 %v1989, 7
      %v1991 = vsub.s32 2, %v1990
      %v1992 = vrot.slane %v46, %v1991
      %1994 = vbcast.lane.b32.xlu0 %v1992, 256
      %v1995 = vpop.permute.xlu0 %1994
      %s1997 = sor.u32 256, 8
      %1998 = vbcast.lane.b32.xlu0 %v1992, %s1997
      %v1999 = vpop.permute.xlu0 %1998
      %s2001 = sor.u32 256, 16
      %2002 = vbcast.lane.b32.xlu0 %v1992, %s2001
      %v2003 = vpop.permute.xlu0 %2002
      %s2005 = sor.u32 256, 24
      %2006 = vbcast.lane.b32.xlu0 %v1992, %s2005
      %v2007 = vpop.permute.xlu0 %2006
      %s2009 = sor.u32 256, 32
      %2010 = vbcast.lane.b32.xlu0 %v1992, %s2009
      %v2011 = vpop.permute.xlu0 %2010
      %s2013 = sor.u32 256, 40
      %2014 = vbcast.lane.b32.xlu0 %v1992, %s2013
      %v2015 = vpop.permute.xlu0 %2014
      %s2017 = sor.u32 256, 48
      %2018 = vbcast.lane.b32.xlu0 %v1992, %s2017
      %v2019 = vpop.permute.xlu0 %2018
      %s2021 = sor.u32 256, 56
      %2022 = vbcast.lane.b32.xlu0 %v1992, %s2021
      %v2023 = vpop.permute.xlu0 %2022
      %s2025 = sor.u32 256, 64
      %2026 = vbcast.lane.b32.xlu0 %v1992, %s2025
      %v2027 = vpop.permute.xlu0 %2026
      %s2029 = sor.u32 256, 72
      %2030 = vbcast.lane.b32.xlu0 %v1992, %s2029
      %v2031 = vpop.permute.xlu0 %2030
      %s2033 = sor.u32 256, 80
      %2034 = vbcast.lane.b32.xlu0 %v1992, %s2033
      %v2035 = vpop.permute.xlu0 %2034
      %s2037 = sor.u32 256, 88
      %2038 = vbcast.lane.b32.xlu0 %v1992, %s2037
      %v2039 = vpop.permute.xlu0 %2038
      %s2041 = sor.u32 256, 96
      %2042 = vbcast.lane.b32.xlu0 %v1992, %s2041
      %v2043 = vpop.permute.xlu0 %2042
      %s2045 = sor.u32 256, 104
      %2046 = vbcast.lane.b32.xlu0 %v1992, %s2045
      %v2047 = vpop.permute.xlu0 %2046
      %s2049 = sor.u32 256, 112
      %2050 = vbcast.lane.b32.xlu0 %v1992, %s2049
      %v2051 = vpop.permute.xlu0 %2050
      %s2053 = sor.u32 256, 120
      %2054 = vbcast.lane.b32.xlu0 %v1992, %s2053
      %v2055 = vpop.permute.xlu0 %2054
      %v2056 = vlaneseq
      %v2057 = vshrl.u32 %v2056, 7
      %v2058 = vsub.s32 3, %v2057
      %v2059 = vrot.slane %v46, %v2058
      %2061 = vbcast.lane.b32.xlu0 %v2059, 256
      %v2062 = vpop.permute.xlu0 %2061
      %s2064 = sor.u32 256, 8
      %2065 = vbcast.lane.b32.xlu0 %v2059, %s2064
      %v2066 = vpop.permute.xlu0 %2065
      %s2068 = sor.u32 256, 16
      %2069 = vbcast.lane.b32.xlu0 %v2059, %s2068
      %v2070 = vpop.permute.xlu0 %2069
      %s2072 = sor.u32 256, 24
      %2073 = vbcast.lane.b32.xlu0 %v2059, %s2072
      %v2074 = vpop.permute.xlu0 %2073
      %s2076 = sor.u32 256, 32
      %2077 = vbcast.lane.b32.xlu0 %v2059, %s2076
      %v2078 = vpop.permute.xlu0 %2077
      %s2080 = sor.u32 256, 40
      %2081 = vbcast.lane.b32.xlu0 %v2059, %s2080
      %v2082 = vpop.permute.xlu0 %2081
      %s2084 = sor.u32 256, 48
      %2085 = vbcast.lane.b32.xlu0 %v2059, %s2084
      %v2086 = vpop.permute.xlu0 %2085
      %s2088 = sor.u32 256, 56
      %2089 = vbcast.lane.b32.xlu0 %v2059, %s2088
      %v2090 = vpop.permute.xlu0 %2089
      %s2092 = sor.u32 256, 64
      %2093 = vbcast.lane.b32.xlu0 %v2059, %s2092
      %v2094 = vpop.permute.xlu0 %2093
      %s2096 = sor.u32 256, 72
      %2097 = vbcast.lane.b32.xlu0 %v2059, %s2096
      %v2098 = vpop.permute.xlu0 %2097
      %s2100 = sor.u32 256, 80
      %2101 = vbcast.lane.b32.xlu0 %v2059, %s2100
      %v2102 = vpop.permute.xlu0 %2101
      %s2104 = sor.u32 256, 88
      %2105 = vbcast.lane.b32.xlu0 %v2059, %s2104
      %v2106 = vpop.permute.xlu0 %2105
      %s2108 = sor.u32 256, 96
      %2109 = vbcast.lane.b32.xlu0 %v2059, %s2108
      %v2110 = vpop.permute.xlu0 %2109
      %s2112 = sor.u32 256, 104
      %2113 = vbcast.lane.b32.xlu0 %v2059, %s2112
      %v2114 = vpop.permute.xlu0 %2113
      %s2116 = sor.u32 256, 112
      %2117 = vbcast.lane.b32.xlu0 %v2059, %s2116
      %v2118 = vpop.permute.xlu0 %2117
      %s2120 = sor.u32 256, 120
      %2121 = vbcast.lane.b32.xlu0 %v2059, %s2120
      %v2122 = vpop.permute.xlu0 %2121
      %v2123 = vlaneseq
      %v2124 = vshrl.u32 %v2123, 7
      %v2125 = vsub.s32 4, %v2124
      %v2126 = vrot.slane %v46, %v2125
      %2128 = vbcast.lane.b32.xlu0 %v2126, 256
      %v2129 = vpop.permute.xlu0 %2128
      %s2131 = sor.u32 256, 8
      %2132 = vbcast.lane.b32.xlu0 %v2126, %s2131
      %v2133 = vpop.permute.xlu0 %2132
      %s2135 = sor.u32 256, 16
      %2136 = vbcast.lane.b32.xlu0 %v2126, %s2135
      %v2137 = vpop.permute.xlu0 %2136
      %s2139 = sor.u32 256, 24
      %2140 = vbcast.lane.b32.xlu0 %v2126, %s2139
      %v2141 = vpop.permute.xlu0 %2140
      %s2143 = sor.u32 256, 32
      %2144 = vbcast.lane.b32.xlu0 %v2126, %s2143
      %v2145 = vpop.permute.xlu0 %2144
      %s2147 = sor.u32 256, 40
      %2148 = vbcast.lane.b32.xlu0 %v2126, %s2147
      %v2149 = vpop.permute.xlu0 %2148
      %s2151 = sor.u32 256, 48
      %2152 = vbcast.lane.b32.xlu0 %v2126, %s2151
      %v2153 = vpop.permute.xlu0 %2152
      %s2155 = sor.u32 256, 56
      %2156 = vbcast.lane.b32.xlu0 %v2126, %s2155
      %v2157 = vpop.permute.xlu0 %2156
      %s2159 = sor.u32 256, 64
      %2160 = vbcast.lane.b32.xlu0 %v2126, %s2159
      %v2161 = vpop.permute.xlu0 %2160
      %s2163 = sor.u32 256, 72
      %2164 = vbcast.lane.b32.xlu0 %v2126, %s2163
      %v2165 = vpop.permute.xlu0 %2164
      %s2167 = sor.u32 256, 80
      %2168 = vbcast.lane.b32.xlu0 %v2126, %s2167
      %v2169 = vpop.permute.xlu0 %2168
      %s2171 = sor.u32 256, 88
      %2172 = vbcast.lane.b32.xlu0 %v2126, %s2171
      %v2173 = vpop.permute.xlu0 %2172
      %s2175 = sor.u32 256, 96
      %2176 = vbcast.lane.b32.xlu0 %v2126, %s2175
      %v2177 = vpop.permute.xlu0 %2176
      %s2179 = sor.u32 256, 104
      %2180 = vbcast.lane.b32.xlu0 %v2126, %s2179
      %v2181 = vpop.permute.xlu0 %2180
      %s2183 = sor.u32 256, 112
      %2184 = vbcast.lane.b32.xlu0 %v2126, %s2183
      %v2185 = vpop.permute.xlu0 %2184
      %s2187 = sor.u32 256, 120
      %2188 = vbcast.lane.b32.xlu0 %v2126, %s2187
      %v2189 = vpop.permute.xlu0 %2188
      %v2190 = vlaneseq
      %v2191 = vshrl.u32 %v2190, 7
      %v2192 = vsub.s32 5, %v2191
      %v2193 = vrot.slane %v46, %v2192
      %2195 = vbcast.lane.b32.xlu0 %v2193, 256
      %v2196 = vpop.permute.xlu0 %2195
      %s2198 = sor.u32 256, 8
      %2199 = vbcast.lane.b32.xlu0 %v2193, %s2198
      %v2200 = vpop.permute.xlu0 %2199
      %s2202 = sor.u32 256, 16
      %2203 = vbcast.lane.b32.xlu0 %v2193, %s2202
      %v2204 = vpop.permute.xlu0 %2203
      %s2206 = sor.u32 256, 24
      %2207 = vbcast.lane.b32.xlu0 %v2193, %s2206
      %v2208 = vpop.permute.xlu0 %2207
      %s2210 = sor.u32 256, 32
      %2211 = vbcast.lane.b32.xlu0 %v2193, %s2210
      %v2212 = vpop.permute.xlu0 %2211
      %s2214 = sor.u32 256, 40
      %2215 = vbcast.lane.b32.xlu0 %v2193, %s2214
      %v2216 = vpop.permute.xlu0 %2215
      %s2218 = sor.u32 256, 48
      %2219 = vbcast.lane.b32.xlu0 %v2193, %s2218
      %v2220 = vpop.permute.xlu0 %2219
      %s2222 = sor.u32 256, 56
      %2223 = vbcast.lane.b32.xlu0 %v2193, %s2222
      %v2224 = vpop.permute.xlu0 %2223
      %s2226 = sor.u32 256, 64
      %2227 = vbcast.lane.b32.xlu0 %v2193, %s2226
      %v2228 = vpop.permute.xlu0 %2227
      %s2230 = sor.u32 256, 72
      %2231 = vbcast.lane.b32.xlu0 %v2193, %s2230
      %v2232 = vpop.permute.xlu0 %2231
      %s2234 = sor.u32 256, 80
      %2235 = vbcast.lane.b32.xlu0 %v2193, %s2234
      %v2236 = vpop.permute.xlu0 %2235
      %s2238 = sor.u32 256, 88
      %2239 = vbcast.lane.b32.xlu0 %v2193, %s2238
      %v2240 = vpop.permute.xlu0 %2239
      %s2242 = sor.u32 256, 96
      %2243 = vbcast.lane.b32.xlu0 %v2193, %s2242
      %v2244 = vpop.permute.xlu0 %2243
      %s2246 = sor.u32 256, 104
      %2247 = vbcast.lane.b32.xlu0 %v2193, %s2246
      %v2248 = vpop.permute.xlu0 %2247
      %s2250 = sor.u32 256, 112
      %2251 = vbcast.lane.b32.xlu0 %v2193, %s2250
      %v2252 = vpop.permute.xlu0 %2251
      %s2254 = sor.u32 256, 120
      %2255 = vbcast.lane.b32.xlu0 %v2193, %s2254
      %v2256 = vpop.permute.xlu0 %2255
      %v2257 = vlaneseq
      %v2258 = vshrl.u32 %v2257, 7
      %v2259 = vsub.s32 6, %v2258
      %v2260 = vrot.slane %v46, %v2259
      %2262 = vbcast.lane.b32.xlu0 %v2260, 256
      %v2263 = vpop.permute.xlu0 %2262
      %s2265 = sor.u32 256, 8
      %2266 = vbcast.lane.b32.xlu0 %v2260, %s2265
      %v2267 = vpop.permute.xlu0 %2266
      %s2269 = sor.u32 256, 16
      %2270 = vbcast.lane.b32.xlu0 %v2260, %s2269
      %v2271 = vpop.permute.xlu0 %2270
      %s2273 = sor.u32 256, 24
      %2274 = vbcast.lane.b32.xlu0 %v2260, %s2273
      %v2275 = vpop.permute.xlu0 %2274
      %s2277 = sor.u32 256, 32
      %2278 = vbcast.lane.b32.xlu0 %v2260, %s2277
      %v2279 = vpop.permute.xlu0 %2278
      %s2281 = sor.u32 256, 40
      %2282 = vbcast.lane.b32.xlu0 %v2260, %s2281
      %v2283 = vpop.permute.xlu0 %2282
      %s2285 = sor.u32 256, 48
      %2286 = vbcast.lane.b32.xlu0 %v2260, %s2285
      %v2287 = vpop.permute.xlu0 %2286
      %s2289 = sor.u32 256, 56
      %2290 = vbcast.lane.b32.xlu0 %v2260, %s2289
      %v2291 = vpop.permute.xlu0 %2290
      %s2293 = sor.u32 256, 64
      %2294 = vbcast.lane.b32.xlu0 %v2260, %s2293
      %v2295 = vpop.permute.xlu0 %2294
      %s2297 = sor.u32 256, 72
      %2298 = vbcast.lane.b32.xlu0 %v2260, %s2297
      %v2299 = vpop.permute.xlu0 %2298
      %s2301 = sor.u32 256, 80
      %2302 = vbcast.lane.b32.xlu0 %v2260, %s2301
      %v2303 = vpop.permute.xlu0 %2302
      %s2305 = sor.u32 256, 88
      %2306 = vbcast.lane.b32.xlu0 %v2260, %s2305
      %v2307 = vpop.permute.xlu0 %2306
      %s2309 = sor.u32 256, 96
      %2310 = vbcast.lane.b32.xlu0 %v2260, %s2309
      %v2311 = vpop.permute.xlu0 %2310
      %s2313 = sor.u32 256, 104
      %2314 = vbcast.lane.b32.xlu0 %v2260, %s2313
      %v2315 = vpop.permute.xlu0 %2314
      %s2317 = sor.u32 256, 112
      %2318 = vbcast.lane.b32.xlu0 %v2260, %s2317
      %v2319 = vpop.permute.xlu0 %2318
      %s2321 = sor.u32 256, 120
      %2322 = vbcast.lane.b32.xlu0 %v2260, %s2321
      %v2323 = vpop.permute.xlu0 %2322
      %v2324 = vlaneseq
      %v2325 = vshrl.u32 %v2324, 7
      %v2326 = vsub.s32 7, %v2325
      %v2327 = vrot.slane %v46, %v2326
      %2329 = vbcast.lane.b32.xlu0 %v2327, 256
      %v2330 = vpop.permute.xlu0 %2329
      %s2332 = sor.u32 256, 8
      %2333 = vbcast.lane.b32.xlu0 %v2327, %s2332
      %v2334 = vpop.permute.xlu0 %2333
      %s2336 = sor.u32 256, 16
      %2337 = vbcast.lane.b32.xlu0 %v2327, %s2336
      %v2338 = vpop.permute.xlu0 %2337
      %s2340 = sor.u32 256, 24
      %2341 = vbcast.lane.b32.xlu0 %v2327, %s2340
      %v2342 = vpop.permute.xlu0 %2341
      %s2344 = sor.u32 256, 32
      %2345 = vbcast.lane.b32.xlu0 %v2327, %s2344
      %v2346 = vpop.permute.xlu0 %2345
      %s2348 = sor.u32 256, 40
      %2349 = vbcast.lane.b32.xlu0 %v2327, %s2348
      %v2350 = vpop.permute.xlu0 %2349
      %s2352 = sor.u32 256, 48
      %2353 = vbcast.lane.b32.xlu0 %v2327, %s2352
      %v2354 = vpop.permute.xlu0 %2353
      %s2356 = sor.u32 256, 56
      %2357 = vbcast.lane.b32.xlu0 %v2327, %s2356
      %v2358 = vpop.permute.xlu0 %2357
      %s2360 = sor.u32 256, 64
      %2361 = vbcast.lane.b32.xlu0 %v2327, %s2360
      %v2362 = vpop.permute.xlu0 %2361
      %s2364 = sor.u32 256, 72
      %2365 = vbcast.lane.b32.xlu0 %v2327, %s2364
      %v2366 = vpop.permute.xlu0 %2365
      %s2368 = sor.u32 256, 80
      %2369 = vbcast.lane.b32.xlu0 %v2327, %s2368
      %v2370 = vpop.permute.xlu0 %2369
      %s2372 = sor.u32 256, 88
      %2373 = vbcast.lane.b32.xlu0 %v2327, %s2372
      %v2374 = vpop.permute.xlu0 %2373
      %s2376 = sor.u32 256, 96
      %2377 = vbcast.lane.b32.xlu0 %v2327, %s2376
      %v2378 = vpop.permute.xlu0 %2377
      %s2380 = sor.u32 256, 104
      %2381 = vbcast.lane.b32.xlu0 %v2327, %s2380
      %v2382 = vpop.permute.xlu0 %2381
      %s2384 = sor.u32 256, 112
      %2385 = vbcast.lane.b32.xlu0 %v2327, %s2384
      %v2386 = vpop.permute.xlu0 %2385
      %s2388 = sor.u32 256, 120
      %2389 = vbcast.lane.b32.xlu0 %v2327, %s2388
      %v2390 = vpop.permute.xlu0 %2389
      %v2391 = vlaneseq
      %v2392 = vshrl.u32 %v2391, 7
      %v2393 = vsub.s32 0, %v2392
      %v2394 = vrot.slane %v74, %v2393
      %v2395 = vlaneseq
      %v2396 = vshrl.u32 %v2395, 7
      %v2397 = vsub.s32 0, %v2396
      %v2398 = vrot.slane %v88, %v2397
      %v2399 = vlaneseq
      %v2400 = vshrl.u32 %v2399, 7
      %v2401 = vsub.s32 0, %v2400
      %v2402 = vrot.slane %v96, %v2401
      %v2403 = vlaneseq
      %v2404 = vshrl.u32 %v2403, 7
      %v2405 = vsub.s32 0, %v2404
      %v2406 = vrot.slane %v98, %v2405
      %v2407 = vlaneseq
      %v2408 = vshrl.u32 %v2407, 7
      %v2409 = vsub.s32 0, %v2408
      %v2410 = vrot.slane %v81, %v2409
      %v2411 = vlaneseq
      %v2412 = vshrl.u32 %v2411, 7
      %v2413 = vsub.s32 0, %v2412
      %v2414 = vrot.slane %v95, %v2413
      %v2415 = vlaneseq
      %v2416 = vshrl.u32 %v2415, 7
      %v2417 = vsub.s32 0, %v2416
      %v2418 = vrot.slane %v97, %v2417
      %v2419 = vlaneseq
      %v2420 = vshrl.u32 %v2419, 7
      %v2421 = vsub.s32 0, %v2420
      %v2422 = vrot.slane %v99, %v2421
      %v2423 = vlaneseq
      %v2424 = vshrl.u32 %v2423, 7
      %v2425 = vsub.s32 0, %v2424
      %v2426 = vrot.slane %v123, %v2425
      %v2427 = vlaneseq
      %v2428 = vshrl.u32 %v2427, 7
      %v2429 = vsub.s32 0, %v2428
      %v2430 = vrot.slane %v137, %v2429
      %v2431 = vlaneseq
      %v2432 = vshrl.u32 %v2431, 7
      %v2433 = vsub.s32 0, %v2432
      %v2434 = vrot.slane %v145, %v2433
      %v2435 = vlaneseq
      %v2436 = vshrl.u32 %v2435, 7
      %v2437 = vsub.s32 0, %v2436
      %v2438 = vrot.slane %v147, %v2437
      %v2439 = vlaneseq
      %v2440 = vshrl.u32 %v2439, 7
      %v2441 = vsub.s32 0, %v2440
      %v2442 = vrot.slane %v130, %v2441
      %v2443 = vlaneseq
      %v2444 = vshrl.u32 %v2443, 7
      %v2445 = vsub.s32 0, %v2444
      %v2446 = vrot.slane %v144, %v2445
      %v2447 = vlaneseq
      %v2448 = vshrl.u32 %v2447, 7
      %v2449 = vsub.s32 0, %v2448
      %v2450 = vrot.slane %v146, %v2449
      %v2451 = vlaneseq
      %v2452 = vshrl.u32 %v2451, 7
      %v2453 = vsub.s32 0, %v2452
      %v2454 = vrot.slane %v148, %v2453
      %v2455 = vlaneseq
      %v2456 = vshrl.u32 %v2455, 7
      %v2457 = vsub.s32 0, %v2456
      %v2458 = vrot.slane %v172, %v2457
      %v2459 = vlaneseq
      %v2460 = vshrl.u32 %v2459, 7
      %v2461 = vsub.s32 0, %v2460
      %v2462 = vrot.slane %v186, %v2461
      %v2463 = vlaneseq
      %v2464 = vshrl.u32 %v2463, 7
      %v2465 = vsub.s32 0, %v2464
      %v2466 = vrot.slane %v194, %v2465
      %v2467 = vlaneseq
      %v2468 = vshrl.u32 %v2467, 7
      %v2469 = vsub.s32 0, %v2468
      %v2470 = vrot.slane %v196, %v2469
      %v2471 = vlaneseq
      %v2472 = vshrl.u32 %v2471, 7
      %v2473 = vsub.s32 0, %v2472
      %v2474 = vrot.slane %v179, %v2473
      %v2475 = vlaneseq
      %v2476 = vshrl.u32 %v2475, 7
      %v2477 = vsub.s32 0, %v2476
      %v2478 = vrot.slane %v193, %v2477
      %v2479 = vlaneseq
      %v2480 = vshrl.u32 %v2479, 7
      %v2481 = vsub.s32 0, %v2480
      %v2482 = vrot.slane %v195, %v2481
      %v2483 = vlaneseq
      %v2484 = vshrl.u32 %v2483, 7
      %v2485 = vsub.s32 0, %v2484
      %v2486 = vrot.slane %v197, %v2485
      %v2487 = vlaneseq
      %v2488 = vshrl.u32 %v2487, 7
      %v2489 = vsub.s32 0, %v2488
      %v2490 = vrot.slane %v221, %v2489
      %v2491 = vlaneseq
      %v2492 = vshrl.u32 %v2491, 7
      %v2493 = vsub.s32 0, %v2492
      %v2494 = vrot.slane %v235, %v2493
      %v2495 = vlaneseq
      %v2496 = vshrl.u32 %v2495, 7
      %v2497 = vsub.s32 0, %v2496
      %v2498 = vrot.slane %v243, %v2497
      %v2499 = vlaneseq
      %v2500 = vshrl.u32 %v2499, 7
      %v2501 = vsub.s32 0, %v2500
      %v2502 = vrot.slane %v245, %v2501
      %v2503 = vlaneseq
      %v2504 = vshrl.u32 %v2503, 7
      %v2505 = vsub.s32 0, %v2504
      %v2506 = vrot.slane %v228, %v2505
      %v2507 = vlaneseq
      %v2508 = vshrl.u32 %v2507, 7
      %v2509 = vsub.s32 0, %v2508
      %v2510 = vrot.slane %v242, %v2509
      %v2511 = vlaneseq
      %v2512 = vshrl.u32 %v2511, 7
      %v2513 = vsub.s32 0, %v2512
      %v2514 = vrot.slane %v244, %v2513
      %v2515 = vlaneseq
      %v2516 = vshrl.u32 %v2515, 7
      %v2517 = vsub.s32 0, %v2516
      %v2518 = vrot.slane %v246, %v2517
      %v2551 = vsub.f32 %v2394, %v253
      %v2552 = vsub.f32 %v2394, %v257
      %v2553 = vsub.f32 %v2394, %v261
      %v2554 = vsub.f32 %v2394, %v265
      %v2555 = vsub.f32 %v2394, %v269
      %v2556 = vsub.f32 %v2394, %v273
      %v2557 = vsub.f32 %v2394, %v277
      %v2558 = vsub.f32 %v2394, %v281
      %v2559 = vsub.f32 %v2394, %v285
      %v2560 = vsub.f32 %v2394, %v289
      %v2561 = vsub.f32 %v2394, %v293
      %v2562 = vsub.f32 %v2394, %v297
      %v2563 = vsub.f32 %v2394, %v301
      %v2564 = vsub.f32 %v2394, %v305
      %v2565 = vsub.f32 %v2394, %v309
      %v2566 = vsub.f32 %v2394, %v313
      %v2567 = vsub.f32 %v2398, %v320
      %v2568 = vsub.f32 %v2398, %v324
      %v2569 = vsub.f32 %v2398, %v328
      %v2570 = vsub.f32 %v2398, %v332
      %v2571 = vsub.f32 %v2398, %v336
      %v2572 = vsub.f32 %v2398, %v340
      %v2573 = vsub.f32 %v2398, %v344
      %v2574 = vsub.f32 %v2398, %v348
      %v2575 = vsub.f32 %v2398, %v352
      %v2576 = vsub.f32 %v2398, %v356
      %v2577 = vsub.f32 %v2398, %v360
      %v2578 = vsub.f32 %v2398, %v364
      %v2579 = vsub.f32 %v2398, %v368
      %v2580 = vsub.f32 %v2398, %v372
      %v2581 = vsub.f32 %v2398, %v376
      %v2582 = vsub.f32 %v2398, %v380
      %v2583 = vsub.f32 %v2402, %v387
      %v2584 = vsub.f32 %v2402, %v391
      %v2585 = vsub.f32 %v2402, %v395
      %v2586 = vsub.f32 %v2402, %v399
      %v2587 = vsub.f32 %v2402, %v403
      %v2588 = vsub.f32 %v2402, %v407
      %v2589 = vsub.f32 %v2402, %v411
      %v2590 = vsub.f32 %v2402, %v415
      %v2591 = vsub.f32 %v2402, %v419
      %v2592 = vsub.f32 %v2402, %v423
      %v2593 = vsub.f32 %v2402, %v427
      %v2594 = vsub.f32 %v2402, %v431
      %v2595 = vsub.f32 %v2402, %v435
      %v2596 = vsub.f32 %v2402, %v439
      %v2597 = vsub.f32 %v2402, %v443
      %v2598 = vsub.f32 %v2402, %v447
      %v2599 = vsub.f32 %v2406, %v454
      %v2600 = vsub.f32 %v2406, %v458
      %v2601 = vsub.f32 %v2406, %v462
      %v2602 = vsub.f32 %v2406, %v466
      %v2603 = vsub.f32 %v2406, %v470
      %v2604 = vsub.f32 %v2406, %v474
      %v2605 = vsub.f32 %v2406, %v478
      %v2606 = vsub.f32 %v2406, %v482
      %v2607 = vsub.f32 %v2406, %v486
      %v2608 = vsub.f32 %v2406, %v490
      %v2609 = vsub.f32 %v2406, %v494
      %v2610 = vsub.f32 %v2406, %v498
      %v2611 = vsub.f32 %v2406, %v502
      %v2612 = vsub.f32 %v2406, %v506
      %v2613 = vsub.f32 %v2406, %v510
      %v2614 = vsub.f32 %v2406, %v514
      %v2615 = vsub.f32 %v2410, %v521
      %v2616 = vsub.f32 %v2410, %v525
      %v2617 = vsub.f32 %v2410, %v529
      %v2618 = vsub.f32 %v2410, %v533
      %v2619 = vsub.f32 %v2410, %v537
      %v2620 = vsub.f32 %v2410, %v541
      %v2621 = vsub.f32 %v2410, %v545
      %v2622 = vsub.f32 %v2410, %v549
      %v2623 = vsub.f32 %v2410, %v553
      %v2624 = vsub.f32 %v2410, %v557
      %v2625 = vsub.f32 %v2410, %v561
      %v2626 = vsub.f32 %v2410, %v565
      %v2627 = vsub.f32 %v2410, %v569
      %v2628 = vsub.f32 %v2410, %v573
      %v2629 = vsub.f32 %v2410, %v577
      %v2630 = vsub.f32 %v2410, %v581
      %v2631 = vsub.f32 %v2414, %v588
      %v2632 = vsub.f32 %v2414, %v592
      %v2633 = vsub.f32 %v2414, %v596
      %v2634 = vsub.f32 %v2414, %v600
      %v2635 = vsub.f32 %v2414, %v604
      %v2636 = vsub.f32 %v2414, %v608
      %v2637 = vsub.f32 %v2414, %v612
      %v2638 = vsub.f32 %v2414, %v616
      %v2639 = vsub.f32 %v2414, %v620
      %v2640 = vsub.f32 %v2414, %v624
      %v2641 = vsub.f32 %v2414, %v628
      %v2642 = vsub.f32 %v2414, %v632
      %v2643 = vsub.f32 %v2414, %v636
      %v2644 = vsub.f32 %v2414, %v640
      %v2645 = vsub.f32 %v2414, %v644
      %v2646 = vsub.f32 %v2414, %v648
      %v2647 = vsub.f32 %v2418, %v655
      %v2648 = vsub.f32 %v2418, %v659
      %v2649 = vsub.f32 %v2418, %v663
      %v2650 = vsub.f32 %v2418, %v667
      %v2651 = vsub.f32 %v2418, %v671
      %v2652 = vsub.f32 %v2418, %v675
      %v2653 = vsub.f32 %v2418, %v679
      %v2654 = vsub.f32 %v2418, %v683
      %v2655 = vsub.f32 %v2418, %v687
      %v2656 = vsub.f32 %v2418, %v691
      %v2657 = vsub.f32 %v2418, %v695
      %v2658 = vsub.f32 %v2418, %v699
      %v2659 = vsub.f32 %v2418, %v703
      %v2660 = vsub.f32 %v2418, %v707
      %v2661 = vsub.f32 %v2418, %v711
      %v2662 = vsub.f32 %v2418, %v715
      %v2663 = vsub.f32 %v2422, %v722
      %v2664 = vsub.f32 %v2422, %v726
      %v2665 = vsub.f32 %v2422, %v730
      %v2666 = vsub.f32 %v2422, %v734
      %v2667 = vsub.f32 %v2422, %v738
      %v2668 = vsub.f32 %v2422, %v742
      %v2669 = vsub.f32 %v2422, %v746
      %v2670 = vsub.f32 %v2422, %v750
      %v2671 = vsub.f32 %v2422, %v754
      %v2672 = vsub.f32 %v2422, %v758
      %v2673 = vsub.f32 %v2422, %v762
      %v2674 = vsub.f32 %v2422, %v766
      %v2675 = vsub.f32 %v2422, %v770
      %v2676 = vsub.f32 %v2422, %v774
      %v2677 = vsub.f32 %v2422, %v778
      %v2678 = vsub.f32 %v2422, %v782
      %v2679 = vsub.f32 %v2426, %v789
      %v2680 = vsub.f32 %v2426, %v793
      %v2681 = vsub.f32 %v2426, %v797
      %v2682 = vsub.f32 %v2426, %v801
      %v2683 = vsub.f32 %v2426, %v805
      %v2684 = vsub.f32 %v2426, %v809
      %v2685 = vsub.f32 %v2426, %v813
      %v2686 = vsub.f32 %v2426, %v817
      %v2687 = vsub.f32 %v2426, %v821
      %v2688 = vsub.f32 %v2426, %v825
      %v2689 = vsub.f32 %v2426, %v829
      %v2690 = vsub.f32 %v2426, %v833
      %v2691 = vsub.f32 %v2426, %v837
      %v2692 = vsub.f32 %v2426, %v841
      %v2693 = vsub.f32 %v2426, %v845
      %v2694 = vsub.f32 %v2426, %v849
      %v2695 = vsub.f32 %v2430, %v856
      %v2696 = vsub.f32 %v2430, %v860
      %v2697 = vsub.f32 %v2430, %v864
      %v2698 = vsub.f32 %v2430, %v868
      %v2699 = vsub.f32 %v2430, %v872
      %v2700 = vsub.f32 %v2430, %v876
      %v2701 = vsub.f32 %v2430, %v880
      %v2702 = vsub.f32 %v2430, %v884
      %v2703 = vsub.f32 %v2430, %v888
      %v2704 = vsub.f32 %v2430, %v892
      %v2705 = vsub.f32 %v2430, %v896
      %v2706 = vsub.f32 %v2430, %v900
      %v2707 = vsub.f32 %v2430, %v904
      %v2708 = vsub.f32 %v2430, %v908
      %v2709 = vsub.f32 %v2430, %v912
      %v2710 = vsub.f32 %v2430, %v916
      %v2711 = vsub.f32 %v2434, %v923
      %v2712 = vsub.f32 %v2434, %v927
      %v2713 = vsub.f32 %v2434, %v931
      %v2714 = vsub.f32 %v2434, %v935
      %v2715 = vsub.f32 %v2434, %v939
      %v2716 = vsub.f32 %v2434, %v943
      %v2717 = vsub.f32 %v2434, %v947
      %v2718 = vsub.f32 %v2434, %v951
      %v2719 = vsub.f32 %v2434, %v955
      %v2720 = vsub.f32 %v2434, %v959
      %v2721 = vsub.f32 %v2434, %v963
      %v2722 = vsub.f32 %v2434, %v967
      %v2723 = vsub.f32 %v2434, %v971
      %v2724 = vsub.f32 %v2434, %v975
      %v2725 = vsub.f32 %v2434, %v979
      %v2726 = vsub.f32 %v2434, %v983
      %v2727 = vsub.f32 %v2438, %v990
      %v2728 = vsub.f32 %v2438, %v994
      %v2729 = vsub.f32 %v2438, %v998
      %v2730 = vsub.f32 %v2438, %v1002
      %v2731 = vsub.f32 %v2438, %v1006
      %v2732 = vsub.f32 %v2438, %v1010
      %v2733 = vsub.f32 %v2438, %v1014
      %v2734 = vsub.f32 %v2438, %v1018
      %v2735 = vsub.f32 %v2438, %v1022
      %v2736 = vsub.f32 %v2438, %v1026
      %v2737 = vsub.f32 %v2438, %v1030
      %v2738 = vsub.f32 %v2438, %v1034
      %v2739 = vsub.f32 %v2438, %v1038
      %v2740 = vsub.f32 %v2438, %v1042
      %v2741 = vsub.f32 %v2438, %v1046
      %v2742 = vsub.f32 %v2438, %v1050
      %v2743 = vsub.f32 %v2442, %v1057
      %v2744 = vsub.f32 %v2442, %v1061
      %v2745 = vsub.f32 %v2442, %v1065
      %v2746 = vsub.f32 %v2442, %v1069
      %v2747 = vsub.f32 %v2442, %v1073
      %v2748 = vsub.f32 %v2442, %v1077
      %v2749 = vsub.f32 %v2442, %v1081
      %v2750 = vsub.f32 %v2442, %v1085
      %v2751 = vsub.f32 %v2442, %v1089
      %v2752 = vsub.f32 %v2442, %v1093
      %v2753 = vsub.f32 %v2442, %v1097
      %v2754 = vsub.f32 %v2442, %v1101
      %v2755 = vsub.f32 %v2442, %v1105
      %v2756 = vsub.f32 %v2442, %v1109
      %v2757 = vsub.f32 %v2442, %v1113
      %v2758 = vsub.f32 %v2442, %v1117
      %v2759 = vsub.f32 %v2446, %v1124
      %v2760 = vsub.f32 %v2446, %v1128
      %v2761 = vsub.f32 %v2446, %v1132
      %v2762 = vsub.f32 %v2446, %v1136
      %v2763 = vsub.f32 %v2446, %v1140
      %v2764 = vsub.f32 %v2446, %v1144
      %v2765 = vsub.f32 %v2446, %v1148
      %v2766 = vsub.f32 %v2446, %v1152
      %v2767 = vsub.f32 %v2446, %v1156
      %v2768 = vsub.f32 %v2446, %v1160
      %v2769 = vsub.f32 %v2446, %v1164
      %v2770 = vsub.f32 %v2446, %v1168
      %v2771 = vsub.f32 %v2446, %v1172
      %v2772 = vsub.f32 %v2446, %v1176
      %v2773 = vsub.f32 %v2446, %v1180
      %v2774 = vsub.f32 %v2446, %v1184
      %v2775 = vsub.f32 %v2450, %v1191
      %v2776 = vsub.f32 %v2450, %v1195
      %v2777 = vsub.f32 %v2450, %v1199
      %v2778 = vsub.f32 %v2450, %v1203
      %v2779 = vsub.f32 %v2450, %v1207
      %v2780 = vsub.f32 %v2450, %v1211
      %v2781 = vsub.f32 %v2450, %v1215
      %v2782 = vsub.f32 %v2450, %v1219
      %v2783 = vsub.f32 %v2450, %v1223
      %v2784 = vsub.f32 %v2450, %v1227
      %v2785 = vsub.f32 %v2450, %v1231
      %v2786 = vsub.f32 %v2450, %v1235
      %v2787 = vsub.f32 %v2450, %v1239
      %v2788 = vsub.f32 %v2450, %v1243
      %v2789 = vsub.f32 %v2450, %v1247
      %v2790 = vsub.f32 %v2450, %v1251
      %v2791 = vsub.f32 %v2454, %v1258
      %v2792 = vsub.f32 %v2454, %v1262
      %v2793 = vsub.f32 %v2454, %v1266
      %v2794 = vsub.f32 %v2454, %v1270
      %v2795 = vsub.f32 %v2454, %v1274
      %v2796 = vsub.f32 %v2454, %v1278
      %v2797 = vsub.f32 %v2454, %v1282
      %v2798 = vsub.f32 %v2454, %v1286
      %v2799 = vsub.f32 %v2454, %v1290
      %v2800 = vsub.f32 %v2454, %v1294
      %v2801 = vsub.f32 %v2454, %v1298
      %v2802 = vsub.f32 %v2454, %v1302
      %v2803 = vsub.f32 %v2454, %v1306
      %v2804 = vsub.f32 %v2454, %v1310
      %v2805 = vsub.f32 %v2454, %v1314
      %v2806 = vsub.f32 %v2454, %v1318
      %v2807 = vsub.f32 %v2458, %v1325
      %v2808 = vsub.f32 %v2458, %v1329
      %v2809 = vsub.f32 %v2458, %v1333
      %v2810 = vsub.f32 %v2458, %v1337
      %v2811 = vsub.f32 %v2458, %v1341
      %v2812 = vsub.f32 %v2458, %v1345
      %v2813 = vsub.f32 %v2458, %v1349
      %v2814 = vsub.f32 %v2458, %v1353
      %v2815 = vsub.f32 %v2458, %v1357
      %v2816 = vsub.f32 %v2458, %v1361
      %v2817 = vsub.f32 %v2458, %v1365
      %v2818 = vsub.f32 %v2458, %v1369
      %v2819 = vsub.f32 %v2458, %v1373
      %v2820 = vsub.f32 %v2458, %v1377
      %v2821 = vsub.f32 %v2458, %v1381
      %v2822 = vsub.f32 %v2458, %v1385
      %v2823 = vsub.f32 %v2462, %v1392
      %v2824 = vsub.f32 %v2462, %v1396
      %v2825 = vsub.f32 %v2462, %v1400
      %v2826 = vsub.f32 %v2462, %v1404
      %v2827 = vsub.f32 %v2462, %v1408
      %v2828 = vsub.f32 %v2462, %v1412
      %v2829 = vsub.f32 %v2462, %v1416
      %v2830 = vsub.f32 %v2462, %v1420
      %v2831 = vsub.f32 %v2462, %v1424
      %v2832 = vsub.f32 %v2462, %v1428
      %v2833 = vsub.f32 %v2462, %v1432
      %v2834 = vsub.f32 %v2462, %v1436
      %v2835 = vsub.f32 %v2462, %v1440
      %v2836 = vsub.f32 %v2462, %v1444
      %v2837 = vsub.f32 %v2462, %v1448
      %v2838 = vsub.f32 %v2462, %v1452
      %v2839 = vsub.f32 %v2466, %v1459
      %v2840 = vsub.f32 %v2466, %v1463
      %v2841 = vsub.f32 %v2466, %v1467
      %v2842 = vsub.f32 %v2466, %v1471
      %v2843 = vsub.f32 %v2466, %v1475
      %v2844 = vsub.f32 %v2466, %v1479
      %v2845 = vsub.f32 %v2466, %v1483
      %v2846 = vsub.f32 %v2466, %v1487
      %v2847 = vsub.f32 %v2466, %v1491
      %v2848 = vsub.f32 %v2466, %v1495
      %v2849 = vsub.f32 %v2466, %v1499
      %v2850 = vsub.f32 %v2466, %v1503
      %v2851 = vsub.f32 %v2466, %v1507
      %v2852 = vsub.f32 %v2466, %v1511
      %v2853 = vsub.f32 %v2466, %v1515
      %v2854 = vsub.f32 %v2466, %v1519
      %v2855 = vsub.f32 %v2470, %v1526
      %v2856 = vsub.f32 %v2470, %v1530
      %v2857 = vsub.f32 %v2470, %v1534
      %v2858 = vsub.f32 %v2470, %v1538
      %v2859 = vsub.f32 %v2470, %v1542
      %v2860 = vsub.f32 %v2470, %v1546
      %v2861 = vsub.f32 %v2470, %v1550
      %v2862 = vsub.f32 %v2470, %v1554
      %v2863 = vsub.f32 %v2470, %v1558
      %v2864 = vsub.f32 %v2470, %v1562
      %v2865 = vsub.f32 %v2470, %v1566
      %v2866 = vsub.f32 %v2470, %v1570
      %v2867 = vsub.f32 %v2470, %v1574
      %v2868 = vsub.f32 %v2470, %v1578
      %v2869 = vsub.f32 %v2470, %v1582
      %v2870 = vsub.f32 %v2470, %v1586
      %v2871 = vsub.f32 %v2474, %v1593
      %v2872 = vsub.f32 %v2474, %v1597
      %v2873 = vsub.f32 %v2474, %v1601
      %v2874 = vsub.f32 %v2474, %v1605
      %v2875 = vsub.f32 %v2474, %v1609
      %v2876 = vsub.f32 %v2474, %v1613
      %v2877 = vsub.f32 %v2474, %v1617
      %v2878 = vsub.f32 %v2474, %v1621
      %v2879 = vsub.f32 %v2474, %v1625
      %v2880 = vsub.f32 %v2474, %v1629
      %v2881 = vsub.f32 %v2474, %v1633
      %v2882 = vsub.f32 %v2474, %v1637
      %v2883 = vsub.f32 %v2474, %v1641
      %v2884 = vsub.f32 %v2474, %v1645
      %v2885 = vsub.f32 %v2474, %v1649
      %v2886 = vsub.f32 %v2474, %v1653
      %v2887 = vsub.f32 %v2478, %v1660
      %v2888 = vsub.f32 %v2478, %v1664
      %v2889 = vsub.f32 %v2478, %v1668
      %v2890 = vsub.f32 %v2478, %v1672
      %v2891 = vsub.f32 %v2478, %v1676
      %v2892 = vsub.f32 %v2478, %v1680
      %v2893 = vsub.f32 %v2478, %v1684
      %v2894 = vsub.f32 %v2478, %v1688
      %v2895 = vsub.f32 %v2478, %v1692
      %v2896 = vsub.f32 %v2478, %v1696
      %v2897 = vsub.f32 %v2478, %v1700
      %v2898 = vsub.f32 %v2478, %v1704
      %v2899 = vsub.f32 %v2478, %v1708
      %v2900 = vsub.f32 %v2478, %v1712
      %v2901 = vsub.f32 %v2478, %v1716
      %v2902 = vsub.f32 %v2478, %v1720
      %v2903 = vsub.f32 %v2482, %v1727
      %v2904 = vsub.f32 %v2482, %v1731
      %v2905 = vsub.f32 %v2482, %v1735
      %v2906 = vsub.f32 %v2482, %v1739
      %v2907 = vsub.f32 %v2482, %v1743
      %v2908 = vsub.f32 %v2482, %v1747
      %v2909 = vsub.f32 %v2482, %v1751
      %v2910 = vsub.f32 %v2482, %v1755
      %v2911 = vsub.f32 %v2482, %v1759
      %v2912 = vsub.f32 %v2482, %v1763
      %v2913 = vsub.f32 %v2482, %v1767
      %v2914 = vsub.f32 %v2482, %v1771
      %v2915 = vsub.f32 %v2482, %v1775
      %v2916 = vsub.f32 %v2482, %v1779
      %v2917 = vsub.f32 %v2482, %v1783
      %v2918 = vsub.f32 %v2482, %v1787
      %v2919 = vsub.f32 %v2486, %v1794
      %v2920 = vsub.f32 %v2486, %v1798
      %v2921 = vsub.f32 %v2486, %v1802
      %v2922 = vsub.f32 %v2486, %v1806
      %v2923 = vsub.f32 %v2486, %v1810
      %v2924 = vsub.f32 %v2486, %v1814
      %v2925 = vsub.f32 %v2486, %v1818
      %v2926 = vsub.f32 %v2486, %v1822
      %v2927 = vsub.f32 %v2486, %v1826
      %v2928 = vsub.f32 %v2486, %v1830
      %v2929 = vsub.f32 %v2486, %v1834
      %v2930 = vsub.f32 %v2486, %v1838
      %v2931 = vsub.f32 %v2486, %v1842
      %v2932 = vsub.f32 %v2486, %v1846
      %v2933 = vsub.f32 %v2486, %v1850
      %v2934 = vsub.f32 %v2486, %v1854
      %v2935 = vsub.f32 %v2490, %v1861
      %v2936 = vsub.f32 %v2490, %v1865
      %v2937 = vsub.f32 %v2490, %v1869
      %v2938 = vsub.f32 %v2490, %v1873
      %v2939 = vsub.f32 %v2490, %v1877
      %v2940 = vsub.f32 %v2490, %v1881
      %v2941 = vsub.f32 %v2490, %v1885
      %v2942 = vsub.f32 %v2490, %v1889
      %v2943 = vsub.f32 %v2490, %v1893
      %v2944 = vsub.f32 %v2490, %v1897
      %v2945 = vsub.f32 %v2490, %v1901
      %v2946 = vsub.f32 %v2490, %v1905
      %v2947 = vsub.f32 %v2490, %v1909
      %v2948 = vsub.f32 %v2490, %v1913
      %v2949 = vsub.f32 %v2490, %v1917
      %v2950 = vsub.f32 %v2490, %v1921
      %v2951 = vsub.f32 %v2494, %v1928
      %v2952 = vsub.f32 %v2494, %v1932
      %v2953 = vsub.f32 %v2494, %v1936
      %v2954 = vsub.f32 %v2494, %v1940
      %v2955 = vsub.f32 %v2494, %v1944
      %v2956 = vsub.f32 %v2494, %v1948
      %v2957 = vsub.f32 %v2494, %v1952
      %v2958 = vsub.f32 %v2494, %v1956
      %v2959 = vsub.f32 %v2494, %v1960
      %v2960 = vsub.f32 %v2494, %v1964
      %v2961 = vsub.f32 %v2494, %v1968
      %v2962 = vsub.f32 %v2494, %v1972
      %v2963 = vsub.f32 %v2494, %v1976
      %v2964 = vsub.f32 %v2494, %v1980
      %v2965 = vsub.f32 %v2494, %v1984
      %v2966 = vsub.f32 %v2494, %v1988
      %v2967 = vsub.f32 %v2498, %v1995
      %v2968 = vsub.f32 %v2498, %v1999
      %v2969 = vsub.f32 %v2498, %v2003
      %v2970 = vsub.f32 %v2498, %v2007
      %v2971 = vsub.f32 %v2498, %v2011
      %v2972 = vsub.f32 %v2498, %v2015
      %v2973 = vsub.f32 %v2498, %v2019
      %v2974 = vsub.f32 %v2498, %v2023
      %v2975 = vsub.f32 %v2498, %v2027
      %v2976 = vsub.f32 %v2498, %v2031
      %v2977 = vsub.f32 %v2498, %v2035
      %v2978 = vsub.f32 %v2498, %v2039
      %v2979 = vsub.f32 %v2498, %v2043
      %v2980 = vsub.f32 %v2498, %v2047
      %v2981 = vsub.f32 %v2498, %v2051
      %v2982 = vsub.f32 %v2498, %v2055
      %v2983 = vsub.f32 %v2502, %v2062
      %v2984 = vsub.f32 %v2502, %v2066
      %v2985 = vsub.f32 %v2502, %v2070
      %v2986 = vsub.f32 %v2502, %v2074
      %v2987 = vsub.f32 %v2502, %v2078
      %v2988 = vsub.f32 %v2502, %v2082
      %v2989 = vsub.f32 %v2502, %v2086
      %v2990 = vsub.f32 %v2502, %v2090
      %v2991 = vsub.f32 %v2502, %v2094
      %v2992 = vsub.f32 %v2502, %v2098
      %v2993 = vsub.f32 %v2502, %v2102
      %v2994 = vsub.f32 %v2502, %v2106
      %v2995 = vsub.f32 %v2502, %v2110
      %v2996 = vsub.f32 %v2502, %v2114
      %v2997 = vsub.f32 %v2502, %v2118
      %v2998 = vsub.f32 %v2502, %v2122
      %v2999 = vsub.f32 %v2506, %v2129
      %v3000 = vsub.f32 %v2506, %v2133
      %v3001 = vsub.f32 %v2506, %v2137
      %v3002 = vsub.f32 %v2506, %v2141
      %v3003 = vsub.f32 %v2506, %v2145
      %v3004 = vsub.f32 %v2506, %v2149
      %v3005 = vsub.f32 %v2506, %v2153
      %v3006 = vsub.f32 %v2506, %v2157
      %v3007 = vsub.f32 %v2506, %v2161
      %v3008 = vsub.f32 %v2506, %v2165
      %v3009 = vsub.f32 %v2506, %v2169
      %v3010 = vsub.f32 %v2506, %v2173
      %v3011 = vsub.f32 %v2506, %v2177
      %v3012 = vsub.f32 %v2506, %v2181
      %v3013 = vsub.f32 %v2506, %v2185
      %v3014 = vsub.f32 %v2506, %v2189
      %v3015 = vsub.f32 %v2510, %v2196
      %v3016 = vsub.f32 %v2510, %v2200
      %v3017 = vsub.f32 %v2510, %v2204
      %v3018 = vsub.f32 %v2510, %v2208
      %v3019 = vsub.f32 %v2510, %v2212
      %v3020 = vsub.f32 %v2510, %v2216
      %v3021 = vsub.f32 %v2510, %v2220
      %v3022 = vsub.f32 %v2510, %v2224
      %v3023 = vsub.f32 %v2510, %v2228
      %v3024 = vsub.f32 %v2510, %v2232
      %v3025 = vsub.f32 %v2510, %v2236
      %v3026 = vsub.f32 %v2510, %v2240
      %v3027 = vsub.f32 %v2510, %v2244
      %v3028 = vsub.f32 %v2510, %v2248
      %v3029 = vsub.f32 %v2510, %v2252
      %v3030 = vsub.f32 %v2510, %v2256
      %v3031 = vsub.f32 %v2514, %v2263
      %v3032 = vsub.f32 %v2514, %v2267
      %v3033 = vsub.f32 %v2514, %v2271
      %v3034 = vsub.f32 %v2514, %v2275
      %v3035 = vsub.f32 %v2514, %v2279
      %v3036 = vsub.f32 %v2514, %v2283
      %v3037 = vsub.f32 %v2514, %v2287
      %v3038 = vsub.f32 %v2514, %v2291
      %v3039 = vsub.f32 %v2514, %v2295
      %v3040 = vsub.f32 %v2514, %v2299
      %v3041 = vsub.f32 %v2514, %v2303
      %v3042 = vsub.f32 %v2514, %v2307
      %v3043 = vsub.f32 %v2514, %v2311
      %v3044 = vsub.f32 %v2514, %v2315
      %v3045 = vsub.f32 %v2514, %v2319
      %v3046 = vsub.f32 %v2514, %v2323
      %v3047 = vsub.f32 %v2518, %v2330
      %v3048 = vsub.f32 %v2518, %v2334
      %v3049 = vsub.f32 %v2518, %v2338
      %v3050 = vsub.f32 %v2518, %v2342
      %v3051 = vsub.f32 %v2518, %v2346
      %v3052 = vsub.f32 %v2518, %v2350
      %v3053 = vsub.f32 %v2518, %v2354
      %v3054 = vsub.f32 %v2518, %v2358
      %v3055 = vsub.f32 %v2518, %v2362
      %v3056 = vsub.f32 %v2518, %v2366
      %v3057 = vsub.f32 %v2518, %v2370
      %v3058 = vsub.f32 %v2518, %v2374
      %v3059 = vsub.f32 %v2518, %v2378
      %v3060 = vsub.f32 %v2518, %v2382
      %v3061 = vsub.f32 %v2518, %v2386
      %v3062 = vsub.f32 %v2518, %v2390
      %v3063 = vmin.f32 %v2551, 0.0
      %v3064 = vmin.f32 %v2552, 0.0
      %v3065 = vmin.f32 %v2553, 0.0
      %v3066 = vmin.f32 %v2554, 0.0
      %v3067 = vmin.f32 %v2555, 0.0
      %v3068 = vmin.f32 %v2556, 0.0
      %v3069 = vmin.f32 %v2557, 0.0
      %v3070 = vmin.f32 %v2558, 0.0
      %v3071 = vmin.f32 %v2559, 0.0
      %v3072 = vmin.f32 %v2560, 0.0
      %v3073 = vmin.f32 %v2561, 0.0
      %v3074 = vmin.f32 %v2562, 0.0
      %v3075 = vmin.f32 %v2563, 0.0
      %v3076 = vmin.f32 %v2564, 0.0
      %v3077 = vmin.f32 %v2565, 0.0
      %v3078 = vmin.f32 %v2566, 0.0
      %v3079 = vmin.f32 %v2567, 0.0
      %v3080 = vmin.f32 %v2568, 0.0
      %v3081 = vmin.f32 %v2569, 0.0
      %v3082 = vmin.f32 %v2570, 0.0
      %v3083 = vmin.f32 %v2571, 0.0
      %v3084 = vmin.f32 %v2572, 0.0
      %v3085 = vmin.f32 %v2573, 0.0
      %v3086 = vmin.f32 %v2574, 0.0
      %v3087 = vmin.f32 %v2575, 0.0
      %v3088 = vmin.f32 %v2576, 0.0
      %v3089 = vmin.f32 %v2577, 0.0
      %v3090 = vmin.f32 %v2578, 0.0
      %v3091 = vmin.f32 %v2579, 0.0
      %v3092 = vmin.f32 %v2580, 0.0
      %v3093 = vmin.f32 %v2581, 0.0
      %v3094 = vmin.f32 %v2582, 0.0
      %v3095 = vmin.f32 %v2583, 0.0
      %v3096 = vmin.f32 %v2584, 0.0
      %v3097 = vmin.f32 %v2585, 0.0
      %v3098 = vmin.f32 %v2586, 0.0
      %v3099 = vmin.f32 %v2587, 0.0
      %v3100 = vmin.f32 %v2588, 0.0
      %v3101 = vmin.f32 %v2589, 0.0
      %v3102 = vmin.f32 %v2590, 0.0
      %v3103 = vmin.f32 %v2591, 0.0
      %v3104 = vmin.f32 %v2592, 0.0
      %v3105 = vmin.f32 %v2593, 0.0
      %v3106 = vmin.f32 %v2594, 0.0
      %v3107 = vmin.f32 %v2595, 0.0
      %v3108 = vmin.f32 %v2596, 0.0
      %v3109 = vmin.f32 %v2597, 0.0
      %v3110 = vmin.f32 %v2598, 0.0
      %v3111 = vmin.f32 %v2599, 0.0
      %v3112 = vmin.f32 %v2600, 0.0
      %v3113 = vmin.f32 %v2601, 0.0
      %v3114 = vmin.f32 %v2602, 0.0
      %v3115 = vmin.f32 %v2603, 0.0
      %v3116 = vmin.f32 %v2604, 0.0
      %v3117 = vmin.f32 %v2605, 0.0
      %v3118 = vmin.f32 %v2606, 0.0
      %v3119 = vmin.f32 %v2607, 0.0
      %v3120 = vmin.f32 %v2608, 0.0
      %v3121 = vmin.f32 %v2609, 0.0
      %v3122 = vmin.f32 %v2610, 0.0
      %v3123 = vmin.f32 %v2611, 0.0
      %v3124 = vmin.f32 %v2612, 0.0
      %v3125 = vmin.f32 %v2613, 0.0
      %v3126 = vmin.f32 %v2614, 0.0
      %v3127 = vmin.f32 %v2615, 0.0
      %v3128 = vmin.f32 %v2616, 0.0
      %v3129 = vmin.f32 %v2617, 0.0
      %v3130 = vmin.f32 %v2618, 0.0
      %v3131 = vmin.f32 %v2619, 0.0
      %v3132 = vmin.f32 %v2620, 0.0
      %v3133 = vmin.f32 %v2621, 0.0
      %v3134 = vmin.f32 %v2622, 0.0
      %v3135 = vmin.f32 %v2623, 0.0
      %v3136 = vmin.f32 %v2624, 0.0
      %v3137 = vmin.f32 %v2625, 0.0
      %v3138 = vmin.f32 %v2626, 0.0
      %v3139 = vmin.f32 %v2627, 0.0
      %v3140 = vmin.f32 %v2628, 0.0
      %v3141 = vmin.f32 %v2629, 0.0
      %v3142 = vmin.f32 %v2630, 0.0
      %v3143 = vmin.f32 %v2631, 0.0
      %v3144 = vmin.f32 %v2632, 0.0
      %v3145 = vmin.f32 %v2633, 0.0
      %v3146 = vmin.f32 %v2634, 0.0
      %v3147 = vmin.f32 %v2635, 0.0
      %v3148 = vmin.f32 %v2636, 0.0
      %v3149 = vmin.f32 %v2637, 0.0
      %v3150 = vmin.f32 %v2638, 0.0
      %v3151 = vmin.f32 %v2639, 0.0
      %v3152 = vmin.f32 %v2640, 0.0
      %v3153 = vmin.f32 %v2641, 0.0
      %v3154 = vmin.f32 %v2642, 0.0
      %v3155 = vmin.f32 %v2643, 0.0
      %v3156 = vmin.f32 %v2644, 0.0
      %v3157 = vmin.f32 %v2645, 0.0
      %v3158 = vmin.f32 %v2646, 0.0
      %v3159 = vmin.f32 %v2647, 0.0
      %v3160 = vmin.f32 %v2648, 0.0
      %v3161 = vmin.f32 %v2649, 0.0
      %v3162 = vmin.f32 %v2650, 0.0
      %v3163 = vmin.f32 %v2651, 0.0
      %v3164 = vmin.f32 %v2652, 0.0
      %v3165 = vmin.f32 %v2653, 0.0
      %v3166 = vmin.f32 %v2654, 0.0
      %v3167 = vmin.f32 %v2655, 0.0
      %v3168 = vmin.f32 %v2656, 0.0
      %v3169 = vmin.f32 %v2657, 0.0
      %v3170 = vmin.f32 %v2658, 0.0
      %v3171 = vmin.f32 %v2659, 0.0
      %v3172 = vmin.f32 %v2660, 0.0
      %v3173 = vmin.f32 %v2661, 0.0
      %v3174 = vmin.f32 %v2662, 0.0
      %v3175 = vmin.f32 %v2663, 0.0
      %v3176 = vmin.f32 %v2664, 0.0
      %v3177 = vmin.f32 %v2665, 0.0
      %v3178 = vmin.f32 %v2666, 0.0
      %v3179 = vmin.f32 %v2667, 0.0
      %v3180 = vmin.f32 %v2668, 0.0
      %v3181 = vmin.f32 %v2669, 0.0
      %v3182 = vmin.f32 %v2670, 0.0
      %v3183 = vmin.f32 %v2671, 0.0
      %v3184 = vmin.f32 %v2672, 0.0
      %v3185 = vmin.f32 %v2673, 0.0
      %v3186 = vmin.f32 %v2674, 0.0
      %v3187 = vmin.f32 %v2675, 0.0
      %v3188 = vmin.f32 %v2676, 0.0
      %v3189 = vmin.f32 %v2677, 0.0
      %v3190 = vmin.f32 %v2678, 0.0
      %v3191 = vmin.f32 %v2679, 0.0
      %v3192 = vmin.f32 %v2680, 0.0
      %v3193 = vmin.f32 %v2681, 0.0
      %v3194 = vmin.f32 %v2682, 0.0
      %v3195 = vmin.f32 %v2683, 0.0
      %v3196 = vmin.f32 %v2684, 0.0
      %v3197 = vmin.f32 %v2685, 0.0
      %v3198 = vmin.f32 %v2686, 0.0
      %v3199 = vmin.f32 %v2687, 0.0
      %v3200 = vmin.f32 %v2688, 0.0
      %v3201 = vmin.f32 %v2689, 0.0
      %v3202 = vmin.f32 %v2690, 0.0
      %v3203 = vmin.f32 %v2691, 0.0
      %v3204 = vmin.f32 %v2692, 0.0
      %v3205 = vmin.f32 %v2693, 0.0
      %v3206 = vmin.f32 %v2694, 0.0
      %v3207 = vmin.f32 %v2695, 0.0
      %v3208 = vmin.f32 %v2696, 0.0
      %v3209 = vmin.f32 %v2697, 0.0
      %v3210 = vmin.f32 %v2698, 0.0
      %v3211 = vmin.f32 %v2699, 0.0
      %v3212 = vmin.f32 %v2700, 0.0
      %v3213 = vmin.f32 %v2701, 0.0
      %v3214 = vmin.f32 %v2702, 0.0
      %v3215 = vmin.f32 %v2703, 0.0
      %v3216 = vmin.f32 %v2704, 0.0
      %v3217 = vmin.f32 %v2705, 0.0
      %v3218 = vmin.f32 %v2706, 0.0
      %v3219 = vmin.f32 %v2707, 0.0
      %v3220 = vmin.f32 %v2708, 0.0
      %v3221 = vmin.f32 %v2709, 0.0
      %v3222 = vmin.f32 %v2710, 0.0
      %v3223 = vmin.f32 %v2711, 0.0
      %v3224 = vmin.f32 %v2712, 0.0
      %v3225 = vmin.f32 %v2713, 0.0
      %v3226 = vmin.f32 %v2714, 0.0
      %v3227 = vmin.f32 %v2715, 0.0
      %v3228 = vmin.f32 %v2716, 0.0
      %v3229 = vmin.f32 %v2717, 0.0
      %v3230 = vmin.f32 %v2718, 0.0
      %v3231 = vmin.f32 %v2719, 0.0
      %v3232 = vmin.f32 %v2720, 0.0
      %v3233 = vmin.f32 %v2721, 0.0
      %v3234 = vmin.f32 %v2722, 0.0
      %v3235 = vmin.f32 %v2723, 0.0
      %v3236 = vmin.f32 %v2724, 0.0
      %v3237 = vmin.f32 %v2725, 0.0
      %v3238 = vmin.f32 %v2726, 0.0
      %v3239 = vmin.f32 %v2727, 0.0
      %v3240 = vmin.f32 %v2728, 0.0
      %v3241 = vmin.f32 %v2729, 0.0
      %v3242 = vmin.f32 %v2730, 0.0
      %v3243 = vmin.f32 %v2731, 0.0
      %v3244 = vmin.f32 %v2732, 0.0
      %v3245 = vmin.f32 %v2733, 0.0
      %v3246 = vmin.f32 %v2734, 0.0
      %v3247 = vmin.f32 %v2735, 0.0
      %v3248 = vmin.f32 %v2736, 0.0
      %v3249 = vmin.f32 %v2737, 0.0
      %v3250 = vmin.f32 %v2738, 0.0
      %v3251 = vmin.f32 %v2739, 0.0
      %v3252 = vmin.f32 %v2740, 0.0
      %v3253 = vmin.f32 %v2741, 0.0
      %v3254 = vmin.f32 %v2742, 0.0
      %v3255 = vmin.f32 %v2743, 0.0
      %v3256 = vmin.f32 %v2744, 0.0
      %v3257 = vmin.f32 %v2745, 0.0
      %v3258 = vmin.f32 %v2746, 0.0
      %v3259 = vmin.f32 %v2747, 0.0
      %v3260 = vmin.f32 %v2748, 0.0
      %v3261 = vmin.f32 %v2749, 0.0
      %v3262 = vmin.f32 %v2750, 0.0
      %v3263 = vmin.f32 %v2751, 0.0
      %v3264 = vmin.f32 %v2752, 0.0
      %v3265 = vmin.f32 %v2753, 0.0
      %v3266 = vmin.f32 %v2754, 0.0
      %v3267 = vmin.f32 %v2755, 0.0
      %v3268 = vmin.f32 %v2756, 0.0
      %v3269 = vmin.f32 %v2757, 0.0
      %v3270 = vmin.f32 %v2758, 0.0
      %v3271 = vmin.f32 %v2759, 0.0
      %v3272 = vmin.f32 %v2760, 0.0
      %v3273 = vmin.f32 %v2761, 0.0
      %v3274 = vmin.f32 %v2762, 0.0
      %v3275 = vmin.f32 %v2763, 0.0
      %v3276 = vmin.f32 %v2764, 0.0
      %v3277 = vmin.f32 %v2765, 0.0
      %v3278 = vmin.f32 %v2766, 0.0
      %v3279 = vmin.f32 %v2767, 0.0
      %v3280 = vmin.f32 %v2768, 0.0
      %v3281 = vmin.f32 %v2769, 0.0
      %v3282 = vmin.f32 %v2770, 0.0
      %v3283 = vmin.f32 %v2771, 0.0
      %v3284 = vmin.f32 %v2772, 0.0
      %v3285 = vmin.f32 %v2773, 0.0
      %v3286 = vmin.f32 %v2774, 0.0
      %v3287 = vmin.f32 %v2775, 0.0
      %v3288 = vmin.f32 %v2776, 0.0
      %v3289 = vmin.f32 %v2777, 0.0
      %v3290 = vmin.f32 %v2778, 0.0
      %v3291 = vmin.f32 %v2779, 0.0
      %v3292 = vmin.f32 %v2780, 0.0
      %v3293 = vmin.f32 %v2781, 0.0
      %v3294 = vmin.f32 %v2782, 0.0
      %v3295 = vmin.f32 %v2783, 0.0
      %v3296 = vmin.f32 %v2784, 0.0
      %v3297 = vmin.f32 %v2785, 0.0
      %v3298 = vmin.f32 %v2786, 0.0
      %v3299 = vmin.f32 %v2787, 0.0
      %v3300 = vmin.f32 %v2788, 0.0
      %v3301 = vmin.f32 %v2789, 0.0
      %v3302 = vmin.f32 %v2790, 0.0
      %v3303 = vmin.f32 %v2791, 0.0
      %v3304 = vmin.f32 %v2792, 0.0
      %v3305 = vmin.f32 %v2793, 0.0
      %v3306 = vmin.f32 %v2794, 0.0
      %v3307 = vmin.f32 %v2795, 0.0
      %v3308 = vmin.f32 %v2796, 0.0
      %v3309 = vmin.f32 %v2797, 0.0
      %v3310 = vmin.f32 %v2798, 0.0
      %v3311 = vmin.f32 %v2799, 0.0
      %v3312 = vmin.f32 %v2800, 0.0
      %v3313 = vmin.f32 %v2801, 0.0
      %v3314 = vmin.f32 %v2802, 0.0
      %v3315 = vmin.f32 %v2803, 0.0
      %v3316 = vmin.f32 %v2804, 0.0
      %v3317 = vmin.f32 %v2805, 0.0
      %v3318 = vmin.f32 %v2806, 0.0
      %v3319 = vmin.f32 %v2807, 0.0
      %v3320 = vmin.f32 %v2808, 0.0
      %v3321 = vmin.f32 %v2809, 0.0
      %v3322 = vmin.f32 %v2810, 0.0
      %v3323 = vmin.f32 %v2811, 0.0
      %v3324 = vmin.f32 %v2812, 0.0
      %v3325 = vmin.f32 %v2813, 0.0
      %v3326 = vmin.f32 %v2814, 0.0
      %v3327 = vmin.f32 %v2815, 0.0
      %v3328 = vmin.f32 %v2816, 0.0
      %v3329 = vmin.f32 %v2817, 0.0
      %v3330 = vmin.f32 %v2818, 0.0
      %v3331 = vmin.f32 %v2819, 0.0
      %v3332 = vmin.f32 %v2820, 0.0
      %v3333 = vmin.f32 %v2821, 0.0
      %v3334 = vmin.f32 %v2822, 0.0
      %v3335 = vmin.f32 %v2823, 0.0
      %v3336 = vmin.f32 %v2824, 0.0
      %v3337 = vmin.f32 %v2825, 0.0
      %v3338 = vmin.f32 %v2826, 0.0
      %v3339 = vmin.f32 %v2827, 0.0
      %v3340 = vmin.f32 %v2828, 0.0
      %v3341 = vmin.f32 %v2829, 0.0
      %v3342 = vmin.f32 %v2830, 0.0
      %v3343 = vmin.f32 %v2831, 0.0
      %v3344 = vmin.f32 %v2832, 0.0
      %v3345 = vmin.f32 %v2833, 0.0
      %v3346 = vmin.f32 %v2834, 0.0
      %v3347 = vmin.f32 %v2835, 0.0
      %v3348 = vmin.f32 %v2836, 0.0
      %v3349 = vmin.f32 %v2837, 0.0
      %v3350 = vmin.f32 %v2838, 0.0
      %v3351 = vmin.f32 %v2839, 0.0
      %v3352 = vmin.f32 %v2840, 0.0
      %v3353 = vmin.f32 %v2841, 0.0
      %v3354 = vmin.f32 %v2842, 0.0
      %v3355 = vmin.f32 %v2843, 0.0
      %v3356 = vmin.f32 %v2844, 0.0
      %v3357 = vmin.f32 %v2845, 0.0
      %v3358 = vmin.f32 %v2846, 0.0
      %v3359 = vmin.f32 %v2847, 0.0
      %v3360 = vmin.f32 %v2848, 0.0
      %v3361 = vmin.f32 %v2849, 0.0
      %v3362 = vmin.f32 %v2850, 0.0
      %v3363 = vmin.f32 %v2851, 0.0
      %v3364 = vmin.f32 %v2852, 0.0
      %v3365 = vmin.f32 %v2853, 0.0
      %v3366 = vmin.f32 %v2854, 0.0
      %v3367 = vmin.f32 %v2855, 0.0
      %v3368 = vmin.f32 %v2856, 0.0
      %v3369 = vmin.f32 %v2857, 0.0
      %v3370 = vmin.f32 %v2858, 0.0
      %v3371 = vmin.f32 %v2859, 0.0
      %v3372 = vmin.f32 %v2860, 0.0
      %v3373 = vmin.f32 %v2861, 0.0
      %v3374 = vmin.f32 %v2862, 0.0
      %v3375 = vmin.f32 %v2863, 0.0
      %v3376 = vmin.f32 %v2864, 0.0
      %v3377 = vmin.f32 %v2865, 0.0
      %v3378 = vmin.f32 %v2866, 0.0
      %v3379 = vmin.f32 %v2867, 0.0
      %v3380 = vmin.f32 %v2868, 0.0
      %v3381 = vmin.f32 %v2869, 0.0
      %v3382 = vmin.f32 %v2870, 0.0
      %v3383 = vmin.f32 %v2871, 0.0
      %v3384 = vmin.f32 %v2872, 0.0
      %v3385 = vmin.f32 %v2873, 0.0
      %v3386 = vmin.f32 %v2874, 0.0
      %v3387 = vmin.f32 %v2875, 0.0
      %v3388 = vmin.f32 %v2876, 0.0
      %v3389 = vmin.f32 %v2877, 0.0
      %v3390 = vmin.f32 %v2878, 0.0
      %v3391 = vmin.f32 %v2879, 0.0
      %v3392 = vmin.f32 %v2880, 0.0
      %v3393 = vmin.f32 %v2881, 0.0
      %v3394 = vmin.f32 %v2882, 0.0
      %v3395 = vmin.f32 %v2883, 0.0
      %v3396 = vmin.f32 %v2884, 0.0
      %v3397 = vmin.f32 %v2885, 0.0
      %v3398 = vmin.f32 %v2886, 0.0
      %v3399 = vmin.f32 %v2887, 0.0
      %v3400 = vmin.f32 %v2888, 0.0
      %v3401 = vmin.f32 %v2889, 0.0
      %v3402 = vmin.f32 %v2890, 0.0
      %v3403 = vmin.f32 %v2891, 0.0
      %v3404 = vmin.f32 %v2892, 0.0
      %v3405 = vmin.f32 %v2893, 0.0
      %v3406 = vmin.f32 %v2894, 0.0
      %v3407 = vmin.f32 %v2895, 0.0
      %v3408 = vmin.f32 %v2896, 0.0
      %v3409 = vmin.f32 %v2897, 0.0
      %v3410 = vmin.f32 %v2898, 0.0
      %v3411 = vmin.f32 %v2899, 0.0
      %v3412 = vmin.f32 %v2900, 0.0
      %v3413 = vmin.f32 %v2901, 0.0
      %v3414 = vmin.f32 %v2902, 0.0
      %v3415 = vmin.f32 %v2903, 0.0
      %v3416 = vmin.f32 %v2904, 0.0
      %v3417 = vmin.f32 %v2905, 0.0
      %v3418 = vmin.f32 %v2906, 0.0
      %v3419 = vmin.f32 %v2907, 0.0
      %v3420 = vmin.f32 %v2908, 0.0
      %v3421 = vmin.f32 %v2909, 0.0
      %v3422 = vmin.f32 %v2910, 0.0
      %v3423 = vmin.f32 %v2911, 0.0
      %v3424 = vmin.f32 %v2912, 0.0
      %v3425 = vmin.f32 %v2913, 0.0
      %v3426 = vmin.f32 %v2914, 0.0
      %v3427 = vmin.f32 %v2915, 0.0
      %v3428 = vmin.f32 %v2916, 0.0
      %v3429 = vmin.f32 %v2917, 0.0
      %v3430 = vmin.f32 %v2918, 0.0
      %v3431 = vmin.f32 %v2919, 0.0
      %v3432 = vmin.f32 %v2920, 0.0
      %v3433 = vmin.f32 %v2921, 0.0
      %v3434 = vmin.f32 %v2922, 0.0
      %v3435 = vmin.f32 %v2923, 0.0
      %v3436 = vmin.f32 %v2924, 0.0
      %v3437 = vmin.f32 %v2925, 0.0
      %v3438 = vmin.f32 %v2926, 0.0
      %v3439 = vmin.f32 %v2927, 0.0
      %v3440 = vmin.f32 %v2928, 0.0
      %v3441 = vmin.f32 %v2929, 0.0
      %v3442 = vmin.f32 %v2930, 0.0
      %v3443 = vmin.f32 %v2931, 0.0
      %v3444 = vmin.f32 %v2932, 0.0
      %v3445 = vmin.f32 %v2933, 0.0
      %v3446 = vmin.f32 %v2934, 0.0
      %v3447 = vmin.f32 %v2935, 0.0
      %v3448 = vmin.f32 %v2936, 0.0
      %v3449 = vmin.f32 %v2937, 0.0
      %v3450 = vmin.f32 %v2938, 0.0
      %v3451 = vmin.f32 %v2939, 0.0
      %v3452 = vmin.f32 %v2940, 0.0
      %v3453 = vmin.f32 %v2941, 0.0
      %v3454 = vmin.f32 %v2942, 0.0
      %v3455 = vmin.f32 %v2943, 0.0
      %v3456 = vmin.f32 %v2944, 0.0
      %v3457 = vmin.f32 %v2945, 0.0
      %v3458 = vmin.f32 %v2946, 0.0
      %v3459 = vmin.f32 %v2947, 0.0
      %v3460 = vmin.f32 %v2948, 0.0
      %v3461 = vmin.f32 %v2949, 0.0
      %v3462 = vmin.f32 %v2950, 0.0
      %v3463 = vmin.f32 %v2951, 0.0
      %v3464 = vmin.f32 %v2952, 0.0
      %v3465 = vmin.f32 %v2953, 0.0
      %v3466 = vmin.f32 %v2954, 0.0
      %v3467 = vmin.f32 %v2955, 0.0
      %v3468 = vmin.f32 %v2956, 0.0
      %v3469 = vmin.f32 %v2957, 0.0
      %v3470 = vmin.f32 %v2958, 0.0
      %v3471 = vmin.f32 %v2959, 0.0
      %v3472 = vmin.f32 %v2960, 0.0
      %v3473 = vmin.f32 %v2961, 0.0
      %v3474 = vmin.f32 %v2962, 0.0
      %v3475 = vmin.f32 %v2963, 0.0
      %v3476 = vmin.f32 %v2964, 0.0
      %v3477 = vmin.f32 %v2965, 0.0
      %v3478 = vmin.f32 %v2966, 0.0
      %v3479 = vmin.f32 %v2967, 0.0
      %v3480 = vmin.f32 %v2968, 0.0
      %v3481 = vmin.f32 %v2969, 0.0
      %v3482 = vmin.f32 %v2970, 0.0
      %v3483 = vmin.f32 %v2971, 0.0
      %v3484 = vmin.f32 %v2972, 0.0
      %v3485 = vmin.f32 %v2973, 0.0
      %v3486 = vmin.f32 %v2974, 0.0
      %v3487 = vmin.f32 %v2975, 0.0
      %v3488 = vmin.f32 %v2976, 0.0
      %v3489 = vmin.f32 %v2977, 0.0
      %v3490 = vmin.f32 %v2978, 0.0
      %v3491 = vmin.f32 %v2979, 0.0
      %v3492 = vmin.f32 %v2980, 0.0
      %v3493 = vmin.f32 %v2981, 0.0
      %v3494 = vmin.f32 %v2982, 0.0
      %v3495 = vmin.f32 %v2983, 0.0
      %v3496 = vmin.f32 %v2984, 0.0
      %v3497 = vmin.f32 %v2985, 0.0
      %v3498 = vmin.f32 %v2986, 0.0
      %v3499 = vmin.f32 %v2987, 0.0
      %v3500 = vmin.f32 %v2988, 0.0
      %v3501 = vmin.f32 %v2989, 0.0
      %v3502 = vmin.f32 %v2990, 0.0
      %v3503 = vmin.f32 %v2991, 0.0
      %v3504 = vmin.f32 %v2992, 0.0
      %v3505 = vmin.f32 %v2993, 0.0
      %v3506 = vmin.f32 %v2994, 0.0
      %v3507 = vmin.f32 %v2995, 0.0
      %v3508 = vmin.f32 %v2996, 0.0
      %v3509 = vmin.f32 %v2997, 0.0
      %v3510 = vmin.f32 %v2998, 0.0
      %v3511 = vmin.f32 %v2999, 0.0
      %v3512 = vmin.f32 %v3000, 0.0
      %v3513 = vmin.f32 %v3001, 0.0
      %v3514 = vmin.f32 %v3002, 0.0
      %v3515 = vmin.f32 %v3003, 0.0
      %v3516 = vmin.f32 %v3004, 0.0
      %v3517 = vmin.f32 %v3005, 0.0
      %v3518 = vmin.f32 %v3006, 0.0
      %v3519 = vmin.f32 %v3007, 0.0
      %v3520 = vmin.f32 %v3008, 0.0
      %v3521 = vmin.f32 %v3009, 0.0
      %v3522 = vmin.f32 %v3010, 0.0
      %v3523 = vmin.f32 %v3011, 0.0
      %v3524 = vmin.f32 %v3012, 0.0
      %v3525 = vmin.f32 %v3013, 0.0
      %v3526 = vmin.f32 %v3014, 0.0
      %v3527 = vmin.f32 %v3015, 0.0
      %v3528 = vmin.f32 %v3016, 0.0
      %v3529 = vmin.f32 %v3017, 0.0
      %v3530 = vmin.f32 %v3018, 0.0
      %v3531 = vmin.f32 %v3019, 0.0
      %v3532 = vmin.f32 %v3020, 0.0
      %v3533 = vmin.f32 %v3021, 0.0
      %v3534 = vmin.f32 %v3022, 0.0
      %v3535 = vmin.f32 %v3023, 0.0
      %v3536 = vmin.f32 %v3024, 0.0
      %v3537 = vmin.f32 %v3025, 0.0
      %v3538 = vmin.f32 %v3026, 0.0
      %v3539 = vmin.f32 %v3027, 0.0
      %v3540 = vmin.f32 %v3028, 0.0
      %v3541 = vmin.f32 %v3029, 0.0
      %v3542 = vmin.f32 %v3030, 0.0
      %v3543 = vmin.f32 %v3031, 0.0
      %v3544 = vmin.f32 %v3032, 0.0
      %v3545 = vmin.f32 %v3033, 0.0
      %v3546 = vmin.f32 %v3034, 0.0
      %v3547 = vmin.f32 %v3035, 0.0
      %v3548 = vmin.f32 %v3036, 0.0
      %v3549 = vmin.f32 %v3037, 0.0
      %v3550 = vmin.f32 %v3038, 0.0
      %v3551 = vmin.f32 %v3039, 0.0
      %v3552 = vmin.f32 %v3040, 0.0
      %v3553 = vmin.f32 %v3041, 0.0
      %v3554 = vmin.f32 %v3042, 0.0
      %v3555 = vmin.f32 %v3043, 0.0
      %v3556 = vmin.f32 %v3044, 0.0
      %v3557 = vmin.f32 %v3045, 0.0
      %v3558 = vmin.f32 %v3046, 0.0
      %v3559 = vmin.f32 %v3047, 0.0
      %v3560 = vmin.f32 %v3048, 0.0
      %v3561 = vmin.f32 %v3049, 0.0
      %v3562 = vmin.f32 %v3050, 0.0
      %v3563 = vmin.f32 %v3051, 0.0
      %v3564 = vmin.f32 %v3052, 0.0
      %v3565 = vmin.f32 %v3053, 0.0
      %v3566 = vmin.f32 %v3054, 0.0
      %v3567 = vmin.f32 %v3055, 0.0
      %v3568 = vmin.f32 %v3056, 0.0
      %v3569 = vmin.f32 %v3057, 0.0
      %v3570 = vmin.f32 %v3058, 0.0
      %v3571 = vmin.f32 %v3059, 0.0
      %v3572 = vmin.f32 %v3060, 0.0
      %v3573 = vmin.f32 %v3061, 0.0
      %v3574 = vmin.f32 %v3062, 0.0
      %v3575 = vadd.f32 %v3063, %v3064
      %v3576 = vadd.f32 %v3575, %v3065
      %v3577 = vadd.f32 %v3576, %v3066
      %v3578 = vadd.f32 %v3577, %v3067
      %v3579 = vadd.f32 %v3578, %v3068
      %v3580 = vadd.f32 %v3579, %v3069
      %v3581 = vadd.f32 %v3580, %v3070
      %v3582 = vadd.f32 %v3581, %v3071
      %v3583 = vadd.f32 %v3582, %v3072
      %v3584 = vadd.f32 %v3583, %v3073
      %v3585 = vadd.f32 %v3584, %v3074
      %v3586 = vadd.f32 %v3585, %v3075
      %v3587 = vadd.f32 %v3586, %v3076
      %v3588 = vadd.f32 %v3587, %v3077
      %v3589 = vadd.f32 %v3588, %v3078
      %v3590 = vrot.slane %v3589, 4
      %v3591 = vadd.f32 %v3589, %v3590
      %v3592 = vrot.slane %v3591, 2
      %v3593 = vadd.f32 %v3591, %v3592
      %v3594 = vrot.slane %v3593, 1
      %v3595 = vadd.f32 %v3593, %v3594
      %v3596 = vadd.f32 %v3079, %v3080
      %v3597 = vadd.f32 %v3596, %v3081
      %v3598 = vadd.f32 %v3597, %v3082
      %v3599 = vadd.f32 %v3598, %v3083
      %v3600 = vadd.f32 %v3599, %v3084
      %v3601 = vadd.f32 %v3600, %v3085
      %v3602 = vadd.f32 %v3601, %v3086
      %v3603 = vadd.f32 %v3602, %v3087
      %v3604 = vadd.f32 %v3603, %v3088
      %v3605 = vadd.f32 %v3604, %v3089
      %v3606 = vadd.f32 %v3605, %v3090
      %v3607 = vadd.f32 %v3606, %v3091
      %v3608 = vadd.f32 %v3607, %v3092
      %v3609 = vadd.f32 %v3608, %v3093
      %v3610 = vadd.f32 %v3609, %v3094
      %v3611 = vrot.slane %v3610, 4
      %v3612 = vadd.f32 %v3610, %v3611
      %v3613 = vrot.slane %v3612, 2
      %v3614 = vadd.f32 %v3612, %v3613
      %v3615 = vrot.slane %v3614, 1
      %v3616 = vadd.f32 %v3614, %v3615
      %v3617 = vadd.f32 %v3095, %v3096
      %v3618 = vadd.f32 %v3617, %v3097
      %v3619 = vadd.f32 %v3618, %v3098
      %v3620 = vadd.f32 %v3619, %v3099
      %v3621 = vadd.f32 %v3620, %v3100
      %v3622 = vadd.f32 %v3621, %v3101
      %v3623 = vadd.f32 %v3622, %v3102
      %v3624 = vadd.f32 %v3623, %v3103
      %v3625 = vadd.f32 %v3624, %v3104
      %v3626 = vadd.f32 %v3625, %v3105
      %v3627 = vadd.f32 %v3626, %v3106
      %v3628 = vadd.f32 %v3627, %v3107
      %v3629 = vadd.f32 %v3628, %v3108
      %v3630 = vadd.f32 %v3629, %v3109
      %v3631 = vadd.f32 %v3630, %v3110
      %v3632 = vrot.slane %v3631, 4
      %v3633 = vadd.f32 %v3631, %v3632
      %v3634 = vrot.slane %v3633, 2
      %v3635 = vadd.f32 %v3633, %v3634
      %v3636 = vrot.slane %v3635, 1
      %v3637 = vadd.f32 %v3635, %v3636
      %v3638 = vadd.f32 %v3111, %v3112
      %v3639 = vadd.f32 %v3638, %v3113
      %v3640 = vadd.f32 %v3639, %v3114
      %v3641 = vadd.f32 %v3640, %v3115
      %v3642 = vadd.f32 %v3641, %v3116
      %v3643 = vadd.f32 %v3642, %v3117
      %v3644 = vadd.f32 %v3643, %v3118
      %v3645 = vadd.f32 %v3644, %v3119
      %v3646 = vadd.f32 %v3645, %v3120
      %v3647 = vadd.f32 %v3646, %v3121
      %v3648 = vadd.f32 %v3647, %v3122
      %v3649 = vadd.f32 %v3648, %v3123
      %v3650 = vadd.f32 %v3649, %v3124
      %v3651 = vadd.f32 %v3650, %v3125
      %v3652 = vadd.f32 %v3651, %v3126
      %v3653 = vrot.slane %v3652, 4
      %v3654 = vadd.f32 %v3652, %v3653
      %v3655 = vrot.slane %v3654, 2
      %v3656 = vadd.f32 %v3654, %v3655
      %v3657 = vrot.slane %v3656, 1
      %v3658 = vadd.f32 %v3656, %v3657
      %v3659 = vadd.f32 %v3127, %v3128
      %v3660 = vadd.f32 %v3659, %v3129
      %v3661 = vadd.f32 %v3660, %v3130
      %v3662 = vadd.f32 %v3661, %v3131
      %v3663 = vadd.f32 %v3662, %v3132
      %v3664 = vadd.f32 %v3663, %v3133
      %v3665 = vadd.f32 %v3664, %v3134
      %v3666 = vadd.f32 %v3665, %v3135
      %v3667 = vadd.f32 %v3666, %v3136
      %v3668 = vadd.f32 %v3667, %v3137
      %v3669 = vadd.f32 %v3668, %v3138
      %v3670 = vadd.f32 %v3669, %v3139
      %v3671 = vadd.f32 %v3670, %v3140
      %v3672 = vadd.f32 %v3671, %v3141
      %v3673 = vadd.f32 %v3672, %v3142
      %v3674 = vrot.slane %v3673, 4
      %v3675 = vadd.f32 %v3673, %v3674
      %v3676 = vrot.slane %v3675, 2
      %v3677 = vadd.f32 %v3675, %v3676
      %v3678 = vrot.slane %v3677, 1
      %v3679 = vadd.f32 %v3677, %v3678
      %v3680 = vadd.f32 %v3143, %v3144
      %v3681 = vadd.f32 %v3680, %v3145
      %v3682 = vadd.f32 %v3681, %v3146
      %v3683 = vadd.f32 %v3682, %v3147
      %v3684 = vadd.f32 %v3683, %v3148
      %v3685 = vadd.f32 %v3684, %v3149
      %v3686 = vadd.f32 %v3685, %v3150
      %v3687 = vadd.f32 %v3686, %v3151
      %v3688 = vadd.f32 %v3687, %v3152
      %v3689 = vadd.f32 %v3688, %v3153
      %v3690 = vadd.f32 %v3689, %v3154
      %v3691 = vadd.f32 %v3690, %v3155
      %v3692 = vadd.f32 %v3691, %v3156
      %v3693 = vadd.f32 %v3692, %v3157
      %v3694 = vadd.f32 %v3693, %v3158
      %v3695 = vrot.slane %v3694, 4
      %v3696 = vadd.f32 %v3694, %v3695
      %v3697 = vrot.slane %v3696, 2
      %v3698 = vadd.f32 %v3696, %v3697
      %v3699 = vrot.slane %v3698, 1
      %v3700 = vadd.f32 %v3698, %v3699
      %v3701 = vadd.f32 %v3159, %v3160
      %v3702 = vadd.f32 %v3701, %v3161
      %v3703 = vadd.f32 %v3702, %v3162
      %v3704 = vadd.f32 %v3703, %v3163
      %v3705 = vadd.f32 %v3704, %v3164
      %v3706 = vadd.f32 %v3705, %v3165
      %v3707 = vadd.f32 %v3706, %v3166
      %v3708 = vadd.f32 %v3707, %v3167
      %v3709 = vadd.f32 %v3708, %v3168
      %v3710 = vadd.f32 %v3709, %v3169
      %v3711 = vadd.f32 %v3710, %v3170
      %v3712 = vadd.f32 %v3711, %v3171
      %v3713 = vadd.f32 %v3712, %v3172
      %v3714 = vadd.f32 %v3713, %v3173
      %v3715 = vadd.f32 %v3714, %v3174
      %v3716 = vrot.slane %v3715, 4
      %v3717 = vadd.f32 %v3715, %v3716
      %v3718 = vrot.slane %v3717, 2
      %v3719 = vadd.f32 %v3717, %v3718
      %v3720 = vrot.slane %v3719, 1
      %v3721 = vadd.f32 %v3719, %v3720
      %v3722 = vadd.f32 %v3175, %v3176
      %v3723 = vadd.f32 %v3722, %v3177
      %v3724 = vadd.f32 %v3723, %v3178
      %v3725 = vadd.f32 %v3724, %v3179
      %v3726 = vadd.f32 %v3725, %v3180
      %v3727 = vadd.f32 %v3726, %v3181
      %v3728 = vadd.f32 %v3727, %v3182
      %v3729 = vadd.f32 %v3728, %v3183
      %v3730 = vadd.f32 %v3729, %v3184
      %v3731 = vadd.f32 %v3730, %v3185
      %v3732 = vadd.f32 %v3731, %v3186
      %v3733 = vadd.f32 %v3732, %v3187
      %v3734 = vadd.f32 %v3733, %v3188
      %v3735 = vadd.f32 %v3734, %v3189
      %v3736 = vadd.f32 %v3735, %v3190
      %v3737 = vrot.slane %v3736, 4
      %v3738 = vadd.f32 %v3736, %v3737
      %v3739 = vrot.slane %v3738, 2
      %v3740 = vadd.f32 %v3738, %v3739
      %v3741 = vrot.slane %v3740, 1
      %v3742 = vadd.f32 %v3740, %v3741
      %v3743 = vadd.f32 %v3191, %v3192
      %v3744 = vadd.f32 %v3743, %v3193
      %v3745 = vadd.f32 %v3744, %v3194
      %v3746 = vadd.f32 %v3745, %v3195
      %v3747 = vadd.f32 %v3746, %v3196
      %v3748 = vadd.f32 %v3747, %v3197
      %v3749 = vadd.f32 %v3748, %v3198
      %v3750 = vadd.f32 %v3749, %v3199
      %v3751 = vadd.f32 %v3750, %v3200
      %v3752 = vadd.f32 %v3751, %v3201
      %v3753 = vadd.f32 %v3752, %v3202
      %v3754 = vadd.f32 %v3753, %v3203
      %v3755 = vadd.f32 %v3754, %v3204
      %v3756 = vadd.f32 %v3755, %v3205
      %v3757 = vadd.f32 %v3756, %v3206
      %v3758 = vrot.slane %v3757, 4
      %v3759 = vadd.f32 %v3757, %v3758
      %v3760 = vrot.slane %v3759, 2
      %v3761 = vadd.f32 %v3759, %v3760
      %v3762 = vrot.slane %v3761, 1
      %v3763 = vadd.f32 %v3761, %v3762
      %v3764 = vadd.f32 %v3207, %v3208
      %v3765 = vadd.f32 %v3764, %v3209
      %v3766 = vadd.f32 %v3765, %v3210
      %v3767 = vadd.f32 %v3766, %v3211
      %v3768 = vadd.f32 %v3767, %v3212
      %v3769 = vadd.f32 %v3768, %v3213
      %v3770 = vadd.f32 %v3769, %v3214
      %v3771 = vadd.f32 %v3770, %v3215
      %v3772 = vadd.f32 %v3771, %v3216
      %v3773 = vadd.f32 %v3772, %v3217
      %v3774 = vadd.f32 %v3773, %v3218
      %v3775 = vadd.f32 %v3774, %v3219
      %v3776 = vadd.f32 %v3775, %v3220
      %v3777 = vadd.f32 %v3776, %v3221
      %v3778 = vadd.f32 %v3777, %v3222
      %v3779 = vrot.slane %v3778, 4
      %v3780 = vadd.f32 %v3778, %v3779
      %v3781 = vrot.slane %v3780, 2
      %v3782 = vadd.f32 %v3780, %v3781
      %v3783 = vrot.slane %v3782, 1
      %v3784 = vadd.f32 %v3782, %v3783
      %v3785 = vadd.f32 %v3223, %v3224
      %v3786 = vadd.f32 %v3785, %v3225
      %v3787 = vadd.f32 %v3786, %v3226
      %v3788 = vadd.f32 %v3787, %v3227
      %v3789 = vadd.f32 %v3788, %v3228
      %v3790 = vadd.f32 %v3789, %v3229
      %v3791 = vadd.f32 %v3790, %v3230
      %v3792 = vadd.f32 %v3791, %v3231
      %v3793 = vadd.f32 %v3792, %v3232
      %v3794 = vadd.f32 %v3793, %v3233
      %v3795 = vadd.f32 %v3794, %v3234
      %v3796 = vadd.f32 %v3795, %v3235
      %v3797 = vadd.f32 %v3796, %v3236
      %v3798 = vadd.f32 %v3797, %v3237
      %v3799 = vadd.f32 %v3798, %v3238
      %v3800 = vrot.slane %v3799, 4
      %v3801 = vadd.f32 %v3799, %v3800
      %v3802 = vrot.slane %v3801, 2
      %v3803 = vadd.f32 %v3801, %v3802
      %v3804 = vrot.slane %v3803, 1
      %v3805 = vadd.f32 %v3803, %v3804
      %v3806 = vadd.f32 %v3239, %v3240
      %v3807 = vadd.f32 %v3806, %v3241
      %v3808 = vadd.f32 %v3807, %v3242
      %v3809 = vadd.f32 %v3808, %v3243
      %v3810 = vadd.f32 %v3809, %v3244
      %v3811 = vadd.f32 %v3810, %v3245
      %v3812 = vadd.f32 %v3811, %v3246
      %v3813 = vadd.f32 %v3812, %v3247
      %v3814 = vadd.f32 %v3813, %v3248
      %v3815 = vadd.f32 %v3814, %v3249
      %v3816 = vadd.f32 %v3815, %v3250
      %v3817 = vadd.f32 %v3816, %v3251
      %v3818 = vadd.f32 %v3817, %v3252
      %v3819 = vadd.f32 %v3818, %v3253
      %v3820 = vadd.f32 %v3819, %v3254
      %v3821 = vrot.slane %v3820, 4
      %v3822 = vadd.f32 %v3820, %v3821
      %v3823 = vrot.slane %v3822, 2
      %v3824 = vadd.f32 %v3822, %v3823
      %v3825 = vrot.slane %v3824, 1
      %v3826 = vadd.f32 %v3824, %v3825
      %v3827 = vadd.f32 %v3255, %v3256
      %v3828 = vadd.f32 %v3827, %v3257
      %v3829 = vadd.f32 %v3828, %v3258
      %v3830 = vadd.f32 %v3829, %v3259
      %v3831 = vadd.f32 %v3830, %v3260
      %v3832 = vadd.f32 %v3831, %v3261
      %v3833 = vadd.f32 %v3832, %v3262
      %v3834 = vadd.f32 %v3833, %v3263
      %v3835 = vadd.f32 %v3834, %v3264
      %v3836 = vadd.f32 %v3835, %v3265
      %v3837 = vadd.f32 %v3836, %v3266
      %v3838 = vadd.f32 %v3837, %v3267
      %v3839 = vadd.f32 %v3838, %v3268
      %v3840 = vadd.f32 %v3839, %v3269
      %v3841 = vadd.f32 %v3840, %v3270
      %v3842 = vrot.slane %v3841, 4
      %v3843 = vadd.f32 %v3841, %v3842
      %v3844 = vrot.slane %v3843, 2
      %v3845 = vadd.f32 %v3843, %v3844
      %v3846 = vrot.slane %v3845, 1
      %v3847 = vadd.f32 %v3845, %v3846
      %v3848 = vadd.f32 %v3271, %v3272
      %v3849 = vadd.f32 %v3848, %v3273
      %v3850 = vadd.f32 %v3849, %v3274
      %v3851 = vadd.f32 %v3850, %v3275
      %v3852 = vadd.f32 %v3851, %v3276
      %v3853 = vadd.f32 %v3852, %v3277
      %v3854 = vadd.f32 %v3853, %v3278
      %v3855 = vadd.f32 %v3854, %v3279
      %v3856 = vadd.f32 %v3855, %v3280
      %v3857 = vadd.f32 %v3856, %v3281
      %v3858 = vadd.f32 %v3857, %v3282
      %v3859 = vadd.f32 %v3858, %v3283
      %v3860 = vadd.f32 %v3859, %v3284
      %v3861 = vadd.f32 %v3860, %v3285
      %v3862 = vadd.f32 %v3861, %v3286
      %v3863 = vrot.slane %v3862, 4
      %v3864 = vadd.f32 %v3862, %v3863
      %v3865 = vrot.slane %v3864, 2
      %v3866 = vadd.f32 %v3864, %v3865
      %v3867 = vrot.slane %v3866, 1
      %v3868 = vadd.f32 %v3866, %v3867
      %v3869 = vadd.f32 %v3287, %v3288
      %v3870 = vadd.f32 %v3869, %v3289
      %v3871 = vadd.f32 %v3870, %v3290
      %v3872 = vadd.f32 %v3871, %v3291
      %v3873 = vadd.f32 %v3872, %v3292
      %v3874 = vadd.f32 %v3873, %v3293
      %v3875 = vadd.f32 %v3874, %v3294
      %v3876 = vadd.f32 %v3875, %v3295
      %v3877 = vadd.f32 %v3876, %v3296
      %v3878 = vadd.f32 %v3877, %v3297
      %v3879 = vadd.f32 %v3878, %v3298
      %v3880 = vadd.f32 %v3879, %v3299
      %v3881 = vadd.f32 %v3880, %v3300
      %v3882 = vadd.f32 %v3881, %v3301
      %v3883 = vadd.f32 %v3882, %v3302
      %v3884 = vrot.slane %v3883, 4
      %v3885 = vadd.f32 %v3883, %v3884
      %v3886 = vrot.slane %v3885, 2
      %v3887 = vadd.f32 %v3885, %v3886
      %v3888 = vrot.slane %v3887, 1
      %v3889 = vadd.f32 %v3887, %v3888
      %v3890 = vadd.f32 %v3303, %v3304
      %v3891 = vadd.f32 %v3890, %v3305
      %v3892 = vadd.f32 %v3891, %v3306
      %v3893 = vadd.f32 %v3892, %v3307
      %v3894 = vadd.f32 %v3893, %v3308
      %v3895 = vadd.f32 %v3894, %v3309
      %v3896 = vadd.f32 %v3895, %v3310
      %v3897 = vadd.f32 %v3896, %v3311
      %v3898 = vadd.f32 %v3897, %v3312
      %v3899 = vadd.f32 %v3898, %v3313
      %v3900 = vadd.f32 %v3899, %v3314
      %v3901 = vadd.f32 %v3900, %v3315
      %v3902 = vadd.f32 %v3901, %v3316
      %v3903 = vadd.f32 %v3902, %v3317
      %v3904 = vadd.f32 %v3903, %v3318
      %v3905 = vrot.slane %v3904, 4
      %v3906 = vadd.f32 %v3904, %v3905
      %v3907 = vrot.slane %v3906, 2
      %v3908 = vadd.f32 %v3906, %v3907
      %v3909 = vrot.slane %v3908, 1
      %v3910 = vadd.f32 %v3908, %v3909
      %v3911 = vadd.f32 %v3319, %v3320
      %v3912 = vadd.f32 %v3911, %v3321
      %v3913 = vadd.f32 %v3912, %v3322
      %v3914 = vadd.f32 %v3913, %v3323
      %v3915 = vadd.f32 %v3914, %v3324
      %v3916 = vadd.f32 %v3915, %v3325
      %v3917 = vadd.f32 %v3916, %v3326
      %v3918 = vadd.f32 %v3917, %v3327
      %v3919 = vadd.f32 %v3918, %v3328
      %v3920 = vadd.f32 %v3919, %v3329
      %v3921 = vadd.f32 %v3920, %v3330
      %v3922 = vadd.f32 %v3921, %v3331
      %v3923 = vadd.f32 %v3922, %v3332
      %v3924 = vadd.f32 %v3923, %v3333
      %v3925 = vadd.f32 %v3924, %v3334
      %v3926 = vrot.slane %v3925, 4
      %v3927 = vadd.f32 %v3925, %v3926
      %v3928 = vrot.slane %v3927, 2
      %v3929 = vadd.f32 %v3927, %v3928
      %v3930 = vrot.slane %v3929, 1
      %v3931 = vadd.f32 %v3929, %v3930
      %v3932 = vadd.f32 %v3335, %v3336
      %v3933 = vadd.f32 %v3932, %v3337
      %v3934 = vadd.f32 %v3933, %v3338
      %v3935 = vadd.f32 %v3934, %v3339
      %v3936 = vadd.f32 %v3935, %v3340
      %v3937 = vadd.f32 %v3936, %v3341
      %v3938 = vadd.f32 %v3937, %v3342
      %v3939 = vadd.f32 %v3938, %v3343
      %v3940 = vadd.f32 %v3939, %v3344
      %v3941 = vadd.f32 %v3940, %v3345
      %v3942 = vadd.f32 %v3941, %v3346
      %v3943 = vadd.f32 %v3942, %v3347
      %v3944 = vadd.f32 %v3943, %v3348
      %v3945 = vadd.f32 %v3944, %v3349
      %v3946 = vadd.f32 %v3945, %v3350
      %v3947 = vrot.slane %v3946, 4
      %v3948 = vadd.f32 %v3946, %v3947
      %v3949 = vrot.slane %v3948, 2
      %v3950 = vadd.f32 %v3948, %v3949
      %v3951 = vrot.slane %v3950, 1
      %v3952 = vadd.f32 %v3950, %v3951
      %v3953 = vadd.f32 %v3351, %v3352
      %v3954 = vadd.f32 %v3953, %v3353
      %v3955 = vadd.f32 %v3954, %v3354
      %v3956 = vadd.f32 %v3955, %v3355
      %v3957 = vadd.f32 %v3956, %v3356
      %v3958 = vadd.f32 %v3957, %v3357
      %v3959 = vadd.f32 %v3958, %v3358
      %v3960 = vadd.f32 %v3959, %v3359
      %v3961 = vadd.f32 %v3960, %v3360
      %v3962 = vadd.f32 %v3961, %v3361
      %v3963 = vadd.f32 %v3962, %v3362
      %v3964 = vadd.f32 %v3963, %v3363
      %v3965 = vadd.f32 %v3964, %v3364
      %v3966 = vadd.f32 %v3965, %v3365
      %v3967 = vadd.f32 %v3966, %v3366
      %v3968 = vrot.slane %v3967, 4
      %v3969 = vadd.f32 %v3967, %v3968
      %v3970 = vrot.slane %v3969, 2
      %v3971 = vadd.f32 %v3969, %v3970
      %v3972 = vrot.slane %v3971, 1
      %v3973 = vadd.f32 %v3971, %v3972
      %v3974 = vadd.f32 %v3367, %v3368
      %v3975 = vadd.f32 %v3974, %v3369
      %v3976 = vadd.f32 %v3975, %v3370
      %v3977 = vadd.f32 %v3976, %v3371
      %v3978 = vadd.f32 %v3977, %v3372
      %v3979 = vadd.f32 %v3978, %v3373
      %v3980 = vadd.f32 %v3979, %v3374
      %v3981 = vadd.f32 %v3980, %v3375
      %v3982 = vadd.f32 %v3981, %v3376
      %v3983 = vadd.f32 %v3982, %v3377
      %v3984 = vadd.f32 %v3983, %v3378
      %v3985 = vadd.f32 %v3984, %v3379
      %v3986 = vadd.f32 %v3985, %v3380
      %v3987 = vadd.f32 %v3986, %v3381
      %v3988 = vadd.f32 %v3987, %v3382
      %v3989 = vrot.slane %v3988, 4
      %v3990 = vadd.f32 %v3988, %v3989
      %v3991 = vrot.slane %v3990, 2
      %v3992 = vadd.f32 %v3990, %v3991
      %v3993 = vrot.slane %v3992, 1
      %v3994 = vadd.f32 %v3992, %v3993
      %v3995 = vadd.f32 %v3383, %v3384
      %v3996 = vadd.f32 %v3995, %v3385
      %v3997 = vadd.f32 %v3996, %v3386
      %v3998 = vadd.f32 %v3997, %v3387
      %v3999 = vadd.f32 %v3998, %v3388
      %v4000 = vadd.f32 %v3999, %v3389
      %v4001 = vadd.f32 %v4000, %v3390
      %v4002 = vadd.f32 %v4001, %v3391
      %v4003 = vadd.f32 %v4002, %v3392
      %v4004 = vadd.f32 %v4003, %v3393
      %v4005 = vadd.f32 %v4004, %v3394
      %v4006 = vadd.f32 %v4005, %v3395
      %v4007 = vadd.f32 %v4006, %v3396
      %v4008 = vadd.f32 %v4007, %v3397
      %v4009 = vadd.f32 %v4008, %v3398
      %v4010 = vrot.slane %v4009, 4
      %v4011 = vadd.f32 %v4009, %v4010
      %v4012 = vrot.slane %v4011, 2
      %v4013 = vadd.f32 %v4011, %v4012
      %v4014 = vrot.slane %v4013, 1
      %v4015 = vadd.f32 %v4013, %v4014
      %v4016 = vadd.f32 %v3399, %v3400
      %v4017 = vadd.f32 %v4016, %v3401
      %v4018 = vadd.f32 %v4017, %v3402
      %v4019 = vadd.f32 %v4018, %v3403
      %v4020 = vadd.f32 %v4019, %v3404
      %v4021 = vadd.f32 %v4020, %v3405
      %v4022 = vadd.f32 %v4021, %v3406
      %v4023 = vadd.f32 %v4022, %v3407
      %v4024 = vadd.f32 %v4023, %v3408
      %v4025 = vadd.f32 %v4024, %v3409
      %v4026 = vadd.f32 %v4025, %v3410
      %v4027 = vadd.f32 %v4026, %v3411
      %v4028 = vadd.f32 %v4027, %v3412
      %v4029 = vadd.f32 %v4028, %v3413
      %v4030 = vadd.f32 %v4029, %v3414
      %v4031 = vrot.slane %v4030, 4
      %v4032 = vadd.f32 %v4030, %v4031
      %v4033 = vrot.slane %v4032, 2
      %v4034 = vadd.f32 %v4032, %v4033
      %v4035 = vrot.slane %v4034, 1
      %v4036 = vadd.f32 %v4034, %v4035
      %v4037 = vadd.f32 %v3415, %v3416
      %v4038 = vadd.f32 %v4037, %v3417
      %v4039 = vadd.f32 %v4038, %v3418
      %v4040 = vadd.f32 %v4039, %v3419
      %v4041 = vadd.f32 %v4040, %v3420
      %v4042 = vadd.f32 %v4041, %v3421
      %v4043 = vadd.f32 %v4042, %v3422
      %v4044 = vadd.f32 %v4043, %v3423
      %v4045 = vadd.f32 %v4044, %v3424
      %v4046 = vadd.f32 %v4045, %v3425
      %v4047 = vadd.f32 %v4046, %v3426
      %v4048 = vadd.f32 %v4047, %v3427
      %v4049 = vadd.f32 %v4048, %v3428
      %v4050 = vadd.f32 %v4049, %v3429
      %v4051 = vadd.f32 %v4050, %v3430
      %v4052 = vrot.slane %v4051, 4
      %v4053 = vadd.f32 %v4051, %v4052
      %v4054 = vrot.slane %v4053, 2
      %v4055 = vadd.f32 %v4053, %v4054
      %v4056 = vrot.slane %v4055, 1
      %v4057 = vadd.f32 %v4055, %v4056
      %v4058 = vadd.f32 %v3431, %v3432
      %v4059 = vadd.f32 %v4058, %v3433
      %v4060 = vadd.f32 %v4059, %v3434
      %v4061 = vadd.f32 %v4060, %v3435
      %v4062 = vadd.f32 %v4061, %v3436
      %v4063 = vadd.f32 %v4062, %v3437
      %v4064 = vadd.f32 %v4063, %v3438
      %v4065 = vadd.f32 %v4064, %v3439
      %v4066 = vadd.f32 %v4065, %v3440
      %v4067 = vadd.f32 %v4066, %v3441
      %v4068 = vadd.f32 %v4067, %v3442
      %v4069 = vadd.f32 %v4068, %v3443
      %v4070 = vadd.f32 %v4069, %v3444
      %v4071 = vadd.f32 %v4070, %v3445
      %v4072 = vadd.f32 %v4071, %v3446
      %v4073 = vrot.slane %v4072, 4
      %v4074 = vadd.f32 %v4072, %v4073
      %v4075 = vrot.slane %v4074, 2
      %v4076 = vadd.f32 %v4074, %v4075
      %v4077 = vrot.slane %v4076, 1
      %v4078 = vadd.f32 %v4076, %v4077
      %v4079 = vadd.f32 %v3447, %v3448
      %v4080 = vadd.f32 %v4079, %v3449
      %v4081 = vadd.f32 %v4080, %v3450
      %v4082 = vadd.f32 %v4081, %v3451
      %v4083 = vadd.f32 %v4082, %v3452
      %v4084 = vadd.f32 %v4083, %v3453
      %v4085 = vadd.f32 %v4084, %v3454
      %v4086 = vadd.f32 %v4085, %v3455
      %v4087 = vadd.f32 %v4086, %v3456
      %v4088 = vadd.f32 %v4087, %v3457
      %v4089 = vadd.f32 %v4088, %v3458
      %v4090 = vadd.f32 %v4089, %v3459
      %v4091 = vadd.f32 %v4090, %v3460
      %v4092 = vadd.f32 %v4091, %v3461
      %v4093 = vadd.f32 %v4092, %v3462
      %v4094 = vrot.slane %v4093, 4
      %v4095 = vadd.f32 %v4093, %v4094
      %v4096 = vrot.slane %v4095, 2
      %v4097 = vadd.f32 %v4095, %v4096
      %v4098 = vrot.slane %v4097, 1
      %v4099 = vadd.f32 %v4097, %v4098
      %v4100 = vadd.f32 %v3463, %v3464
      %v4101 = vadd.f32 %v4100, %v3465
      %v4102 = vadd.f32 %v4101, %v3466
      %v4103 = vadd.f32 %v4102, %v3467
      %v4104 = vadd.f32 %v4103, %v3468
      %v4105 = vadd.f32 %v4104, %v3469
      %v4106 = vadd.f32 %v4105, %v3470
      %v4107 = vadd.f32 %v4106, %v3471
      %v4108 = vadd.f32 %v4107, %v3472
      %v4109 = vadd.f32 %v4108, %v3473
      %v4110 = vadd.f32 %v4109, %v3474
      %v4111 = vadd.f32 %v4110, %v3475
      %v4112 = vadd.f32 %v4111, %v3476
      %v4113 = vadd.f32 %v4112, %v3477
      %v4114 = vadd.f32 %v4113, %v3478
      %v4115 = vrot.slane %v4114, 4
      %v4116 = vadd.f32 %v4114, %v4115
      %v4117 = vrot.slane %v4116, 2
      %v4118 = vadd.f32 %v4116, %v4117
      %v4119 = vrot.slane %v4118, 1
      %v4120 = vadd.f32 %v4118, %v4119
      %v4121 = vadd.f32 %v3479, %v3480
      %v4122 = vadd.f32 %v4121, %v3481
      %v4123 = vadd.f32 %v4122, %v3482
      %v4124 = vadd.f32 %v4123, %v3483
      %v4125 = vadd.f32 %v4124, %v3484
      %v4126 = vadd.f32 %v4125, %v3485
      %v4127 = vadd.f32 %v4126, %v3486
      %v4128 = vadd.f32 %v4127, %v3487
      %v4129 = vadd.f32 %v4128, %v3488
      %v4130 = vadd.f32 %v4129, %v3489
      %v4131 = vadd.f32 %v4130, %v3490
      %v4132 = vadd.f32 %v4131, %v3491
      %v4133 = vadd.f32 %v4132, %v3492
      %v4134 = vadd.f32 %v4133, %v3493
      %v4135 = vadd.f32 %v4134, %v3494
      %v4136 = vrot.slane %v4135, 4
      %v4137 = vadd.f32 %v4135, %v4136
      %v4138 = vrot.slane %v4137, 2
      %v4139 = vadd.f32 %v4137, %v4138
      %v4140 = vrot.slane %v4139, 1
      %v4141 = vadd.f32 %v4139, %v4140
      %v4142 = vadd.f32 %v3495, %v3496
      %v4143 = vadd.f32 %v4142, %v3497
      %v4144 = vadd.f32 %v4143, %v3498
      %v4145 = vadd.f32 %v4144, %v3499
      %v4146 = vadd.f32 %v4145, %v3500
      %v4147 = vadd.f32 %v4146, %v3501
      %v4148 = vadd.f32 %v4147, %v3502
      %v4149 = vadd.f32 %v4148, %v3503
      %v4150 = vadd.f32 %v4149, %v3504
      %v4151 = vadd.f32 %v4150, %v3505
      %v4152 = vadd.f32 %v4151, %v3506
      %v4153 = vadd.f32 %v4152, %v3507
      %v4154 = vadd.f32 %v4153, %v3508
      %v4155 = vadd.f32 %v4154, %v3509
      %v4156 = vadd.f32 %v4155, %v3510
      %v4157 = vrot.slane %v4156, 4
      %v4158 = vadd.f32 %v4156, %v4157
      %v4159 = vrot.slane %v4158, 2
      %v4160 = vadd.f32 %v4158, %v4159
      %v4161 = vrot.slane %v4160, 1
      %v4162 = vadd.f32 %v4160, %v4161
      %v4163 = vadd.f32 %v3511, %v3512
      %v4164 = vadd.f32 %v4163, %v3513
      %v4165 = vadd.f32 %v4164, %v3514
      %v4166 = vadd.f32 %v4165, %v3515
      %v4167 = vadd.f32 %v4166, %v3516
      %v4168 = vadd.f32 %v4167, %v3517
      %v4169 = vadd.f32 %v4168, %v3518
      %v4170 = vadd.f32 %v4169, %v3519
      %v4171 = vadd.f32 %v4170, %v3520
      %v4172 = vadd.f32 %v4171, %v3521
      %v4173 = vadd.f32 %v4172, %v3522
      %v4174 = vadd.f32 %v4173, %v3523
      %v4175 = vadd.f32 %v4174, %v3524
      %v4176 = vadd.f32 %v4175, %v3525
      %v4177 = vadd.f32 %v4176, %v3526
      %v4178 = vrot.slane %v4177, 4
      %v4179 = vadd.f32 %v4177, %v4178
      %v4180 = vrot.slane %v4179, 2
      %v4181 = vadd.f32 %v4179, %v4180
      %v4182 = vrot.slane %v4181, 1
      %v4183 = vadd.f32 %v4181, %v4182
      %v4184 = vadd.f32 %v3527, %v3528
      %v4185 = vadd.f32 %v4184, %v3529
      %v4186 = vadd.f32 %v4185, %v3530
      %v4187 = vadd.f32 %v4186, %v3531
      %v4188 = vadd.f32 %v4187, %v3532
      %v4189 = vadd.f32 %v4188, %v3533
      %v4190 = vadd.f32 %v4189, %v3534
      %v4191 = vadd.f32 %v4190, %v3535
      %v4192 = vadd.f32 %v4191, %v3536
      %v4193 = vadd.f32 %v4192, %v3537
      %v4194 = vadd.f32 %v4193, %v3538
      %v4195 = vadd.f32 %v4194, %v3539
      %v4196 = vadd.f32 %v4195, %v3540
      %v4197 = vadd.f32 %v4196, %v3541
      %v4198 = vadd.f32 %v4197, %v3542
      %v4199 = vrot.slane %v4198, 4
      %v4200 = vadd.f32 %v4198, %v4199
      %v4201 = vrot.slane %v4200, 2
      %v4202 = vadd.f32 %v4200, %v4201
      %v4203 = vrot.slane %v4202, 1
      %v4204 = vadd.f32 %v4202, %v4203
      %v4205 = vadd.f32 %v3543, %v3544
      %v4206 = vadd.f32 %v4205, %v3545
      %v4207 = vadd.f32 %v4206, %v3546
      %v4208 = vadd.f32 %v4207, %v3547
      %v4209 = vadd.f32 %v4208, %v3548
      %v4210 = vadd.f32 %v4209, %v3549
      %v4211 = vadd.f32 %v4210, %v3550
      %v4212 = vadd.f32 %v4211, %v3551
      %v4213 = vadd.f32 %v4212, %v3552
      %v4214 = vadd.f32 %v4213, %v3553
      %v4215 = vadd.f32 %v4214, %v3554
      %v4216 = vadd.f32 %v4215, %v3555
      %v4217 = vadd.f32 %v4216, %v3556
      %v4218 = vadd.f32 %v4217, %v3557
      %v4219 = vadd.f32 %v4218, %v3558
      %v4220 = vrot.slane %v4219, 4
      %v4221 = vadd.f32 %v4219, %v4220
      %v4222 = vrot.slane %v4221, 2
      %v4223 = vadd.f32 %v4221, %v4222
      %v4224 = vrot.slane %v4223, 1
      %v4225 = vadd.f32 %v4223, %v4224
      %v4226 = vadd.f32 %v3559, %v3560
      %v4227 = vadd.f32 %v4226, %v3561
      %v4228 = vadd.f32 %v4227, %v3562
      %v4229 = vadd.f32 %v4228, %v3563
      %v4230 = vadd.f32 %v4229, %v3564
      %v4231 = vadd.f32 %v4230, %v3565
      %v4232 = vadd.f32 %v4231, %v3566
      %v4233 = vadd.f32 %v4232, %v3567
      %v4234 = vadd.f32 %v4233, %v3568
      %v4235 = vadd.f32 %v4234, %v3569
      %v4236 = vadd.f32 %v4235, %v3570
      %v4237 = vadd.f32 %v4236, %v3571
      %v4238 = vadd.f32 %v4237, %v3572
      %v4239 = vadd.f32 %v4238, %v3573
      %v4240 = vadd.f32 %v4239, %v3574
      %v4241 = vrot.slane %v4240, 4
      %v4242 = vadd.f32 %v4240, %v4241
      %v4243 = vrot.slane %v4242, 2
      %v4244 = vadd.f32 %v4242, %v4243
      %v4245 = vrot.slane %v4244, 1
      %v4246 = vadd.f32 %v4244, %v4245
      %vm4247 = vcmp.gt.f32.partialorder %v3595, -1.0
      %vm4248 = vcmp.gt.f32.partialorder %v3616, -1.0
      %vm4249 = vcmp.gt.f32.partialorder %v3637, -1.0
      %vm4250 = vcmp.gt.f32.partialorder %v3658, -1.0
      %vm4251 = vcmp.gt.f32.partialorder %v3679, -1.0
      %vm4252 = vcmp.gt.f32.partialorder %v3700, -1.0
      %vm4253 = vcmp.gt.f32.partialorder %v3721, -1.0
      %vm4254 = vcmp.gt.f32.partialorder %v3742, -1.0
      %vm4255 = vcmp.gt.f32.partialorder %v3763, -1.0
      %vm4256 = vcmp.gt.f32.partialorder %v3784, -1.0
      %vm4257 = vcmp.gt.f32.partialorder %v3805, -1.0
      %vm4258 = vcmp.gt.f32.partialorder %v3826, -1.0
      %vm4259 = vcmp.gt.f32.partialorder %v3847, -1.0
      %vm4260 = vcmp.gt.f32.partialorder %v3868, -1.0
      %vm4261 = vcmp.gt.f32.partialorder %v3889, -1.0
      %vm4262 = vcmp.gt.f32.partialorder %v3910, -1.0
      %vm4263 = vcmp.gt.f32.partialorder %v3931, -1.0
      %vm4264 = vcmp.gt.f32.partialorder %v3952, -1.0
      %vm4265 = vcmp.gt.f32.partialorder %v3973, -1.0
      %vm4266 = vcmp.gt.f32.partialorder %v3994, -1.0
      %vm4267 = vcmp.gt.f32.partialorder %v4015, -1.0
      %vm4268 = vcmp.gt.f32.partialorder %v4036, -1.0
      %vm4269 = vcmp.gt.f32.partialorder %v4057, -1.0
      %vm4270 = vcmp.gt.f32.partialorder %v4078, -1.0
      %vm4271 = vcmp.gt.f32.partialorder %v4099, -1.0
      %vm4272 = vcmp.gt.f32.partialorder %v4120, -1.0
      %vm4273 = vcmp.gt.f32.partialorder %v4141, -1.0
      %vm4274 = vcmp.gt.f32.partialorder %v4162, -1.0
      %vm4275 = vcmp.gt.f32.partialorder %v4183, -1.0
      %vm4276 = vcmp.gt.f32.partialorder %v4204, -1.0
      %vm4277 = vcmp.gt.f32.partialorder %v4225, -1.0
      %vm4278 = vcmp.gt.f32.partialorder %v4246, -1.0
      %v4279 = vsel %vm4247, 1, 0
      %v4280 = vsel %vm4248, 1, 0
      %v4281 = vsel %vm4249, 1, 0
      %v4282 = vsel %vm4250, 1, 0
      %v4283 = vsel %vm4251, 1, 0
      %v4284 = vsel %vm4252, 1, 0
      %v4285 = vsel %vm4253, 1, 0
      %v4286 = vsel %vm4254, 1, 0
      %v4287 = vsel %vm4255, 1, 0
      %v4288 = vsel %vm4256, 1, 0
      %v4289 = vsel %vm4257, 1, 0
      %v4290 = vsel %vm4258, 1, 0
      %v4291 = vsel %vm4259, 1, 0
      %v4292 = vsel %vm4260, 1, 0
      %v4293 = vsel %vm4261, 1, 0
      %v4294 = vsel %vm4262, 1, 0
      %v4295 = vsel %vm4263, 1, 0
      %v4296 = vsel %vm4264, 1, 0
      %v4297 = vsel %vm4265, 1, 0
      %v4298 = vsel %vm4266, 1, 0
      %v4299 = vsel %vm4267, 1, 0
      %v4300 = vsel %vm4268, 1, 0
      %v4301 = vsel %vm4269, 1, 0
      %v4302 = vsel %vm4270, 1, 0
      %v4303 = vsel %vm4271, 1, 0
      %v4304 = vsel %vm4272, 1, 0
      %v4305 = vsel %vm4273, 1, 0
      %v4306 = vsel %vm4274, 1, 0
      %v4307 = vsel %vm4275, 1, 0
      %v4308 = vsel %vm4276, 1, 0
      %v4309 = vsel %vm4277, 1, 0
      %v4310 = vsel %vm4278, 1, 0
      %v4311 = vcvt.s32.f32 %v4279
      %v4312 = vcvt.s32.f32 %v4280
      %v4313 = vcvt.s32.f32 %v4281
      %v4314 = vcvt.s32.f32 %v4282
      %v4315 = vcvt.s32.f32 %v4283
      %v4316 = vcvt.s32.f32 %v4284
      %v4317 = vcvt.s32.f32 %v4285
      %v4318 = vcvt.s32.f32 %v4286
      %v4319 = vcvt.s32.f32 %v4287
      %v4320 = vcvt.s32.f32 %v4288
      %v4321 = vcvt.s32.f32 %v4289
      %v4322 = vcvt.s32.f32 %v4290
      %v4323 = vcvt.s32.f32 %v4291
      %v4324 = vcvt.s32.f32 %v4292
      %v4325 = vcvt.s32.f32 %v4293
      %v4326 = vcvt.s32.f32 %v4294
      %v4327 = vcvt.s32.f32 %v4295
      %v4328 = vcvt.s32.f32 %v4296
      %v4329 = vcvt.s32.f32 %v4297
      %v4330 = vcvt.s32.f32 %v4298
      %v4331 = vcvt.s32.f32 %v4299
      %v4332 = vcvt.s32.f32 %v4300
      %v4333 = vcvt.s32.f32 %v4301
      %v4334 = vcvt.s32.f32 %v4302
      %v4335 = vcvt.s32.f32 %v4303
      %v4336 = vcvt.s32.f32 %v4304
      %v4337 = vcvt.s32.f32 %v4305
      %v4338 = vcvt.s32.f32 %v4306
      %v4339 = vcvt.s32.f32 %v4307
      %v4340 = vcvt.s32.f32 %v4308
      %v4341 = vcvt.s32.f32 %v4309
      %v4342 = vcvt.s32.f32 %v4310
      %vm4375 = vcmask 1041409
      %v4376 = vsel %vm4375, %v4312, %v4311
      %vm4377 = vcmask 1042434
      %v4378 = vsel %vm4377, %v4313, %v4376
      %vm4379 = vcmask 1043459
      %v4380 = vsel %vm4379, %v4314, %v4378
      %vm4381 = vcmask 1044484
      %v4382 = vsel %vm4381, %v4315, %v4380
      %vm4383 = vcmask 1045509
      %v4384 = vsel %vm4383, %v4316, %v4382
      %vm4385 = vcmask 1046534
      %v4386 = vsel %vm4385, %v4317, %v4384
      %vm4387 = vcmask 1047559
      %v4388 = vsel %vm4387, %v4318, %v4386
      %v4389 = vsel %vm4375, %v4320, %v4319
      %v4390 = vsel %vm4377, %v4321, %v4389
      %v4391 = vsel %vm4379, %v4322, %v4390
      %v4392 = vsel %vm4381, %v4323, %v4391
      %v4393 = vsel %vm4383, %v4324, %v4392
      %v4394 = vsel %vm4385, %v4325, %v4393
      %v4395 = vsel %vm4387, %v4326, %v4394
      %v4396 = vsel %vm4375, %v4328, %v4327
      %v4397 = vsel %vm4377, %v4329, %v4396
      %v4398 = vsel %vm4379, %v4330, %v4397
      %v4399 = vsel %vm4381, %v4331, %v4398
      %v4400 = vsel %vm4383, %v4332, %v4399
      %v4401 = vsel %vm4385, %v4333, %v4400
      %v4402 = vsel %vm4387, %v4334, %v4401
      %v4403 = vsel %vm4375, %v4336, %v4335
      %v4404 = vsel %vm4377, %v4337, %v4403
      %v4405 = vsel %vm4379, %v4338, %v4404
      %v4406 = vsel %vm4381, %v4339, %v4405
      %v4407 = vsel %vm4383, %v4340, %v4406
      %v4408 = vsel %vm4385, %v4341, %v4407
      %v4409 = vsel %vm4387, %v4342, %v4408
      %4414 = vadd.xlane.f32.xlu0 %v4388
      %v4415 = vpop.xlane.xlu0 %4414
      %4416 = vadd.xlane.f32.xlu0 %v4395
      %v4417 = vpop.xlane.xlu0 %4416
      %4418 = vadd.xlane.f32.xlu0 %v4402
      %v4419 = vpop.xlane.xlu0 %4418
      %4420 = vadd.xlane.f32.xlu0 %v4409
      %v4421 = vpop.xlane.xlu0 %4420
      %v4422 = vrot.slane %v43, 1
      %v4423 = vrot.slane %v43, 2
      %v4424 = vrot.slane %v43, 3
      %v4425 = vrot.slane %v43, 4
      %v4426 = vrot.slane %v43, 5
      %v4427 = vrot.slane %v43, 6
      %v4428 = vrot.slane %v43, 7
      %v4429 = vrot.slane %v44, 1
      %v4430 = vrot.slane %v44, 2
      %v4431 = vrot.slane %v44, 3
      %v4432 = vrot.slane %v44, 4
      %v4433 = vrot.slane %v44, 5
      %v4434 = vrot.slane %v44, 6
      %v4435 = vrot.slane %v44, 7
      %v4436 = vrot.slane %v45, 1
      %v4437 = vrot.slane %v45, 2
      %v4438 = vrot.slane %v45, 3
      %v4439 = vrot.slane %v45, 4
      %v4440 = vrot.slane %v45, 5
      %v4441 = vrot.slane %v45, 6
      %v4442 = vrot.slane %v45, 7
      %v4443 = vrot.slane %v46, 1
      %v4444 = vrot.slane %v46, 2
      %v4445 = vrot.slane %v46, 3
      %v4446 = vrot.slane %v46, 4
      %v4447 = vrot.slane %v46, 5
      %v4448 = vrot.slane %v46, 6
      %v4449 = vrot.slane %v46, 7
      %v4482 = vsel %vm4247, %v43, 0.0
      %v4483 = vsel %vm4248, %v4422, 0.0
      %v4484 = vsel %vm4249, %v4423, 0.0
      %v4485 = vsel %vm4250, %v4424, 0.0
      %v4486 = vsel %vm4251, %v4425, 0.0
      %v4487 = vsel %vm4252, %v4426, 0.0
      %v4488 = vsel %vm4253, %v4427, 0.0
      %v4489 = vsel %vm4254, %v4428, 0.0
      %v4490 = vsel %vm4255, %v44, 0.0
      %v4491 = vsel %vm4256, %v4429, 0.0
      %v4492 = vsel %vm4257, %v4430, 0.0
      %v4493 = vsel %vm4258, %v4431, 0.0
      %v4494 = vsel %vm4259, %v4432, 0.0
      %v4495 = vsel %vm4260, %v4433, 0.0
      %v4496 = vsel %vm4261, %v4434, 0.0
      %v4497 = vsel %vm4262, %v4435, 0.0
      %v4498 = vsel %vm4263, %v45, 0.0
      %v4499 = vsel %vm4264, %v4436, 0.0
      %v4500 = vsel %vm4265, %v4437, 0.0
      %v4501 = vsel %vm4266, %v4438, 0.0
      %v4502 = vsel %vm4267, %v4439, 0.0
      %v4503 = vsel %vm4268, %v4440, 0.0
      %v4504 = vsel %vm4269, %v4441, 0.0
      %v4505 = vsel %vm4270, %v4442, 0.0
      %v4506 = vsel %vm4271, %v46, 0.0
      %v4507 = vsel %vm4272, %v4443, 0.0
      %v4508 = vsel %vm4273, %v4444, 0.0
      %v4509 = vsel %vm4274, %v4445, 0.0
      %v4510 = vsel %vm4275, %v4446, 0.0
      %v4511 = vsel %vm4276, %v4447, 0.0
      %v4512 = vsel %vm4277, %v4448, 0.0
      %v4513 = vsel %vm4278, %v4449, 0.0
      %v4546 = vrot.slane %v4483, 7
      %v4547 = vsel %vm4375, %v4546, %v4482
      %v4548 = vrot.slane %v4484, 6
      %v4549 = vsel %vm4377, %v4548, %v4547
      %v4550 = vrot.slane %v4485, 5
      %v4551 = vsel %vm4379, %v4550, %v4549
      %v4552 = vrot.slane %v4486, 4
      %v4553 = vsel %vm4381, %v4552, %v4551
      %v4554 = vrot.slane %v4487, 3
      %v4555 = vsel %vm4383, %v4554, %v4553
      %v4556 = vrot.slane %v4488, 2
      %v4557 = vsel %vm4385, %v4556, %v4555
      %v4558 = vrot.slane %v4489, 1
      %v4559 = vsel %vm4387, %v4558, %v4557
      %v4560 = vrot.slane %v4491, 7
      %v4561 = vsel %vm4375, %v4560, %v4490
      %v4562 = vrot.slane %v4492, 6
      %v4563 = vsel %vm4377, %v4562, %v4561
      %v4564 = vrot.slane %v4493, 5
      %v4565 = vsel %vm4379, %v4564, %v4563
      %v4566 = vrot.slane %v4494, 4
      %v4567 = vsel %vm4381, %v4566, %v4565
      %v4568 = vrot.slane %v4495, 3
      %v4569 = vsel %vm4383, %v4568, %v4567
      %v4570 = vrot.slane %v4496, 2
      %v4571 = vsel %vm4385, %v4570, %v4569
      %v4572 = vrot.slane %v4497, 1
      %v4573 = vsel %vm4387, %v4572, %v4571
      %v4574 = vrot.slane %v4499, 7
      %v4575 = vsel %vm4375, %v4574, %v4498
      %v4576 = vrot.slane %v4500, 6
      %v4577 = vsel %vm4377, %v4576, %v4575
      %v4578 = vrot.slane %v4501, 5
      %v4579 = vsel %vm4379, %v4578, %v4577
      %v4580 = vrot.slane %v4502, 4
      %v4581 = vsel %vm4381, %v4580, %v4579
      %v4582 = vrot.slane %v4503, 3
      %v4583 = vsel %vm4383, %v4582, %v4581
      %v4584 = vrot.slane %v4504, 2
      %v4585 = vsel %vm4385, %v4584, %v4583
      %v4586 = vrot.slane %v4505, 1
      %v4587 = vsel %vm4387, %v4586, %v4585
      %v4588 = vrot.slane %v4507, 7
      %v4589 = vsel %vm4375, %v4588, %v4506
      %v4590 = vrot.slane %v4508, 6
      %v4591 = vsel %vm4377, %v4590, %v4589
      %v4592 = vrot.slane %v4509, 5
      %v4593 = vsel %vm4379, %v4592, %v4591
      %v4594 = vrot.slane %v4510, 4
      %v4595 = vsel %vm4381, %v4594, %v4593
      %v4596 = vrot.slane %v4511, 3
      %v4597 = vsel %vm4383, %v4596, %v4595
      %v4598 = vrot.slane %v4512, 2
      %v4599 = vsel %vm4385, %v4598, %v4597
      %v4600 = vrot.slane %v4513, 1
      %v4601 = vsel %vm4387, %v4600, %v4599
      %4606 = vadd.xlane.f32.xlu0 %v4559
      %v4607 = vpop.xlane.xlu0 %4606
      %4608 = vadd.xlane.f32.xlu0 %v4573
      %v4609 = vpop.xlane.xlu0 %4608
      %4610 = vadd.xlane.f32.xlu0 %v4587
      %v4611 = vpop.xlane.xlu0 %4610
      %4612 = vadd.xlane.f32.xlu0 %v4601
      %v4613 = vpop.xlane.xlu0 %4612
      %v4614 = vsub.f32 %v4607, 1.0
      %v4615 = vsub.f32 %v4609, 1.0
      %v4616 = vsub.f32 %v4611, 1.0
      %v4617 = vsub.f32 %v4613, 1.0
      %v4618 = vrcp.pop %v4415
      %v4619 = vrcp.pop %v4417
      %v4620 = vrcp.pop %v4419
      %v4621 = vrcp.pop %v4421
      %v4622 = vmul.f32 %v4614, %v4618
      %v4623 = vmul.f32 %v4615, %v4619
      %v4624 = vmul.f32 %v4616, %v4620
      %v4625 = vmul.f32 %v4617, %v4621
      %v4626 = vsub.f32 %v43, %v4622
      %v4627 = vsub.f32 %v44, %v4623
      %v4628 = vsub.f32 %v45, %v4624
      %v4629 = vsub.f32 %v46, %v4625
      %v4630 = vmax.f32 %v4626, 0.0
      %v4631 = vmax.f32 %v4627, 0.0
      %v4632 = vmax.f32 %v4628, 0.0
      %v4633 = vmax.f32 %v4629, 0.0
      %s4634 = scalar_lea.vmem [#allocation5], %s29
      %4635 = vst [vmem:[%s4634] sm:$0xff] %v4630
      %4636 = vst [vmem:[%s4634 + $0x8] sm:$0xff] %v4631
      %4637 = vst [vmem:[%s4634 + $0x10] sm:$0xff] %v4632
      %4638 = vst [vmem:[%s4634 + $0x18] sm:$0xff] %v4633
    $region14: #{sparsemax.1} parent=1 // loop_footer
      %s28 = sadd.s32 1, %s24
    $region15: #{sparsemax.1} parent=1 // loop_footer_branch
      %23 = sbr.rel target = $region11
    $region16: #{sparsemax.1} parent=1 // loop_exit
      _
    // Predicated region
    $region17: #{sparsemax.1} parent=1 // pred_check
      _
    $region18: #{sparsemax.1} parent=1 // pred_check_branch
      %4640 = sbr.rel (0) target = $region20
    $region19: #{sparsemax.1} parent=1 // pred_region
      %s4642 = ssub.s32 1024, 1024
      %4643 = vsyncadd [#allocation4], %s4642
      %s4644 = sshll.u32 [#allocation5], 4
      %s4645 = int_to_ptr.vmem [resolvable:$true] %s4644
      %4650 = dma.vmem_to_hbm [thread:$0]  %s4645, 1024, %s1, [#allocation4], 128, 128, 8
    $region20: #{sparsemax.1} parent=1 // pred_fallthru
      _
    // Predicated region
    $region21: #{sparsemax.1} parent=1 // pred_check
      _
    $region22: #{sparsemax.1} parent=1 // pred_check_branch
      %4652 = sbr.rel (0) target = $region24
    $region23: #{sparsemax.1} parent=1 // pred_region
      %4653 = dma.done [#allocation4], 1024
    $region24: #{sparsemax.1} parent=1 // pred_fallthru
      _
    %4654 = vsyncpa [#allocation3], 1
    %4655 = vsyncpa [#allocation4], 1

</llo_original>
